<compile_context>
chip_gen: v7x
topology: tpu7x:2x2x1
jax: 0.10.0
libtpu: 0.0.40
codegen_flags: <defaults>
</compile_context>

<pallas_src>
import math
from functools import partial

import jax
import jax.numpy as jnp
from jax.experimental import pallas as pl
from jax.experimental.pallas import tpu as pltpu

N_HEADS = 8


# ---------------------------------------------------------------------------
# helpers
# ---------------------------------------------------------------------------
def _pick_tile(dim, pref, granule):
    """Largest tile <= pref that (a) evenly divides dim and (b) is a multiple
    of `granule` (8 for sublane dims, 128 for lane dims).  Falls back to the
    full dimension (always legal) only when no such divisor exists."""
    if dim <= pref:
        return dim
    for cand in range(min(pref, dim), granule - 1, -1):
        if dim % cand == 0 and cand % granule == 0:
            return cand
    return dim


# ---------------------------------------------------------------------------
# Kernel 1: tiled MXU matmul + bias (+ optional fused ReLU)
# Used for the fused QKV projection and fc1.
# ---------------------------------------------------------------------------
def _linear_kernel(x_ref, w_ref, b_ref, o_ref, acc_ref, *, activation):
    k = pl.program_id(2)

    @pl.when(k == 0)
    def _():
        acc_ref[...] = jnp.zeros_like(acc_ref)

    acc_ref[...] += jnp.dot(x_ref[...], w_ref[...],
                            preferred_element_type=jnp.float32)

    @pl.when(k == pl.num_programs(2) - 1)
    def _():
        out = acc_ref[...] + b_ref[...].astype(jnp.float32)
        if activation == "relu":
            out = jnp.maximum(out, 0.0)
        o_ref[...] = out.astype(o_ref.dtype)


def linear(x2d, w, b, activation=None, *, tm=256, tn=512, tk=512):
    M, K = x2d.shape
    K2, N = w.shape
    assert K == K2
    tm = _pick_tile(M, tm, 8)
    tn = _pick_tile(N, tn, 128)
    tk = _pick_tile(K, tk, 128)
    grid = (M // tm, N // tn, K // tk)
    return pl.pallas_call(
        partial(_linear_kernel, activation=activation),
        out_shape=jax.ShapeDtypeStruct((M, N), x2d.dtype),
        grid=grid,
        in_specs=[
            pl.BlockSpec((tm, tk), lambda i, j, k: (i, k)),
            pl.BlockSpec((tk, tn), lambda i, j, k: (k, j)),
            pl.BlockSpec((1, tn), lambda i, j, k: (0, j)),
        ],
        out_specs=pl.BlockSpec((tm, tn), lambda i, j, k: (i, j)),
        scratch_shapes=[pltpu.VMEM((tm, tn), jnp.float32)],
        compiler_params=pltpu.CompilerParams(
            dimension_semantics=("parallel", "parallel", "arbitrary")),
    )(x2d, w, b.reshape(1, N))


# ---------------------------------------------------------------------------
# Kernel 2: tiled matmul + bias + residual + Norm + non-pad mask epilogue.
# Requires the full output feature dim (the normalized axis) in one block,
# which holds since N == hidden_dim (128) here.  Two-pass variance with
# ddof=1 to match torch.var.
# ---------------------------------------------------------------------------
def _linear_norm_kernel(x_ref, w_ref, b_ref, r_ref, npm_ref, gb_ref,
                        o_ref, acc_ref):
    k = pl.program_id(1)

    @pl.when(k == 0)
    def _():
        acc_ref[...] = jnp.zeros_like(acc_ref)

    acc_ref[...] += jnp.dot(x_ref[...], w_ref[...],
                            preferred_element_type=jnp.float32)

    @pl.when(k == pl.num_programs(1) - 1)
    def _():
        y = (acc_ref[...] + b_ref[...].astype(jnp.float32)
             + r_ref[...].astype(jnp.float32))
        D = y.shape[-1]
        mu = jnp.mean(y, axis=-1, keepdims=True)
        d = y - mu
        var = jnp.sum(d * d, axis=-1, keepdims=True) * jnp.float32(
            1.0 / (D - 1 if D > 1 else 1))
        xn = d * jax.lax.rsqrt(var + jnp.float32(1e-8))
        out = gb_ref[0] * xn + gb_ref[1]
        keep = npm_ref[...] != 0                       # [rows, 1]
        o_ref[...] = jnp.where(keep, out, 0.0).astype(o_ref.dtype)


def linear_residual_norm_mask(x2d, w, b, resid2d, npm2d, gamma, beta,
                              *, tm=256, tk=512):
    M, K = x2d.shape
    K2, N = w.shape
    assert K == K2 and resid2d.shape == (M, N)
    tm = _pick_tile(M, tm, 8)
    tk = _pick_tile(K, tk, 128)
    gb = jnp.stack([jnp.asarray(gamma, jnp.float32),
                    jnp.asarray(beta, jnp.float32)])
    grid = (M // tm, K // tk)
    return pl.pallas_call(
        _linear_norm_kernel,
        out_shape=jax.ShapeDtypeStruct((M, N), x2d.dtype),
        grid=grid,
        in_specs=[
            pl.BlockSpec((tm, tk), lambda i, k: (i, k)),
            pl.BlockSpec((tk, N), lambda i, k: (k, 0)),
            pl.BlockSpec((1, N), lambda i, k: (0, 0)),
            pl.BlockSpec((tm, N), lambda i, k: (i, 0)),
            pl.BlockSpec((tm, 1), lambda i, k: (i, 0)),
            pl.BlockSpec(memory_space=pltpu.MemorySpace.SMEM),
        ],
        out_specs=pl.BlockSpec((tm, N), lambda i, k: (i, 0)),
        scratch_shapes=[pltpu.VMEM((tm, N), jnp.float32)],
        compiler_params=pltpu.CompilerParams(
            dimension_semantics=("parallel", "arbitrary")),
    )(x2d, w, b.reshape(1, N), resid2d, npm2d, gb)


# ---------------------------------------------------------------------------
# Kernel 3: multi-head attention core.
# Grid over (batch, query-row tiles).  qkv has head-contiguous features
# (weights pre-permuted), so each head is a static column slice; the output
# is written head-concatenated, i.e. lane-dense [tq, Hd] with Hd = 128.
# ---------------------------------------------------------------------------
def _mha_kernel(q_ref, kv_ref, mask_ref, o_ref, *, n_heads, d_head, scale):
    hd = n_heads * d_head
    masked = mask_ref[0] != 0                               # [tq, S]
    for h in range(n_heads):
        lo = h * d_head
        q_h = q_ref[0, :, lo:lo + d_head].astype(jnp.float32) * jnp.float32(scale)
        k_h = kv_ref[0, :, hd + lo:hd + lo + d_head].astype(jnp.float32)
        v_h = kv_ref[0, :, 2 * hd + lo:2 * hd + lo + d_head].astype(jnp.float32)
        s = jax.lax.dot_general(q_h, k_h, (((1,), (1,)), ((), ())),
                                preferred_element_type=jnp.float32)  # [tq, S]
        s = jnp.where(masked, jnp.float32(-1e10), s)
        m = jnp.max(s, axis=-1, keepdims=True)
        p = jnp.exp(s - m)
        inv = pl.reciprocal(jnp.sum(p, axis=-1, keepdims=True), approx=True)
        out_h = jnp.dot(p * inv, v_h, preferred_element_type=jnp.float32)
        o_ref[0, :, lo:lo + d_head] = out_h.astype(o_ref.dtype)


def mha(qkv3, attn_mask, *, n_heads, d_head, scale, tq_pref=256):
    B, S, C = qkv3.shape
    hd = n_heads * d_head
    assert C == 3 * hd
    tq = _pick_tile(S, tq_pref, 8)
    grid = (B, S // tq)
    return pl.pallas_call(
        partial(_mha_kernel, n_heads=n_heads, d_head=d_head, scale=scale),
        out_shape=jax.ShapeDtypeStruct((B, S, hd), qkv3.dtype),
        grid=grid,
        in_specs=[
            # q tile: first hd columns of qkv for this query-row tile
            pl.BlockSpec((1, tq, hd), lambda b, qi: (b, qi, 0)),
            # full per-batch qkv (k & v), resident across q tiles
            pl.BlockSpec((1, S, C), lambda b, qi: (b, 0, 0)),
            # mask rows for this q tile
            pl.BlockSpec((1, tq, S), lambda b, qi: (b, qi, 0)),
        ],
        out_specs=pl.BlockSpec((1, tq, hd), lambda b, qi: (b, qi, 0)),
        compiler_params=pltpu.CompilerParams(
            dimension_semantics=("parallel", "parallel")),
    )(qkv3, qkv3, attn_mask)


# ---------------------------------------------------------------------------
# Encoder_layer forward (dropout=False), composed from the Pallas kernels.
# ---------------------------------------------------------------------------
def encoder_layer_forward(x, attn_mask, non_pad_mask, params):
    B, S, D = x.shape
    Hd = params["wq"].shape[1]
    Dh = Hd // N_HEADS
    x2 = x.reshape(B * S, D)
    npm2 = non_pad_mask.reshape(B * S, 1)

    # Column permutation so head h occupies contiguous columns [h*Dh, (h+1)*Dh).
    # torch: view(B,S,Dh,8).permute(3,0,1,2) -> head h takes features h::8,
    # and cat(head3[0..7], dim=2) is head-major -> permuted w_os input matches
    # w_os as-is.
    perm = jnp.arange(Hd).reshape(Dh, N_HEADS).T.reshape(-1)
    wqkv = jnp.concatenate([params["wq"][:, perm],
                            params["wk"][:, perm],
                            params["wv"][:, perm]], axis=1)      # [D, 3*Hd]
    bqkv = jnp.concatenate([params["bq"][perm], params["bk"][perm],
                            params["bv"][perm]])                 # [3*Hd]

    # --- fused Q/K/V projection (one matmul, one read of x) ---
    qkv = linear(x2, wqkv, bqkv).reshape(B, S, 3 * Hd)

    # --- attention core (scores, masked_fill(-1e10), softmax, alpha@V) ---
    scale = 1.0 / math.sqrt(D)        # torch divides by sqrt(d_k), d_k = hidden_dim
    attn = mha(qkv, attn_mask, n_heads=N_HEADS, d_head=Dh, scale=scale)  # [B,S,Hd]

    # --- w_os + residual + Norm + non-pad mask, fused epilogue ---
    out1 = linear_residual_norm_mask(attn.reshape(B * S, Hd),
                                     params["wo"], params["bo"],
                                     x2, npm2, params["g1"], params["b1"])

    # --- FFN: fc1+ReLU, then fc2 + residual + Norm + non-pad mask fused ---
    h = linear(out1, params["w1"], params["bf1"], activation="relu")
    out2 = linear_residual_norm_mask(h, params["w2"], params["bf2"],
                                     out1, npm2, params["g2"], params["b2"])
    return out2.reshape(B, S, D)


# ---------------------------------------------------------------------------
# Pure-JAX reference (mirrors the torch forward exactly; un-permuted weights).
# ---------------------------------------------------------------------------
def reference_forward(x, attn_mask, non_pad_mask, params):
    B, S, D = x.shape
    Hd = params["wq"].shape[1]
    Dh = Hd // N_HEADS

    def norm(t, g, b):
        mu = jnp.mean(t, axis=2, keepdims=True)
        var = jnp.var(t, axis=2, keepdims=True, ddof=1)
        return g * ((t - mu) / jnp.sqrt(var + 1e-8)) + b

    def split_heads(p):
        return p.reshape(B, S, Dh, N_HEADS).transpose(0, 3, 1, 2)

    q = split_heads(x @ params["wq"] + params["bq"])
    k = split_heads(x @ params["wk"] + params["bk"])
    v = split_heads(x @ params["wv"] + params["bv"])
    e = jnp.einsum("bhqd,bhkd->bhqk", q, k) / math.sqrt(D)
    e = jnp.where(attn_mask[:, None, :, :] != 0, -1e10, e)
    alpha = jax.nn.softmax(e, axis=-1)
    heads = jnp.einsum("bhqk,bhkd->bhqd", alpha, v)
    a = heads.transpose(0, 2, 1, 3).reshape(B, S, Hd)
    attn_out = a @ params["wo"] + params["bo"]
    out1 = norm(attn_out + x, params["g1"], params["b1"])
    out1 = jnp.where(non_pad_mask != 0, out1, 0.0)
    h = jax.nn.relu(out1 @ params["w1"] + params["bf1"])
    f = h @ params["w2"] + params["bf2"]
    out2 = norm(f + out1, params["g2"], params["b2"])
    out2 = jnp.where(non_pad_mask != 0, out2, 0.0)
    return out2


if __name__ == "__main__":
    B, S = 2, 16
    D = 128          # hidden_dim
    Hd = 128         # hidden_dim_ (8 heads of 16)
    F_ = 4 * D       # FFN inner dim

    key = jax.random.PRNGKey(0)
    keys = jax.random.split(key, 12)

    x = jax.random.normal(keys[0], (B, S, D), dtype=jnp.float32)

    # padding structure: batch 0 full length, batch 1 has 4 padded positions
    lengths = jnp.array([S, S - 4], dtype=jnp.int32)
    pos = jnp.arange(S, dtype=jnp.int32)
    non_pad_mask = (pos[None, :] < lengths[:, None]).astype(jnp.float32)[..., None]   # [B,S,1]
    attn_mask = jnp.broadcast_to(
        pos[None, None, :] >= lengths[:, None, None], (B, S, S)).astype(jnp.int32)    # True where key is pad

    def w(k, fan_in, fan_out, std):
        return std * jax.random.normal(k, (fan_in, fan_out), dtype=jnp.float32)

    params = {
        "wq": w(keys[1], D, Hd, math.sqrt(2.0 / D)),
        "bq": 0.1 * jax.random.normal(keys[2], (Hd,), dtype=jnp.float32),
        "wk": w(keys[3], D, Hd, math.sqrt(2.0 / D)),
        "bk": 0.1 * jax.random.normal(keys[4], (Hd,), dtype=jnp.float32),
        "wv": w(keys[5], D, Hd, math.sqrt(2.0 / D)),
        "bv": 0.1 * jax.random.normal(keys[6], (Hd,), dtype=jnp.float32),
        "wo": w(keys[7], Hd, D, math.sqrt(2.0 / (Hd + D))),
        "bo": 0.1 * jax.random.normal(keys[8], (D,), dtype=jnp.float32),
        "w1": w(keys[9], D, F_, math.sqrt(2.0 / (D + F_))),
        "bf1": jnp.zeros((F_,), dtype=jnp.float32),
        "w2": w(keys[10], F_, D, math.sqrt(2.0 / (D + F_))),
        "bf2": 0.1 * jax.random.normal(keys[11], (D,), dtype=jnp.float32),
        "g1": jnp.asarray(1.05, jnp.float32), "b1": jnp.asarray(0.10, jnp.float32),
        "g2": jnp.asarray(0.95, jnp.float32), "b2": jnp.asarray(-0.05, jnp.float32),
    }

    out = jax.block_until_ready(
        jax.jit(encoder_layer_forward)(x, attn_mask, non_pad_mask, params))

    with jax.default_matmul_precision("highest"):
        ref = jax.block_until_ready(
            jax.jit(reference_forward)(x, attn_mask, non_pad_mask, params))

    assert out.shape == (B, S, D)
    assert bool(jnp.all(jnp.isfinite(out)))
    # Tolerance accounts for MXU default-precision matmuls / approx reciprocal
    # in the kernels vs the highest-precision XLA reference.
    assert jnp.allclose(out, ref, atol=5e-2, rtol=5e-2), (
        "mismatch vs reference: max abs diff "
        f"{float(jnp.max(jnp.abs(out - ref)))}")

    print("KERNEL_OK")
</pallas_src>

<mosaic_0001>
module attributes {stable_mosaic.version = 11 : i64} {
  func.func @_linear_kernel(%arg0: i32, %arg1: i32, %arg2: i32, %arg3: memref<32x128xf32, #tpu.memory_space<vmem>>, %arg4: memref<128x384xf32, #tpu.memory_space<vmem>>, %arg5: memref<1x384xf32, #tpu.memory_space<vmem>>, %arg6: memref<32x384xf32, #tpu.memory_space<vmem>>, %arg7: memref<32x384xf32, #tpu.memory_space<vmem>>) attributes {dimension_semantics = [#tpu.dimension_semantics<parallel>, #tpu.dimension_semantics<parallel>, #tpu.dimension_semantics<arbitrary>], iteration_bounds = array<i64: 1, 1, 1>, scalar_prefetch = 0 : i64, scratch_operands = 1 : i64, tpu.core_type = #tpu.core_type<tc>, window_params = [{transform_indices = @transform_0, window_bounds = array<i64: 32, 128>}, {transform_indices = @transform_1, window_bounds = array<i64: 128, 384>}, {transform_indices = @transform_2, window_bounds = array<i64: 1, 384>}, {transform_indices = @transform_3, window_bounds = array<i64: 32, 384>}]} {
    %c0_i32 = arith.constant 0 : i32
    %0 = arith.cmpi eq, %arg2, %c0_i32 : i32
    %1 = arith.extui %0 : i1 to i32
    %c0_i32_0 = arith.constant 0 : i32
    %2 = arith.cmpi ne, %1, %c0_i32_0 : i32
    scf.if %2 {
      %cst_10 = arith.constant 0.000000e+00 : f32
      %12 = vector.broadcast %cst_10 : f32 to vector<32x384xf32>
      %c0_11 = arith.constant 0 : index
      %c0_12 = arith.constant 0 : index
      %13 = vector.load %arg7[%c0_11, %c0_12] : memref<32x384xf32, #tpu.memory_space<vmem>>, vector<32x384xf32>
      tpu.vector_store %arg7[%c0_11, %c0_12], %12 {strides = array<i32>} : memref<32x384xf32, #tpu.memory_space<vmem>>, vector<32x384xf32>,
    } else {
    }
    %c0 = arith.constant 0 : index
    %c0_1 = arith.constant 0 : index
    %3 = vector.load %arg7[%c0, %c0_1] : memref<32x384xf32, #tpu.memory_space<vmem>>, vector<32x384xf32>
    %c0_2 = arith.constant 0 : index
    %c0_3 = arith.constant 0 : index
    %4 = vector.load %arg3[%c0_2, %c0_3] : memref<32x128xf32, #tpu.memory_space<vmem>>, vector<32x128xf32>
    %c0_4 = arith.constant 0 : index
    %c0_5 = arith.constant 0 : index
    %5 = vector.load %arg4[%c0_4, %c0_5] : memref<128x384xf32, #tpu.memory_space<vmem>>, vector<128x384xf32>
    %cst = arith.constant dense<0.000000e+00> : vector<32x384xf32>
    %6 = tpu.matmul %4, %5, %cst {dimension_numbers = #tpu.dot_dimension_numbers<[1], [0], [0], [1], [0, 0, 1, 1], [], []>} : vector<32x128xf32>, vector<128x384xf32>, vector<32x384xf32> -> vector<32x384xf32>
    %7 = arith.addf %3, %6 : vector<32x384xf32>
    %c0_6 = arith.constant 0 : index
    %c0_7 = arith.constant 0 : index
    %8 = vector.load %arg7[%c0_6, %c0_7] : memref<32x384xf32, #tpu.memory_space<vmem>>, vector<32x384xf32>
    tpu.vector_store %arg7[%c0_6, %c0_7], %7 {strides = array<i32>} : memref<32x384xf32, #tpu.memory_space<vmem>>, vector<32x384xf32>,
    %c0_i32_8 = arith.constant 0 : i32
    %9 = arith.cmpi eq, %arg2, %c0_i32_8 : i32
    %10 = arith.extui %9 : i1 to i32
    %c0_i32_9 = arith.constant 0 : i32
    %11 = arith.cmpi ne, %10, %c0_i32_9 : i32
    scf.if %11 {
      %c0_10 = arith.constant 0 : index
      %c0_11 = arith.constant 0 : index
      %12 = vector.load %arg7[%c0_10, %c0_11] : memref<32x384xf32, #tpu.memory_space<vmem>>, vector<32x384xf32>
      %c0_12 = arith.constant 0 : index
      %c0_13 = arith.constant 0 : index
      %13 = vector.load %arg5[%c0_12, %c0_13] : memref<1x384xf32, #tpu.memory_space<vmem>>, vector<1x384xf32>
      %14 = vector.broadcast %13 : vector<1x384xf32> to vector<32x384xf32>
      %15 = arith.addf %12, %14 : vector<32x384xf32>
      %c0_14 = arith.constant 0 : index
      %c0_15 = arith.constant 0 : index
      %16 = vector.load %arg6[%c0_14, %c0_15] : memref<32x384xf32, #tpu.memory_space<vmem>>, vector<32x384xf32>
      tpu.vector_store %arg6[%c0_14, %c0_15], %15 {strides = array<i32>} : memref<32x384xf32, #tpu.memory_space<vmem>>, vector<32x384xf32>,
    } else {
    }
    return
  }
  func.func @transform_0(%arg0: i32, %arg1: i32, %arg2: i32) -> (i32, i32) {
    %c0_i32 = arith.constant 0 : i32
    return %arg0, %arg2 : i32, i32
  }
  func.func @transform_1(%arg0: i32, %arg1: i32, %arg2: i32) -> (i32, i32) {
    %c0_i32 = arith.constant 0 : i32
    return %arg2, %arg1 : i32, i32
  }
  func.func @transform_2(%arg0: i32, %arg1: i32, %arg2: i32) -> (i32, i32) {
    %c0_i32 = arith.constant 0 : i32
    %c0_i32_0 = arith.constant 0 : i32
    return %c0_i32, %arg1 : i32, i32
  }
  func.func @transform_3(%arg0: i32, %arg1: i32, %arg2: i32) -> (i32, i32) {
    %c0_i32 = arith.constant 0 : i32
    return %arg0, %arg1 : i32, i32
  }
}

module attributes {stable_mosaic.version = 11 : i64} {
  func.func @_mha_kernel(%arg0: i32, %arg1: i32, %arg2: memref<1x16x128xf32, #tpu.memory_space<vmem>>, %arg3: memref<1x16x384xf32, #tpu.memory_space<vmem>>, %arg4: memref<1x16x16xi32, #tpu.memory_space<vmem>>, %arg5: memref<1x16x128xf32, #tpu.memory_space<vmem>>) attributes {dimension_semantics = [#tpu.dimension_semantics<parallel>, #tpu.dimension_semantics<parallel>], iteration_bounds = array<i64: 2, 1>, scalar_prefetch = 0 : i64, scratch_operands = 0 : i64, tpu.core_type = #tpu.core_type<tc>, window_params = [{transform_indices = @transform_0, window_bounds = array<i64: 1, 16, 128>}, {transform_indices = @transform_1, window_bounds = array<i64: 1, 16, 384>}, {transform_indices = @transform_2, window_bounds = array<i64: 1, 16, 16>}, {transform_indices = @transform_3, window_bounds = array<i64: 1, 16, 128>}]} {
    %c0 = arith.constant 0 : index
    %c0_0 = arith.constant 0 : index
    %c0_1 = arith.constant 0 : index
    %0 = vector.load %arg4[%c0, %c0_0, %c0_1] : memref<1x16x16xi32, #tpu.memory_space<vmem>>, vector<1x16x16xi32>
    %1 = vector.shape_cast %0 : vector<1x16x16xi32> to vector<16x16xi32>
    %c0_i32 = arith.constant 0 : i32
    %2 = vector.broadcast %c0_i32 : i32 to vector<16x16xi32>
    %3 = arith.cmpi ne, %1, %2 : vector<16x16xi32>
    %c0_2 = arith.constant 0 : index
    %c0_3 = arith.constant 0 : index
    %c0_4 = arith.constant 0 : index
    %4 = vector.load %arg2[%c0_2, %c0_3, %c0_4] : memref<1x16x128xf32, #tpu.memory_space<vmem>>, vector<1x16x16xf32>
    %5 = vector.shape_cast %4 : vector<1x16x16xf32> to vector<16x16xf32>
    %cst = arith.constant 0.0883883461 : f32
    %6 = vector.broadcast %cst : f32 to vector<16x16xf32>
    %7 = arith.mulf %5, %6 : vector<16x16xf32>
    %c0_5 = arith.constant 0 : index
    %c0_6 = arith.constant 0 : index
    %c128 = arith.constant 128 : index
    %8 = vector.load %arg3[%c0_5, %c0_6, %c128] : memref<1x16x384xf32, #tpu.memory_space<vmem>>, vector<1x16x16xf32>
    %9 = vector.shape_cast %8 : vector<1x16x16xf32> to vector<16x16xf32>
    %c0_7 = arith.constant 0 : index
    %c0_8 = arith.constant 0 : index
    %c256 = arith.constant 256 : index
    %10 = vector.load %arg3[%c0_7, %c0_8, %c256] : memref<1x16x384xf32, #tpu.memory_space<vmem>>, vector<1x16x16xf32>
    %11 = vector.shape_cast %10 : vector<1x16x16xf32> to vector<16x16xf32>
    %cst_9 = arith.constant dense<0.000000e+00> : vector<16x16xf32>
    %12 = tpu.matmul %7, %9, %cst_9 {dimension_numbers = #tpu.dot_dimension_numbers<[1], [1], [0], [0], [0, 0, 1, 0], [], []>} : vector<16x16xf32>, vector<16x16xf32>, vector<16x16xf32> -> vector<16x16xf32>
    %cst_10 = arith.constant -1.000000e+10 : f32
    %13 = vector.broadcast %cst_10 : f32 to vector<16x16xf32>
    %14 = arith.select %3, %13, %12 : vector<16x16xi1>, vector<16x16xf32>
    %cst_11 = arith.constant dense<0xFF800000> : vector<16xf32>
    %15 = vector.multi_reduction <maximumf>, %14, %cst_11 [1] : vector<16x16xf32> to vector<16xf32>
    %16 = vector.shape_cast %15 : vector<16xf32> to vector<16x1xf32>
    %17 = vector.broadcast %16 : vector<16x1xf32> to vector<16x16xf32>
    %18 = arith.subf %14, %17 : vector<16x16xf32>
    %19 = math.exp %18 : vector<16x16xf32>
    %cst_12 = arith.constant dense<0.000000e+00> : vector<16xf32>
    %20 = vector.multi_reduction <add>, %19, %cst_12 [1] : vector<16x16xf32> to vector<16xf32>
    %21 = vector.shape_cast %20 : vector<16xf32> to vector<16x1xf32>
    %22 = tpu.reciprocal %21 {approx = true} : vector<16x1xf32> -> vector<16x1xf32>
    %23 = vector.broadcast %22 : vector<16x1xf32> to vector<16x16xf32>
    %24 = arith.mulf %19, %23 : vector<16x16xf32>
    %cst_13 = arith.constant dense<0.000000e+00> : vector<16x16xf32>
    %25 = tpu.matmul %24, %11, %cst_13 {dimension_numbers = #tpu.dot_dimension_numbers<[1], [0], [0], [1], [0, 0, 1, 1], [], []>} : vector<16x16xf32>, vector<16x16xf32>, vector<16x16xf32> -> vector<16x16xf32>
    %c0_14 = arith.constant 0 : index
    %c0_15 = arith.constant 0 : index
    %c0_16 = arith.constant 0 : index
    %26 = vector.load %arg5[%c0_14, %c0_15, %c0_16] : memref<1x16x128xf32, #tpu.memory_space<vmem>>, vector<1x16x16xf32>
    %27 = vector.shape_cast %26 : vector<1x16x16xf32> to vector<16x16xf32>
    %28 = vector.shape_cast %25 : vector<16x16xf32> to vector<1x16x16xf32>
    tpu.vector_store %arg5[%c0_14, %c0_15, %c0_16], %28 {strides = array<i32>} : memref<1x16x128xf32, #tpu.memory_space<vmem>>, vector<1x16x16xf32>,
    %c0_17 = arith.constant 0 : index
    %c0_18 = arith.constant 0 : index
    %c16 = arith.constant 16 : index
    %29 = vector.load %arg2[%c0_17, %c0_18, %c16] : memref<1x16x128xf32, #tpu.memory_space<vmem>>, vector<1x16x16xf32>
    %30 = vector.shape_cast %29 : vector<1x16x16xf32> to vector<16x16xf32>
    %cst_19 = arith.constant 0.0883883461 : f32
    %31 = vector.broadcast %cst_19 : f32 to vector<16x16xf32>
    %32 = arith.mulf %30, %31 : vector<16x16xf32>
    %c0_20 = arith.constant 0 : index
    %c0_21 = arith.constant 0 : index
    %c144 = arith.constant 144 : index
    %33 = vector.load %arg3[%c0_20, %c0_21, %c144] : memref<1x16x384xf32, #tpu.memory_space<vmem>>, vector<1x16x16xf32>
    %34 = vector.shape_cast %33 : vector<1x16x16xf32> to vector<16x16xf32>
    %c0_22 = arith.constant 0 : index
    %c0_23 = arith.constant 0 : index
    %c272 = arith.constant 272 : index
    %35 = vector.load %arg3[%c0_22, %c0_23, %c272] : memref<1x16x384xf32, #tpu.memory_space<vmem>>, vector<1x16x16xf32>
    %36 = vector.shape_cast %35 : vector<1x16x16xf32> to vector<16x16xf32>
    %cst_24 = arith.constant dense<0.000000e+00> : vector<16x16xf32>
    %37 = tpu.matmul %32, %34, %cst_24 {dimension_numbers = #tpu.dot_dimension_numbers<[1], [1], [0], [0], [0, 0, 1, 0], [], []>} : vector<16x16xf32>, vector<16x16xf32>, vector<16x16xf32> -> vector<16x16xf32>
    %cst_25 = arith.constant -1.000000e+10 : f32
    %38 = vector.broadcast %cst_25 : f32 to vector<16x16xf32>
    %39 = arith.select %3, %38, %37 : vector<16x16xi1>, vector<16x16xf32>
    %cst_26 = arith.constant dense<0xFF800000> : vector<16xf32>
    %40 = vector.multi_reduction <maximumf>, %39, %cst_26 [1] : vector<16x16xf32> to vector<16xf32>
    %41 = vector.shape_cast %40 : vector<16xf32> to vector<16x1xf32>
    %42 = vector.broadcast %41 : vector<16x1xf32> to vector<16x16xf32>
    %43 = arith.subf %39, %42 : vector<16x16xf32>
    %44 = math.exp %43 : vector<16x16xf32>
    %cst_27 = arith.constant dense<0.000000e+00> : vector<16xf32>
    %45 = vector.multi_reduction <add>, %44, %cst_27 [1] : vector<16x16xf32> to vector<16xf32>
    %46 = vector.shape_cast %45 : vector<16xf32> to vector<16x1xf32>
    %47 = tpu.reciprocal %46 {approx = true} : vector<16x1xf32> -> vector<16x1xf32>
    %48 = vector.broadcast %47 : vector<16x1xf32> to vector<16x16xf32>
    %49 = arith.mulf %44, %48 : vector<16x16xf32>
    %cst_28 = arith.constant dense<0.000000e+00> : vector<16x16xf32>
    %50 = tpu.matmul %49, %36, %cst_28 {dimension_numbers = #tpu.dot_dimension_numbers<[1], [0], [0], [1], [0, 0, 1, 1], [], []>} : vector<16x16xf32>, vector<16x16xf32>, vector<16x16xf32> -> vector<16x16xf32>
    %c0_29 = arith.constant 0 : index
    %c0_30 = arith.constant 0 : index
    %c16_31 = arith.constant 16 : index
    %51 = vector.load %arg5[%c0_29, %c0_30, %c16_31] : memref<1x16x128xf32, #tpu.memory_space<vmem>>, vector<1x16x16xf32>
    %52 = vector.shape_cast %51 : vector<1x16x16xf32> to vector<16x16xf32>
    %53 = vector.shape_cast %50 : vector<16x16xf32> to vector<1x16x16xf32>
    tpu.vector_store %arg5[%c0_29, %c0_30, %c16_31], %53 {strides = array<i32>} : memref<1x16x128xf32, #tpu.memory_space<vmem>>, vector<1x16x16xf32>,
    %c0_32 = arith.constant 0 : index
    %c0_33 = arith.constant 0 : index
    %c32 = arith.constant 32 : index
    %54 = vector.load %arg2[%c0_32, %c0_33, %c32] : memref<1x16x128xf32, #tpu.memory_space<vmem>>, vector<1x16x16xf32>
    %55 = vector.shape_cast %54 : vector<1x16x16xf32> to vector<16x16xf32>
    %cst_34 = arith.constant 0.0883883461 : f32
    %56 = vector.broadcast %cst_34 : f32 to vector<16x16xf32>
    %57 = arith.mulf %55, %56 : vector<16x16xf32>
    %c0_35 = arith.constant 0 : index
    %c0_36 = arith.constant 0 : index
    %c160 = arith.constant 160 : index
    %58 = vector.load %arg3[%c0_35, %c0_36, %c160] : memref<1x16x384xf32, #tpu.memory_space<vmem>>, vector<1x16x16xf32>
    %59 = vector.shape_cast %58 : vector<1x16x16xf32> to vector<16x16xf32>
    %c0_37 = arith.constant 0 : index
    %c0_38 = arith.constant 0 : index
    %c288 = arith.constant 288 : index
    %60 = vector.load %arg3[%c0_37, %c0_38, %c288] : memref<1x16x384xf32, #tpu.memory_space<vmem>>, vector<1x16x16xf32>
    %61 = vector.shape_cast %60 : vector<1x16x16xf32> to vector<16x16xf32>
    %cst_39 = arith.constant dense<0.000000e+00> : vector<16x16xf32>
    %62 = tpu.matmul %57, %59, %cst_39 {dimension_numbers = #tpu.dot_dimension_numbers<[1], [1], [0], [0], [0, 0, 1, 0], [], []>} : vector<16x16xf32>, vector<16x16xf32>, vector<16x16xf32> -> vector<16x16xf32>
    %cst_40 = arith.constant -1.000000e+10 : f32
    %63 = vector.broadcast %cst_40 : f32 to vector<16x16xf32>
    %64 = arith.select %3, %63, %62 : vector<16x16xi1>, vector<16x16xf32>
    %cst_41 = arith.constant dense<0xFF800000> : vector<16xf32>
    %65 = vector.multi_reduction <maximumf>, %64, %cst_41 [1] : vector<16x16xf32> to vector<16xf32>
    %66 = vector.shape_cast %65 : vector<16xf32> to vector<16x1xf32>
    %67 = vector.broadcast %66 : vector<16x1xf32> to vector<16x16xf32>
    %68 = arith.subf %64, %67 : vector<16x16xf32>
    %69 = math.exp %68 : vector<16x16xf32>
    %cst_42 = arith.constant dense<0.000000e+00> : vector<16xf32>
    %70 = vector.multi_reduction <add>, %69, %cst_42 [1] : vector<16x16xf32> to vector<16xf32>
    %71 = vector.shape_cast %70 : vector<16xf32> to vector<16x1xf32>
    %72 = tpu.reciprocal %71 {approx = true} : vector<16x1xf32> -> vector<16x1xf32>
    %73 = vector.broadcast %72 : vector<16x1xf32> to vector<16x16xf32>
    %74 = arith.mulf %69, %73 : vector<16x16xf32>
    %cst_43 = arith.constant dense<0.000000e+00> : vector<16x16xf32>
    %75 = tpu.matmul %74, %61, %cst_43 {dimension_numbers = #tpu.dot_dimension_numbers<[1], [0], [0], [1], [0, 0, 1, 1], [], []>} : vector<16x16xf32>, vector<16x16xf32>, vector<16x16xf32> -> vector<16x16xf32>
    %c0_44 = arith.constant 0 : index
    %c0_45 = arith.constant 0 : index
    %c32_46 = arith.constant 32 : index
    %76 = vector.load %arg5[%c0_44, %c0_45, %c32_46] : memref<1x16x128xf32, #tpu.memory_space<vmem>>, vector<1x16x16xf32>
    %77 = vector.shape_cast %76 : vector<1x16x16xf32> to vector<16x16xf32>
    %78 = vector.shape_cast %75 : vector<16x16xf32> to vector<1x16x16xf32>
    tpu.vector_store %arg5[%c0_44, %c0_45, %c32_46], %78 {strides = array<i32>} : memref<1x16x128xf32, #tpu.memory_space<vmem>>, vector<1x16x16xf32>,
    %c0_47 = arith.constant 0 : index
    %c0_48 = arith.constant 0 : index
    %c48 = arith.constant 48 : index
    %79 = vector.load %arg2[%c0_47, %c0_48, %c48] : memref<1x16x128xf32, #tpu.memory_space<vmem>>, vector<1x16x16xf32>
    %80 = vector.shape_cast %79 : vector<1x16x16xf32> to vector<16x16xf32>
    %cst_49 = arith.constant 0.0883883461 : f32
    %81 = vector.broadcast %cst_49 : f32 to vector<16x16xf32>
    %82 = arith.mulf %80, %81 : vector<16x16xf32>
    %c0_50 = arith.constant 0 : index
    %c0_51 = arith.constant 0 : index
    %c176 = arith.constant 176 : index
    %83 = vector.load %arg3[%c0_50, %c0_51, %c176] : memref<1x16x384xf32, #tpu.memory_space<vmem>>, vector<1x16x16xf32>
    %84 = vector.shape_cast %83 : vector<1x16x16xf32> to vector<16x16xf32>
    %c0_52 = arith.constant 0 : index
    %c0_53 = arith.constant 0 : index
    %c304 = arith.constant 304 : index
    %85 = vector.load %arg3[%c0_52, %c0_53, %c304] : memref<1x16x384xf32, #tpu.memory_space<vmem>>, vector<1x16x16xf32>
    %86 = vector.shape_cast %85 : vector<1x16x16xf32> to vector<16x16xf32>
    %cst_54 = arith.constant dense<0.000000e+00> : vector<16x16xf32>
    %87 = tpu.matmul %82, %84, %cst_54 {dimension_numbers = #tpu.dot_dimension_numbers<[1], [1], [0], [0], [0, 0, 1, 0], [], []>} : vector<16x16xf32>, vector<16x16xf32>, vector<16x16xf32> -> vector<16x16xf32>
    %cst_55 = arith.constant -1.000000e+10 : f32
    %88 = vector.broadcast %cst_55 : f32 to vector<16x16xf32>
    %89 = arith.select %3, %88, %87 : vector<16x16xi1>, vector<16x16xf32>
    %cst_56 = arith.constant dense<0xFF800000> : vector<16xf32>
    %90 = vector.multi_reduction <maximumf>, %89, %cst_56 [1] : vector<16x16xf32> to vector<16xf32>
    %91 = vector.shape_cast %90 : vector<16xf32> to vector<16x1xf32>
    %92 = vector.broadcast %91 : vector<16x1xf32> to vector<16x16xf32>
    %93 = arith.subf %89, %92 : vector<16x16xf32>
    %94 = math.exp %93 : vector<16x16xf32>
    %cst_57 = arith.constant dense<0.000000e+00> : vector<16xf32>
    %95 = vector.multi_reduction <add>, %94, %cst_57 [1] : vector<16x16xf32> to vector<16xf32>
    %96 = vector.shape_cast %95 : vector<16xf32> to vector<16x1xf32>
    %97 = tpu.reciprocal %96 {approx = true} : vector<16x1xf32> -> vector<16x1xf32>
    %98 = vector.broadcast %97 : vector<16x1xf32> to vector<16x16xf32>
    %99 = arith.mulf %94, %98 : vector<16x16xf32>
    %cst_58 = arith.constant dense<0.000000e+00> : vector<16x16xf32>
    %100 = tpu.matmul %99, %86, %cst_58 {dimension_numbers = #tpu.dot_dimension_numbers<[1], [0], [0], [1], [0, 0, 1, 1], [], []>} : vector<16x16xf32>, vector<16x16xf32>, vector<16x16xf32> -> vector<16x16xf32>
    %c0_59 = arith.constant 0 : index
    %c0_60 = arith.constant 0 : index
    %c48_61 = arith.constant 48 : index
    %101 = vector.load %arg5[%c0_59, %c0_60, %c48_61] : memref<1x16x128xf32, #tpu.memory_space<vmem>>, vector<1x16x16xf32>
    %102 = vector.shape_cast %101 : vector<1x16x16xf32> to vector<16x16xf32>
    %103 = vector.shape_cast %100 : vector<16x16xf32> to vector<1x16x16xf32>
    tpu.vector_store %arg5[%c0_59, %c0_60, %c48_61], %103 {strides = array<i32>} : memref<1x16x128xf32, #tpu.memory_space<vmem>>, vector<1x16x16xf32>,
    %c0_62 = arith.constant 0 : index
    %c0_63 = arith.constant 0 : index
    %c64 = arith.constant 64 : index
    %104 = vector.load %arg2[%c0_62, %c0_63, %c64] : memref<1x16x128xf32, #tpu.memory_space<vmem>>, vector<1x16x16xf32>
    %105 = vector.shape_cast %104 : vector<1x16x16xf32> to vector<16x16xf32>
    %cst_64 = arith.constant 0.0883883461 : f32
    %106 = vector.broadcast %cst_64 : f32 to vector<16x16xf32>
    %107 = arith.mulf %105, %106 : vector<16x16xf32>
    %c0_65 = arith.constant 0 : index
    %c0_66 = arith.constant 0 : index
    %c192 = arith.constant 192 : index
    %108 = vector.load %arg3[%c0_65, %c0_66, %c192] : memref<1x16x384xf32, #tpu.memory_space<vmem>>, vector<1x16x16xf32>
    %109 = vector.shape_cast %108 : vector<1x16x16xf32> to vector<16x16xf32>
    %c0_67 = arith.constant 0 : index
    %c0_68 = arith.constant 0 : index
    %c320 = arith.constant 320 : index
    %110 = vector.load %arg3[%c0_67, %c0_68, %c320] : memref<1x16x384xf32, #tpu.memory_space<vmem>>, vector<1x16x16xf32>
    %111 = vector.shape_cast %110 : vector<1x16x16xf32> to vector<16x16xf32>
    %cst_69 = arith.constant dense<0.000000e+00> : vector<16x16xf32>
    %112 = tpu.matmul %107, %109, %cst_69 {dimension_numbers = #tpu.dot_dimension_numbers<[1], [1], [0], [0], [0, 0, 1, 0], [], []>} : vector<16x16xf32>, vector<16x16xf32>, vector<16x16xf32> -> vector<16x16xf32>
    %cst_70 = arith.constant -1.000000e+10 : f32
    %113 = vector.broadcast %cst_70 : f32 to vector<16x16xf32>
    %114 = arith.select %3, %113, %112 : vector<16x16xi1>, vector<16x16xf32>
    %cst_71 = arith.constant dense<0xFF800000> : vector<16xf32>
    %115 = vector.multi_reduction <maximumf>, %114, %cst_71 [1] : vector<16x16xf32> to vector<16xf32>
    %116 = vector.shape_cast %115 : vector<16xf32> to vector<16x1xf32>
    %117 = vector.broadcast %116 : vector<16x1xf32> to vector<16x16xf32>
    %118 = arith.subf %114, %117 : vector<16x16xf32>
    %119 = math.exp %118 : vector<16x16xf32>
    %cst_72 = arith.constant dense<0.000000e+00> : vector<16xf32>
    %120 = vector.multi_reduction <add>, %119, %cst_72 [1] : vector<16x16xf32> to vector<16xf32>
    %121 = vector.shape_cast %120 : vector<16xf32> to vector<16x1xf32>
    %122 = tpu.reciprocal %121 {approx = true} : vector<16x1xf32> -> vector<16x1xf32>
    %123 = vector.broadcast %122 : vector<16x1xf32> to vector<16x16xf32>
    %124 = arith.mulf %119, %123 : vector<16x16xf32>
    %cst_73 = arith.constant dense<0.000000e+00> : vector<16x16xf32>
    %125 = tpu.matmul %124, %111, %cst_73 {dimension_numbers = #tpu.dot_dimension_numbers<[1], [0], [0], [1], [0, 0, 1, 1], [], []>} : vector<16x16xf32>, vector<16x16xf32>, vector<16x16xf32> -> vector<16x16xf32>
    %c0_74 = arith.constant 0 : index
    %c0_75 = arith.constant 0 : index
    %c64_76 = arith.constant 64 : index
    %126 = vector.load %arg5[%c0_74, %c0_75, %c64_76] : memref<1x16x128xf32, #tpu.memory_space<vmem>>, vector<1x16x16xf32>
    %127 = vector.shape_cast %126 : vector<1x16x16xf32> to vector<16x16xf32>
    %128 = vector.shape_cast %125 : vector<16x16xf32> to vector<1x16x16xf32>
    tpu.vector_store %arg5[%c0_74, %c0_75, %c64_76], %128 {strides = array<i32>} : memref<1x16x128xf32, #tpu.memory_space<vmem>>, vector<1x16x16xf32>,
    %c0_77 = arith.constant 0 : index
    %c0_78 = arith.constant 0 : index
    %c80 = arith.constant 80 : index
    %129 = vector.load %arg2[%c0_77, %c0_78, %c80] : memref<1x16x128xf32, #tpu.memory_space<vmem>>, vector<1x16x16xf32>
    %130 = vector.shape_cast %129 : vector<1x16x16xf32> to vector<16x16xf32>
    %cst_79 = arith.constant 0.0883883461 : f32
    %131 = vector.broadcast %cst_79 : f32 to vector<16x16xf32>
    %132 = arith.mulf %130, %131 : vector<16x16xf32>
    %c0_80 = arith.constant 0 : index
    %c0_81 = arith.constant 0 : index
    %c208 = arith.constant 208 : index
    %133 = vector.load %arg3[%c0_80, %c0_81, %c208] : memref<1x16x384xf32, #tpu.memory_space<vmem>>, vector<1x16x16xf32>
    %134 = vector.shape_cast %133 : vector<1x16x16xf32> to vector<16x16xf32>
    %c0_82 = arith.constant 0 : index
    %c0_83 = arith.constant 0 : index
    %c336 = arith.constant 336 : index
    %135 = vector.load %arg3[%c0_82, %c0_83, %c336] : memref<1x16x384xf32, #tpu.memory_space<vmem>>, vector<1x16x16xf32>
    %136 = vector.shape_cast %135 : vector<1x16x16xf32> to vector<16x16xf32>
    %cst_84 = arith.constant dense<0.000000e+00> : vector<16x16xf32>
    %137 = tpu.matmul %132, %134, %cst_84 {dimension_numbers = #tpu.dot_dimension_numbers<[1], [1], [0], [0], [0, 0, 1, 0], [], []>} : vector<16x16xf32>, vector<16x16xf32>, vector<16x16xf32> -> vector<16x16xf32>
    %cst_85 = arith.constant -1.000000e+10 : f32
    %138 = vector.broadcast %cst_85 : f32 to vector<16x16xf32>
    %139 = arith.select %3, %138, %137 : vector<16x16xi1>, vector<16x16xf32>
    %cst_86 = arith.constant dense<0xFF800000> : vector<16xf32>
    %140 = vector.multi_reduction <maximumf>, %139, %cst_86 [1] : vector<16x16xf32> to vector<16xf32>
    %141 = vector.shape_cast %140 : vector<16xf32> to vector<16x1xf32>
    %142 = vector.broadcast %141 : vector<16x1xf32> to vector<16x16xf32>
    %143 = arith.subf %139, %142 : vector<16x16xf32>
    %144 = math.exp %143 : vector<16x16xf32>
    %cst_87 = arith.constant dense<0.000000e+00> : vector<16xf32>
    %145 = vector.multi_reduction <add>, %144, %cst_87 [1] : vector<16x16xf32> to vector<16xf32>
    %146 = vector.shape_cast %145 : vector<16xf32> to vector<16x1xf32>
    %147 = tpu.reciprocal %146 {approx = true} : vector<16x1xf32> -> vector<16x1xf32>
    %148 = vector.broadcast %147 : vector<16x1xf32> to vector<16x16xf32>
    %149 = arith.mulf %144, %148 : vector<16x16xf32>
    %cst_88 = arith.constant dense<0.000000e+00> : vector<16x16xf32>
    %150 = tpu.matmul %149, %136, %cst_88 {dimension_numbers = #tpu.dot_dimension_numbers<[1], [0], [0], [1], [0, 0, 1, 1], [], []>} : vector<16x16xf32>, vector<16x16xf32>, vector<16x16xf32> -> vector<16x16xf32>
    %c0_89 = arith.constant 0 : index
    %c0_90 = arith.constant 0 : index
    %c80_91 = arith.constant 80 : index
    %151 = vector.load %arg5[%c0_89, %c0_90, %c80_91] : memref<1x16x128xf32, #tpu.memory_space<vmem>>, vector<1x16x16xf32>
    %152 = vector.shape_cast %151 : vector<1x16x16xf32> to vector<16x16xf32>
    %153 = vector.shape_cast %150 : vector<16x16xf32> to vector<1x16x16xf32>
    tpu.vector_store %arg5[%c0_89, %c0_90, %c80_91], %153 {strides = array<i32>} : memref<1x16x128xf32, #tpu.memory_space<vmem>>, vector<1x16x16xf32>,
    %c0_92 = arith.constant 0 : index
    %c0_93 = arith.constant 0 : index
    %c96 = arith.constant 96 : index
    %154 = vector.load %arg2[%c0_92, %c0_93, %c96] : memref<1x16x128xf32, #tpu.memory_space<vmem>>, vector<1x16x16xf32>
    %155 = vector.shape_cast %154 : vector<1x16x16xf32> to vector<16x16xf32>
    %cst_94 = arith.constant 0.0883883461 : f32
    %156 = vector.broadcast %cst_94 : f32 to vector<16x16xf32>
    %157 = arith.mulf %155, %156 : vector<16x16xf32>
    %c0_95 = arith.constant 0 : index
    %c0_96 = arith.constant 0 : index
    %c224 = arith.constant 224 : index
    %158 = vector.load %arg3[%c0_95, %c0_96, %c224] : memref<1x16x384xf32, #tpu.memory_space<vmem>>, vector<1x16x16xf32>
    %159 = vector.shape_cast %158 : vector<1x16x16xf32> to vector<16x16xf32>
    %c0_97 = arith.constant 0 : index
    %c0_98 = arith.constant 0 : index
    %c352 = arith.constant 352 : index
    %160 = vector.load %arg3[%c0_97, %c0_98, %c352] : memref<1x16x384xf32, #tpu.memory_space<vmem>>, vector<1x16x16xf32>
    %161 = vector.shape_cast %160 : vector<1x16x16xf32> to vector<16x16xf32>
    %cst_99 = arith.constant dense<0.000000e+00> : vector<16x16xf32>
    %162 = tpu.matmul %157, %159, %cst_99 {dimension_numbers = #tpu.dot_dimension_numbers<[1], [1], [0], [0], [0, 0, 1, 0], [], []>} : vector<16x16xf32>, vector<16x16xf32>, vector<16x16xf32> -> vector<16x16xf32>
    %cst_100 = arith.constant -1.000000e+10 : f32
    %163 = vector.broadcast %cst_100 : f32 to vector<16x16xf32>
    %164 = arith.select %3, %163, %162 : vector<16x16xi1>, vector<16x16xf32>
    %cst_101 = arith.constant dense<0xFF800000> : vector<16xf32>
    %165 = vector.multi_reduction <maximumf>, %164, %cst_101 [1] : vector<16x16xf32> to vector<16xf32>
    %166 = vector.shape_cast %165 : vector<16xf32> to vector<16x1xf32>
    %167 = vector.broadcast %166 : vector<16x1xf32> to vector<16x16xf32>
    %168 = arith.subf %164, %167 : vector<16x16xf32>
    %169 = math.exp %168 : vector<16x16xf32>
    %cst_102 = arith.constant dense<0.000000e+00> : vector<16xf32>
    %170 = vector.multi_reduction <add>, %169, %cst_102 [1] : vector<16x16xf32> to vector<16xf32>
    %171 = vector.shape_cast %170 : vector<16xf32> to vector<16x1xf32>
    %172 = tpu.reciprocal %171 {approx = true} : vector<16x1xf32> -> vector<16x1xf32>
    %173 = vector.broadcast %172 : vector<16x1xf32> to vector<16x16xf32>
    %174 = arith.mulf %169, %173 : vector<16x16xf32>
    %cst_103 = arith.constant dense<0.000000e+00> : vector<16x16xf32>
    %175 = tpu.matmul %174, %161, %cst_103 {dimension_numbers = #tpu.dot_dimension_numbers<[1], [0], [0], [1], [0, 0, 1, 1], [], []>} : vector<16x16xf32>, vector<16x16xf32>, vector<16x16xf32> -> vector<16x16xf32>
    %c0_104 = arith.constant 0 : index
    %c0_105 = arith.constant 0 : index
    %c96_106 = arith.constant 96 : index
    %176 = vector.load %arg5[%c0_104, %c0_105, %c96_106] : memref<1x16x128xf32, #tpu.memory_space<vmem>>, vector<1x16x16xf32>
    %177 = vector.shape_cast %176 : vector<1x16x16xf32> to vector<16x16xf32>
    %178 = vector.shape_cast %175 : vector<16x16xf32> to vector<1x16x16xf32>
    tpu.vector_store %arg5[%c0_104, %c0_105, %c96_106], %178 {strides = array<i32>} : memref<1x16x128xf32, #tpu.memory_space<vmem>>, vector<1x16x16xf32>,
    %c0_107 = arith.constant 0 : index
    %c0_108 = arith.constant 0 : index
    %c112 = arith.constant 112 : index
    %179 = vector.load %arg2[%c0_107, %c0_108, %c112] : memref<1x16x128xf32, #tpu.memory_space<vmem>>, vector<1x16x16xf32>
    %180 = vector.shape_cast %179 : vector<1x16x16xf32> to vector<16x16xf32>
    %cst_109 = arith.constant 0.0883883461 : f32
    %181 = vector.broadcast %cst_109 : f32 to vector<16x16xf32>
    %182 = arith.mulf %180, %181 : vector<16x16xf32>
    %c0_110 = arith.constant 0 : index
    %c0_111 = arith.constant 0 : index
    %c240 = arith.constant 240 : index
    %183 = vector.load %arg3[%c0_110, %c0_111, %c240] : memref<1x16x384xf32, #tpu.memory_space<vmem>>, vector<1x16x16xf32>
    %184 = vector.shape_cast %183 : vector<1x16x16xf32> to vector<16x16xf32>
    %c0_112 = arith.constant 0 : index
    %c0_113 = arith.constant 0 : index
    %c368 = arith.constant 368 : index
    %185 = vector.load %arg3[%c0_112, %c0_113, %c368] : memref<1x16x384xf32, #tpu.memory_space<vmem>>, vector<1x16x16xf32>
    %186 = vector.shape_cast %185 : vector<1x16x16xf32> to vector<16x16xf32>
    %cst_114 = arith.constant dense<0.000000e+00> : vector<16x16xf32>
    %187 = tpu.matmul %182, %184, %cst_114 {dimension_numbers = #tpu.dot_dimension_numbers<[1], [1], [0], [0], [0, 0, 1, 0], [], []>} : vector<16x16xf32>, vector<16x16xf32>, vector<16x16xf32> -> vector<16x16xf32>
    %cst_115 = arith.constant -1.000000e+10 : f32
    %188 = vector.broadcast %cst_115 : f32 to vector<16x16xf32>
    %189 = arith.select %3, %188, %187 : vector<16x16xi1>, vector<16x16xf32>
    %cst_116 = arith.constant dense<0xFF800000> : vector<16xf32>
    %190 = vector.multi_reduction <maximumf>, %189, %cst_116 [1] : vector<16x16xf32> to vector<16xf32>
    %191 = vector.shape_cast %190 : vector<16xf32> to vector<16x1xf32>
    %192 = vector.broadcast %191 : vector<16x1xf32> to vector<16x16xf32>
    %193 = arith.subf %189, %192 : vector<16x16xf32>
    %194 = math.exp %193 : vector<16x16xf32>
    %cst_117 = arith.constant dense<0.000000e+00> : vector<16xf32>
    %195 = vector.multi_reduction <add>, %194, %cst_117 [1] : vector<16x16xf32> to vector<16xf32>
    %196 = vector.shape_cast %195 : vector<16xf32> to vector<16x1xf32>
    %197 = tpu.reciprocal %196 {approx = true} : vector<16x1xf32> -> vector<16x1xf32>
    %198 = vector.broadcast %197 : vector<16x1xf32> to vector<16x16xf32>
    %199 = arith.mulf %194, %198 : vector<16x16xf32>
    %cst_118 = arith.constant dense<0.000000e+00> : vector<16x16xf32>
    %200 = tpu.matmul %199, %186, %cst_118 {dimension_numbers = #tpu.dot_dimension_numbers<[1], [0], [0], [1], [0, 0, 1, 1], [], []>} : vector<16x16xf32>, vector<16x16xf32>, vector<16x16xf32> -> vector<16x16xf32>
    %c0_119 = arith.constant 0 : index
    %c0_120 = arith.constant 0 : index
    %c112_121 = arith.constant 112 : index
    %201 = vector.load %arg5[%c0_119, %c0_120, %c112_121] : memref<1x16x128xf32, #tpu.memory_space<vmem>>, vector<1x16x16xf32>
    %202 = vector.shape_cast %201 : vector<1x16x16xf32> to vector<16x16xf32>
    %203 = vector.shape_cast %200 : vector<16x16xf32> to vector<1x16x16xf32>
    tpu.vector_store %arg5[%c0_119, %c0_120, %c112_121], %203 {strides = array<i32>} : memref<1x16x128xf32, #tpu.memory_space<vmem>>, vector<1x16x16xf32>,
    return
  }
  func.func @transform_0(%arg0: i32, %arg1: i32) -> (i32, i32, i32) {
    %c0_i32 = arith.constant 0 : i32
    %c0_i32_0 = arith.constant 0 : i32
    return %arg0, %arg1, %c0_i32 : i32, i32, i32
  }
  func.func @transform_1(%arg0: i32, %arg1: i32) -> (i32, i32, i32) {
    %c0_i32 = arith.constant 0 : i32
    %c0_i32_0 = arith.constant 0 : i32
    %c0_i32_1 = arith.constant 0 : i32
    return %arg0, %c0_i32, %c0_i32_0 : i32, i32, i32
  }
  func.func @transform_2(%arg0: i32, %arg1: i32) -> (i32, i32, i32) {
    %c0_i32 = arith.constant 0 : i32
    %c0_i32_0 = arith.constant 0 : i32
    return %arg0, %arg1, %c0_i32 : i32, i32, i32
  }
  func.func @transform_3(%arg0: i32, %arg1: i32) -> (i32, i32, i32) {
    %c0_i32 = arith.constant 0 : i32
    %c0_i32_0 = arith.constant 0 : i32
    return %arg0, %arg1, %c0_i32 : i32, i32, i32
  }
}

module attributes {stable_mosaic.version = 11 : i64} {
  func.func @_linear_norm_kernel(%arg0: i32, %arg1: i32, %arg2: memref<32x128xf32, #tpu.memory_space<vmem>>, %arg3: memref<128x128xf32, #tpu.memory_space<vmem>>, %arg4: memref<1x128xf32, #tpu.memory_space<vmem>>, %arg5: memref<32x128xf32, #tpu.memory_space<vmem>>, %arg6: memref<32x1xf32, #tpu.memory_space<vmem>>, %arg7: memref<2xf32, #tpu.memory_space<smem>>, %arg8: memref<32x128xf32, #tpu.memory_space<vmem>>, %arg9: memref<32x128xf32, #tpu.memory_space<vmem>>) attributes {dimension_semantics = [#tpu.dimension_semantics<parallel>, #tpu.dimension_semantics<arbitrary>], iteration_bounds = array<i64: 1, 1>, scalar_prefetch = 0 : i64, scratch_operands = 1 : i64, tpu.core_type = #tpu.core_type<tc>, window_params = [{transform_indices = @transform_0, window_bounds = array<i64: 32, 128>}, {transform_indices = @transform_1, window_bounds = array<i64: 128, 128>}, {pipeline_mode = #tpu.pipeline_mode<synchronous>, transform_indices = @transform_2, window_bounds = array<i64: 1, 128>}, {transform_indices = @transform_3, window_bounds = array<i64: 32, 128>}, {transform_indices = @transform_4, window_bounds = array<i64: 32, 1>}, {transform_indices = @transform_5, window_bounds = array<i64: 2>}, {transform_indices = @transform_6, window_bounds = array<i64: 32, 128>}]} {
    %c0_i32 = arith.constant 0 : i32
    %0 = arith.cmpi eq, %arg1, %c0_i32 : i32
    %1 = arith.extui %0 : i1 to i32
    %c0_i32_0 = arith.constant 0 : i32
    %2 = arith.cmpi ne, %1, %c0_i32_0 : i32
    scf.if %2 {
      %cst_10 = arith.constant 0.000000e+00 : f32
      %12 = vector.broadcast %cst_10 : f32 to vector<32x128xf32>
      %c0_11 = arith.constant 0 : index
      %c0_12 = arith.constant 0 : index
      %13 = vector.load %arg9[%c0_11, %c0_12] : memref<32x128xf32, #tpu.memory_space<vmem>>, vector<32x128xf32>
      tpu.vector_store %arg9[%c0_11, %c0_12], %12 {strides = array<i32>} : memref<32x128xf32, #tpu.memory_space<vmem>>, vector<32x128xf32>,
    } else {
    }
    %c0 = arith.constant 0 : index
    %c0_1 = arith.constant 0 : index
    %3 = vector.load %arg9[%c0, %c0_1] : memref<32x128xf32, #tpu.memory_space<vmem>>, vector<32x128xf32>
    %c0_2 = arith.constant 0 : index
    %c0_3 = arith.constant 0 : index
    %4 = vector.load %arg2[%c0_2, %c0_3] : memref<32x128xf32, #tpu.memory_space<vmem>>, vector<32x128xf32>
    %c0_4 = arith.constant 0 : index
    %c0_5 = arith.constant 0 : index
    %5 = vector.load %arg3[%c0_4, %c0_5] : memref<128x128xf32, #tpu.memory_space<vmem>>, vector<128x128xf32>
    %cst = arith.constant dense<0.000000e+00> : vector<32x128xf32>
    %6 = tpu.matmul %4, %5, %cst {dimension_numbers = #tpu.dot_dimension_numbers<[1], [0], [0], [1], [0, 0, 1, 1], [], []>} : vector<32x128xf32>, vector<128x128xf32>, vector<32x128xf32> -> vector<32x128xf32>
    %7 = arith.addf %3, %6 : vector<32x128xf32>
    %c0_6 = arith.constant 0 : index
    %c0_7 = arith.constant 0 : index
    %8 = vector.load %arg9[%c0_6, %c0_7] : memref<32x128xf32, #tpu.memory_space<vmem>>, vector<32x128xf32>
    tpu.vector_store %arg9[%c0_6, %c0_7], %7 {strides = array<i32>} : memref<32x128xf32, #tpu.memory_space<vmem>>, vector<32x128xf32>,
    %c0_i32_8 = arith.constant 0 : i32
    %9 = arith.cmpi eq, %arg1, %c0_i32_8 : i32
    %10 = arith.extui %9 : i1 to i32
    %c0_i32_9 = arith.constant 0 : i32
    %11 = arith.cmpi ne, %10, %c0_i32_9 : i32
    scf.if %11 {
      %c0_10 = arith.constant 0 : index
      %c0_11 = arith.constant 0 : index
      %12 = vector.load %arg9[%c0_10, %c0_11] : memref<32x128xf32, #tpu.memory_space<vmem>>, vector<32x128xf32>
      %c0_12 = arith.constant 0 : index
      %c0_13 = arith.constant 0 : index
      %13 = vector.load %arg4[%c0_12, %c0_13] : memref<1x128xf32, #tpu.memory_space<vmem>>, vector<1x128xf32>
      %14 = vector.broadcast %13 : vector<1x128xf32> to vector<32x128xf32>
      %15 = arith.addf %12, %14 : vector<32x128xf32>
      %c0_14 = arith.constant 0 : index
      %c0_15 = arith.constant 0 : index
      %16 = vector.load %arg5[%c0_14, %c0_15] : memref<32x128xf32, #tpu.memory_space<vmem>>, vector<32x128xf32>
      %17 = arith.addf %15, %16 : vector<32x128xf32>
      %cst_16 = arith.constant dense<0.000000e+00> : vector<32xf32>
      %18 = vector.multi_reduction <add>, %17, %cst_16 [1] : vector<32x128xf32> to vector<32xf32>
      %19 = vector.shape_cast %18 : vector<32xf32> to vector<32x1xf32>
      %cst_17 = arith.constant 1.280000e+02 : f32
      %20 = vector.broadcast %cst_17 : f32 to vector<32x1xf32>
      %21 = arith.divf %19, %20 : vector<32x1xf32>
      %22 = vector.broadcast %21 : vector<32x1xf32> to vector<32x128xf32>
      %23 = arith.subf %17, %22 : vector<32x128xf32>
      %24 = arith.mulf %23, %23 : vector<32x128xf32>
      %cst_18 = arith.constant dense<0.000000e+00> : vector<32xf32>
      %25 = vector.multi_reduction <add>, %24, %cst_18 [1] : vector<32x128xf32> to vector<32xf32>
      %26 = vector.shape_cast %25 : vector<32xf32> to vector<32x1xf32>
      %cst_19 = arith.constant 0.00787401571 : f32
      %27 = vector.broadcast %cst_19 : f32 to vector<32x1xf32>
      %28 = arith.mulf %26, %27 : vector<32x1xf32>
      %cst_20 = arith.constant 9.99999993E-9 : f32
      %29 = vector.broadcast %cst_20 : f32 to vector<32x1xf32>
      %30 = arith.addf %28, %29 : vector<32x1xf32>
      %31 = math.rsqrt %30 : vector<32x1xf32>
      %32 = vector.broadcast %31 : vector<32x1xf32> to vector<32x128xf32>
      %33 = arith.mulf %23, %32 : vector<32x128xf32>
      %c0_21 = arith.constant 0 : index
      %34 = memref.load %arg7[%c0_21] : memref<2xf32, #tpu.memory_space<smem>>
      %35 = vector.broadcast %34 : f32 to vector<32x128xf32>
      %36 = arith.mulf %35, %33 : vector<32x128xf32>
      %c1 = arith.constant 1 : index
      %37 = memref.load %arg7[%c1] : memref<2xf32, #tpu.memory_space<smem>>
      %38 = vector.broadcast %37 : f32 to vector<32x128xf32>
      %39 = arith.addf %36, %38 : vector<32x128xf32>
      %c0_22 = arith.constant 0 : index
      %c0_23 = arith.constant 0 : index
      %40 = vector.load %arg6[%c0_22, %c0_23] : memref<32x1xf32, #tpu.memory_space<vmem>>, vector<32x1xf32>
      %cst_24 = arith.constant 0.000000e+00 : f32
      %41 = vector.broadcast %cst_24 : f32 to vector<32x1xf32>
      %42 = arith.cmpf one, %40, %41 : vector<32x1xf32>
      %cst_25 = arith.constant 0.000000e+00 : f32
      %43 = vector.shape_cast %42 : vector<32x1xi1> to vector<32x1xi1>
      %44 = vector.broadcast %43 : vector<32x1xi1> to vector<32x128xi1>
      %45 = vector.broadcast %cst_25 : f32 to vector<32x128xf32>
      %46 = arith.select %44, %39, %45 : vector<32x128xi1>, vector<32x128xf32>
      %c0_26 = arith.constant 0 : index
      %c0_27 = arith.constant 0 : index
      %47 = vector.load %arg8[%c0_26, %c0_27] : memref<32x128xf32, #tpu.memory_space<vmem>>, vector<32x128xf32>
      tpu.vector_store %arg8[%c0_26, %c0_27], %46 {strides = array<i32>} : memref<32x128xf32, #tpu.memory_space<vmem>>, vector<32x128xf32>,
    } else {
    }
    return
  }
  func.func @transform_0(%arg0: i32, %arg1: i32) -> (i32, i32) {
    %c0_i32 = arith.constant 0 : i32
    return %arg0, %arg1 : i32, i32
  }
  func.func @transform_1(%arg0: i32, %arg1: i32) -> (i32, i32) {
    %c0_i32 = arith.constant 0 : i32
    %c0_i32_0 = arith.constant 0 : i32
    return %arg1, %c0_i32 : i32, i32
  }
  func.func @transform_2(%arg0: i32, %arg1: i32) -> (i32, i32) {
    %c0_i32 = arith.constant 0 : i32
    %c0_i32_0 = arith.constant 0 : i32
    %c0_i32_1 = arith.constant 0 : i32
    return %c0_i32, %c0_i32_0 : i32, i32
  }
  func.func @transform_3(%arg0: i32, %arg1: i32) -> (i32, i32) {
    %c0_i32 = arith.constant 0 : i32
    %c0_i32_0 = arith.constant 0 : i32
    return %arg0, %c0_i32 : i32, i32
  }
  func.func @transform_4(%arg0: i32, %arg1: i32) -> (i32, i32) {
    %c0_i32 = arith.constant 0 : i32
    %c0_i32_0 = arith.constant 0 : i32
    return %arg0, %c0_i32 : i32, i32
  }
  func.func @transform_5(%arg0: i32, %arg1: i32) -> i32 {
    %c0_i32 = arith.constant 0 : i32
    %c0_i32_0 = arith.constant 0 : i32
    return %c0_i32 : i32
  }
  func.func @transform_6(%arg0: i32, %arg1: i32) -> (i32, i32) {
    %c0_i32 = arith.constant 0 : i32
    %c0_i32_0 = arith.constant 0 : i32
    return %arg0, %c0_i32 : i32, i32
  }
}

module attributes {stable_mosaic.version = 11 : i64} {
  func.func @_linear_kernel(%arg0: i32, %arg1: i32, %arg2: i32, %arg3: memref<32x128xf32, #tpu.memory_space<vmem>>, %arg4: memref<128x512xf32, #tpu.memory_space<vmem>>, %arg5: memref<1x512xf32, #tpu.memory_space<vmem>>, %arg6: memref<32x512xf32, #tpu.memory_space<vmem>>, %arg7: memref<32x512xf32, #tpu.memory_space<vmem>>) attributes {dimension_semantics = [#tpu.dimension_semantics<parallel>, #tpu.dimension_semantics<parallel>, #tpu.dimension_semantics<arbitrary>], iteration_bounds = array<i64: 1, 1, 1>, scalar_prefetch = 0 : i64, scratch_operands = 1 : i64, tpu.core_type = #tpu.core_type<tc>, window_params = [{transform_indices = @transform_0, window_bounds = array<i64: 32, 128>}, {transform_indices = @transform_1, window_bounds = array<i64: 128, 512>}, {transform_indices = @transform_2, window_bounds = array<i64: 1, 512>}, {transform_indices = @transform_3, window_bounds = array<i64: 32, 512>}]} {
    %c0_i32 = arith.constant 0 : i32
    %0 = arith.cmpi eq, %arg2, %c0_i32 : i32
    %1 = arith.extui %0 : i1 to i32
    %c0_i32_0 = arith.constant 0 : i32
    %2 = arith.cmpi ne, %1, %c0_i32_0 : i32
    scf.if %2 {
      %cst_10 = arith.constant 0.000000e+00 : f32
      %12 = vector.broadcast %cst_10 : f32 to vector<32x512xf32>
      %c0_11 = arith.constant 0 : index
      %c0_12 = arith.constant 0 : index
      %13 = vector.load %arg7[%c0_11, %c0_12] : memref<32x512xf32, #tpu.memory_space<vmem>>, vector<32x512xf32>
      tpu.vector_store %arg7[%c0_11, %c0_12], %12 {strides = array<i32>} : memref<32x512xf32, #tpu.memory_space<vmem>>, vector<32x512xf32>,
    } else {
    }
    %c0 = arith.constant 0 : index
    %c0_1 = arith.constant 0 : index
    %3 = vector.load %arg7[%c0, %c0_1] : memref<32x512xf32, #tpu.memory_space<vmem>>, vector<32x512xf32>
    %c0_2 = arith.constant 0 : index
    %c0_3 = arith.constant 0 : index
    %4 = vector.load %arg3[%c0_2, %c0_3] : memref<32x128xf32, #tpu.memory_space<vmem>>, vector<32x128xf32>
    %c0_4 = arith.constant 0 : index
    %c0_5 = arith.constant 0 : index
    %5 = vector.load %arg4[%c0_4, %c0_5] : memref<128x512xf32, #tpu.memory_space<vmem>>, vector<128x512xf32>
    %cst = arith.constant dense<0.000000e+00> : vector<32x512xf32>
    %6 = tpu.matmul %4, %5, %cst {dimension_numbers = #tpu.dot_dimension_numbers<[1], [0], [0], [1], [0, 0, 1, 1], [], []>} : vector<32x128xf32>, vector<128x512xf32>, vector<32x512xf32> -> vector<32x512xf32>
    %7 = arith.addf %3, %6 : vector<32x512xf32>
    %c0_6 = arith.constant 0 : index
    %c0_7 = arith.constant 0 : index
    %8 = vector.load %arg7[%c0_6, %c0_7] : memref<32x512xf32, #tpu.memory_space<vmem>>, vector<32x512xf32>
    tpu.vector_store %arg7[%c0_6, %c0_7], %7 {strides = array<i32>} : memref<32x512xf32, #tpu.memory_space<vmem>>, vector<32x512xf32>,
    %c0_i32_8 = arith.constant 0 : i32
    %9 = arith.cmpi eq, %arg2, %c0_i32_8 : i32
    %10 = arith.extui %9 : i1 to i32
    %c0_i32_9 = arith.constant 0 : i32
    %11 = arith.cmpi ne, %10, %c0_i32_9 : i32
    scf.if %11 {
      %c0_10 = arith.constant 0 : index
      %c0_11 = arith.constant 0 : index
      %12 = vector.load %arg7[%c0_10, %c0_11] : memref<32x512xf32, #tpu.memory_space<vmem>>, vector<32x512xf32>
      %c0_12 = arith.constant 0 : index
      %c0_13 = arith.constant 0 : index
      %13 = vector.load %arg5[%c0_12, %c0_13] : memref<1x512xf32, #tpu.memory_space<vmem>>, vector<1x512xf32>
      %14 = vector.broadcast %13 : vector<1x512xf32> to vector<32x512xf32>
      %15 = arith.addf %12, %14 : vector<32x512xf32>
      %cst_14 = arith.constant 0.000000e+00 : f32
      %16 = vector.broadcast %cst_14 : f32 to vector<32x512xf32>
      %17 = arith.maximumf %15, %16 : vector<32x512xf32>
      %c0_15 = arith.constant 0 : index
      %c0_16 = arith.constant 0 : index
      %18 = vector.load %arg6[%c0_15, %c0_16] : memref<32x512xf32, #tpu.memory_space<vmem>>, vector<32x512xf32>
      tpu.vector_store %arg6[%c0_15, %c0_16], %17 {strides = array<i32>} : memref<32x512xf32, #tpu.memory_space<vmem>>, vector<32x512xf32>,
    } else {
    }
    return
  }
  func.func @transform_0(%arg0: i32, %arg1: i32, %arg2: i32) -> (i32, i32) {
    %c0_i32 = arith.constant 0 : i32
    return %arg0, %arg2 : i32, i32
  }
  func.func @transform_1(%arg0: i32, %arg1: i32, %arg2: i32) -> (i32, i32) {
    %c0_i32 = arith.constant 0 : i32
    return %arg2, %arg1 : i32, i32
  }
  func.func @transform_2(%arg0: i32, %arg1: i32, %arg2: i32) -> (i32, i32) {
    %c0_i32 = arith.constant 0 : i32
    %c0_i32_0 = arith.constant 0 : i32
    return %c0_i32, %arg1 : i32, i32
  }
  func.func @transform_3(%arg0: i32, %arg1: i32, %arg2: i32) -> (i32, i32) {
    %c0_i32 = arith.constant 0 : i32
    return %arg0, %arg1 : i32, i32
  }
}

module attributes {stable_mosaic.version = 11 : i64} {
  func.func @_linear_norm_kernel(%arg0: i32, %arg1: i32, %arg2: memref<32x512xf32, #tpu.memory_space<vmem>>, %arg3: memref<512x128xf32, #tpu.memory_space<vmem>>, %arg4: memref<1x128xf32, #tpu.memory_space<vmem>>, %arg5: memref<32x128xf32, #tpu.memory_space<vmem>>, %arg6: memref<32x1xf32, #tpu.memory_space<vmem>>, %arg7: memref<2xf32, #tpu.memory_space<smem>>, %arg8: memref<32x128xf32, #tpu.memory_space<vmem>>, %arg9: memref<32x128xf32, #tpu.memory_space<vmem>>) attributes {dimension_semantics = [#tpu.dimension_semantics<parallel>, #tpu.dimension_semantics<arbitrary>], iteration_bounds = array<i64: 1, 1>, scalar_prefetch = 0 : i64, scratch_operands = 1 : i64, tpu.core_type = #tpu.core_type<tc>, window_params = [{transform_indices = @transform_0, window_bounds = array<i64: 32, 512>}, {transform_indices = @transform_1, window_bounds = array<i64: 512, 128>}, {pipeline_mode = #tpu.pipeline_mode<synchronous>, transform_indices = @transform_2, window_bounds = array<i64: 1, 128>}, {transform_indices = @transform_3, window_bounds = array<i64: 32, 128>}, {transform_indices = @transform_4, window_bounds = array<i64: 32, 1>}, {transform_indices = @transform_5, window_bounds = array<i64: 2>}, {transform_indices = @transform_6, window_bounds = array<i64: 32, 128>}]} {
    %c0_i32 = arith.constant 0 : i32
    %0 = arith.cmpi eq, %arg1, %c0_i32 : i32
    %1 = arith.extui %0 : i1 to i32
    %c0_i32_0 = arith.constant 0 : i32
    %2 = arith.cmpi ne, %1, %c0_i32_0 : i32
    scf.if %2 {
      %cst_10 = arith.constant 0.000000e+00 : f32
      %12 = vector.broadcast %cst_10 : f32 to vector<32x128xf32>
      %c0_11 = arith.constant 0 : index
      %c0_12 = arith.constant 0 : index
      %13 = vector.load %arg9[%c0_11, %c0_12] : memref<32x128xf32, #tpu.memory_space<vmem>>, vector<32x128xf32>
      tpu.vector_store %arg9[%c0_11, %c0_12], %12 {strides = array<i32>} : memref<32x128xf32, #tpu.memory_space<vmem>>, vector<32x128xf32>,
    } else {
    }
    %c0 = arith.constant 0 : index
    %c0_1 = arith.constant 0 : index
    %3 = vector.load %arg9[%c0, %c0_1] : memref<32x128xf32, #tpu.memory_space<vmem>>, vector<32x128xf32>
    %c0_2 = arith.constant 0 : index
    %c0_3 = arith.constant 0 : index
    %4 = vector.load %arg2[%c0_2, %c0_3] : memref<32x512xf32, #tpu.memory_space<vmem>>, vector<32x512xf32>
    %c0_4 = arith.constant 0 : index
    %c0_5 = arith.constant 0 : index
    %5 = vector.load %arg3[%c0_4, %c0_5] : memref<512x128xf32, #tpu.memory_space<vmem>>, vector<512x128xf32>
    %cst = arith.constant dense<0.000000e+00> : vector<32x128xf32>
    %6 = tpu.matmul %4, %5, %cst {dimension_numbers = #tpu.dot_dimension_numbers<[1], [0], [0], [1], [0, 0, 1, 1], [], []>} : vector<32x512xf32>, vector<512x128xf32>, vector<32x128xf32> -> vector<32x128xf32>
    %7 = arith.addf %3, %6 : vector<32x128xf32>
    %c0_6 = arith.constant 0 : index
    %c0_7 = arith.constant 0 : index
    %8 = vector.load %arg9[%c0_6, %c0_7] : memref<32x128xf32, #tpu.memory_space<vmem>>, vector<32x128xf32>
    tpu.vector_store %arg9[%c0_6, %c0_7], %7 {strides = array<i32>} : memref<32x128xf32, #tpu.memory_space<vmem>>, vector<32x128xf32>,
    %c0_i32_8 = arith.constant 0 : i32
    %9 = arith.cmpi eq, %arg1, %c0_i32_8 : i32
    %10 = arith.extui %9 : i1 to i32
    %c0_i32_9 = arith.constant 0 : i32
    %11 = arith.cmpi ne, %10, %c0_i32_9 : i32
    scf.if %11 {
      %c0_10 = arith.constant 0 : index
      %c0_11 = arith.constant 0 : index
      %12 = vector.load %arg9[%c0_10, %c0_11] : memref<32x128xf32, #tpu.memory_space<vmem>>, vector<32x128xf32>
      %c0_12 = arith.constant 0 : index
      %c0_13 = arith.constant 0 : index
      %13 = vector.load %arg4[%c0_12, %c0_13] : memref<1x128xf32, #tpu.memory_space<vmem>>, vector<1x128xf32>
      %14 = vector.broadcast %13 : vector<1x128xf32> to vector<32x128xf32>
      %15 = arith.addf %12, %14 : vector<32x128xf32>
      %c0_14 = arith.constant 0 : index
      %c0_15 = arith.constant 0 : index
      %16 = vector.load %arg5[%c0_14, %c0_15] : memref<32x128xf32, #tpu.memory_space<vmem>>, vector<32x128xf32>
      %17 = arith.addf %15, %16 : vector<32x128xf32>
      %cst_16 = arith.constant dense<0.000000e+00> : vector<32xf32>
      %18 = vector.multi_reduction <add>, %17, %cst_16 [1] : vector<32x128xf32> to vector<32xf32>
      %19 = vector.shape_cast %18 : vector<32xf32> to vector<32x1xf32>
      %cst_17 = arith.constant 1.280000e+02 : f32
      %20 = vector.broadcast %cst_17 : f32 to vector<32x1xf32>
      %21 = arith.divf %19, %20 : vector<32x1xf32>
      %22 = vector.broadcast %21 : vector<32x1xf32> to vector<32x128xf32>
      %23 = arith.subf %17, %22 : vector<32x128xf32>
      %24 = arith.mulf %23, %23 : vector<32x128xf32>
      %cst_18 = arith.constant dense<0.000000e+00> : vector<32xf32>
      %25 = vector.multi_reduction <add>, %24, %cst_18 [1] : vector<32x128xf32> to vector<32xf32>
      %26 = vector.shape_cast %25 : vector<32xf32> to vector<32x1xf32>
      %cst_19 = arith.constant 0.00787401571 : f32
      %27 = vector.broadcast %cst_19 : f32 to vector<32x1xf32>
      %28 = arith.mulf %26, %27 : vector<32x1xf32>
      %cst_20 = arith.constant 9.99999993E-9 : f32
      %29 = vector.broadcast %cst_20 : f32 to vector<32x1xf32>
      %30 = arith.addf %28, %29 : vector<32x1xf32>
      %31 = math.rsqrt %30 : vector<32x1xf32>
      %32 = vector.broadcast %31 : vector<32x1xf32> to vector<32x128xf32>
      %33 = arith.mulf %23, %32 : vector<32x128xf32>
      %c0_21 = arith.constant 0 : index
      %34 = memref.load %arg7[%c0_21] : memref<2xf32, #tpu.memory_space<smem>>
      %35 = vector.broadcast %34 : f32 to vector<32x128xf32>
      %36 = arith.mulf %35, %33 : vector<32x128xf32>
      %c1 = arith.constant 1 : index
      %37 = memref.load %arg7[%c1] : memref<2xf32, #tpu.memory_space<smem>>
      %38 = vector.broadcast %37 : f32 to vector<32x128xf32>
      %39 = arith.addf %36, %38 : vector<32x128xf32>
      %c0_22 = arith.constant 0 : index
      %c0_23 = arith.constant 0 : index
      %40 = vector.load %arg6[%c0_22, %c0_23] : memref<32x1xf32, #tpu.memory_space<vmem>>, vector<32x1xf32>
      %cst_24 = arith.constant 0.000000e+00 : f32
      %41 = vector.broadcast %cst_24 : f32 to vector<32x1xf32>
      %42 = arith.cmpf one, %40, %41 : vector<32x1xf32>
      %cst_25 = arith.constant 0.000000e+00 : f32
      %43 = vector.shape_cast %42 : vector<32x1xi1> to vector<32x1xi1>
      %44 = vector.broadcast %43 : vector<32x1xi1> to vector<32x128xi1>
      %45 = vector.broadcast %cst_25 : f32 to vector<32x128xf32>
      %46 = arith.select %44, %39, %45 : vector<32x128xi1>, vector<32x128xf32>
      %c0_26 = arith.constant 0 : index
      %c0_27 = arith.constant 0 : index
      %47 = vector.load %arg8[%c0_26, %c0_27] : memref<32x128xf32, #tpu.memory_space<vmem>>, vector<32x128xf32>
      tpu.vector_store %arg8[%c0_26, %c0_27], %46 {strides = array<i32>} : memref<32x128xf32, #tpu.memory_space<vmem>>, vector<32x128xf32>,
    } else {
    }
    return
  }
  func.func @transform_0(%arg0: i32, %arg1: i32) -> (i32, i32) {
    %c0_i32 = arith.constant 0 : i32
    return %arg0, %arg1 : i32, i32
  }
  func.func @transform_1(%arg0: i32, %arg1: i32) -> (i32, i32) {
    %c0_i32 = arith.constant 0 : i32
    %c0_i32_0 = arith.constant 0 : i32
    return %arg1, %c0_i32 : i32, i32
  }
  func.func @transform_2(%arg0: i32, %arg1: i32) -> (i32, i32) {
    %c0_i32 = arith.constant 0 : i32
    %c0_i32_0 = arith.constant 0 : i32
    %c0_i32_1 = arith.constant 0 : i32
    return %c0_i32, %c0_i32_0 : i32, i32
  }
  func.func @transform_3(%arg0: i32, %arg1: i32) -> (i32, i32) {
    %c0_i32 = arith.constant 0 : i32
    %c0_i32_0 = arith.constant 0 : i32
    return %arg0, %c0_i32 : i32, i32
  }
  func.func @transform_4(%arg0: i32, %arg1: i32) -> (i32, i32) {
    %c0_i32 = arith.constant 0 : i32
    %c0_i32_0 = arith.constant 0 : i32
    return %arg0, %c0_i32 : i32, i32
  }
  func.func @transform_5(%arg0: i32, %arg1: i32) -> i32 {
    %c0_i32 = arith.constant 0 : i32
    %c0_i32_0 = arith.constant 0 : i32
    return %c0_i32 : i32
  }
  func.func @transform_6(%arg0: i32, %arg1: i32) -> (i32, i32) {
    %c0_i32 = arith.constant 0 : i32
    %c0_i32_0 = arith.constant 0 : i32
    return %arg0, %c0_i32 : i32, i32
  }
}

</mosaic_0001>

<llo_original>
// kernel: encoder_layer_forward.5
$region0: #{encoder_layer_forward.5}
  #allocation0 [shape = 'u32[]', space=smem, size = 0x4, offset = 0x4, fixed_abs, tag = 'smem constant byte address 0x4 - core index']
  #allocation1 [shape = 'u32[144,128]{1,0:T(1,128)}', space=vmem, size = 0x12000, scoped, tag = 'internal scratch']
  #allocation2 [shape = 'f32[32,384]{1,0:T(8,128)}', space=vmem, size = 0xc000, scoped, tag = 'scratch operand']
  %s0 = inlined_call_operand.vmem [shape: f32[32,128], index: 0, kind: input, shape index: {}]
  %s1 = inlined_call_operand.vmem [shape: f32[128,384], index: 1, kind: input, shape index: {}]
  %s2 = inlined_call_operand.vmem [shape: f32[1,384], index: 2, kind: input, shape index: {}]
  %s3 = inlined_call_operand.vmem [shape: f32[32,384], index: 3, kind: output, shape index: {}]
  %s4 = sld [smem:[#allocation0]]
  $region30: #{encoder_layer_forward.5} parent=0
    _
  %s6 = ssub.s32 1, %s4
  %s7 = scalar_select 0, %s6, %s4
  // Predicated region
  $region2: #{encoder_layer_forward.5} parent=0 // pred_check
    _
  $region3: #{encoder_layer_forward.5} parent=0 // pred_check_branch
    %9 = sbr.rel (0) target = $region5
  $region4: #{encoder_layer_forward.5} parent=0 // pred_region
    _
  $region5: #{encoder_layer_forward.5} parent=0 // pred_fallthru
    _
  // Predicated region
  $region6: #{encoder_layer_forward.5} parent=0 // pred_check
    _
  $region7: #{encoder_layer_forward.5} parent=0 // pred_check_branch
    %11 = sbr.rel (0) target = $region9
  $region8: #{encoder_layer_forward.5} parent=0 // pred_region
    _
  $region9: #{encoder_layer_forward.5} parent=0 // pred_fallthru
    _
  // Predicated region
  $region10: #{encoder_layer_forward.5} parent=0 // pred_check
    _
  $region11: #{encoder_layer_forward.5} parent=0 // pred_check_branch
    %13 = sbr.rel (0) target = $region13
  $region12: #{encoder_layer_forward.5} parent=0 // pred_region
    _
  $region13: #{encoder_layer_forward.5} parent=0 // pred_fallthru
    _
  %p14 = scmp.eq.s32.totalorder 0, 0
  // Predicated region
  $region14: #{encoder_layer_forward.5} parent=0 // pred_check
    %p15 = pneg %p14
  $region15: #{encoder_layer_forward.5} parent=0 // pred_check_branch
    %17 = sbr.rel (%p15) target = $region17
  $region16: #{encoder_layer_forward.5} parent=0 // pred_region
    %18 = vst [vmem:[#allocation2] sm:$0xff] 0.0
    %19 = vst [vmem:[#allocation2 + $0x8] sm:$0xff] 0.0
    %20 = vst [vmem:[#allocation2 + $0x10] sm:$0xff] 0.0
    %21 = vst [vmem:[#allocation2 + $0x18] sm:$0xff] 0.0
    %22 = vst [vmem:[#allocation2 + $0x20] sm:$0xff] 0.0
    %23 = vst [vmem:[#allocation2 + $0x28] sm:$0xff] 0.0
    %24 = vst [vmem:[#allocation2 + $0x30] sm:$0xff] 0.0
    %25 = vst [vmem:[#allocation2 + $0x38] sm:$0xff] 0.0
    %26 = vst [vmem:[#allocation2 + $0x40] sm:$0xff] 0.0
    %27 = vst [vmem:[#allocation2 + $0x48] sm:$0xff] 0.0
    %28 = vst [vmem:[#allocation2 + $0x50] sm:$0xff] 0.0
    %29 = vst [vmem:[#allocation2 + $0x58] sm:$0xff] 0.0
  $region17: #{encoder_layer_forward.5} parent=0 // pred_fallthru
    _
  %v30 = vld [vmem:[#allocation2] sm:$0xff]
  %v31 = vld [vmem:[#allocation2 + $0x8] sm:$0xff]
  %v32 = vld [vmem:[#allocation2 + $0x10] sm:$0xff]
  %v33 = vld [vmem:[#allocation2 + $0x18] sm:$0xff]
  %v34 = vld [vmem:[#allocation2 + $0x20] sm:$0xff]
  %v35 = vld [vmem:[#allocation2 + $0x28] sm:$0xff]
  %v36 = vld [vmem:[#allocation2 + $0x30] sm:$0xff]
  %v37 = vld [vmem:[#allocation2 + $0x38] sm:$0xff]
  %v38 = vld [vmem:[#allocation2 + $0x40] sm:$0xff]
  %v39 = vld [vmem:[#allocation2 + $0x48] sm:$0xff]
  %v40 = vld [vmem:[#allocation2 + $0x50] sm:$0xff]
  %v41 = vld [vmem:[#allocation2 + $0x58] sm:$0xff]
  %v42 = vld [vmem:[%s0] sm:$0xff]
  %v43 = vld [vmem:[%s0 + $0x8] sm:$0xff]
  %v44 = vld [vmem:[%s0 + $0x10] sm:$0xff]
  %v45 = vld [vmem:[%s0 + $0x18] sm:$0xff]
  %v46 = vld [vmem:[%s1] sm:$0xff]
  %v47 = vld [vmem:[%s1 + $0x8] sm:$0xff]
  %v48 = vld [vmem:[%s1 + $0x10] sm:$0xff]
  %v49 = vld [vmem:[%s1 + $0x18] sm:$0xff]
  %v50 = vld [vmem:[%s1 + $0x20] sm:$0xff]
  %v51 = vld [vmem:[%s1 + $0x28] sm:$0xff]
  %v52 = vld [vmem:[%s1 + $0x30] sm:$0xff]
  %v53 = vld [vmem:[%s1 + $0x38] sm:$0xff]
  %v54 = vld [vmem:[%s1 + $0x40] sm:$0xff]
  %v55 = vld [vmem:[%s1 + $0x48] sm:$0xff]
  %v56 = vld [vmem:[%s1 + $0x50] sm:$0xff]
  %v57 = vld [vmem:[%s1 + $0x58] sm:$0xff]
  %v58 = vld [vmem:[%s1 + $0x60] sm:$0xff]
  %v59 = vld [vmem:[%s1 + $0x68] sm:$0xff]
  %v60 = vld [vmem:[%s1 + $0x70] sm:$0xff]
  %v61 = vld [vmem:[%s1 + $0x78] sm:$0xff]
  %v62 = vld [vmem:[%s1 + $0x80] sm:$0xff]
  %v63 = vld [vmem:[%s1 + $0x88] sm:$0xff]
  %v64 = vld [vmem:[%s1 + $0x90] sm:$0xff]
  %v65 = vld [vmem:[%s1 + $0x98] sm:$0xff]
  %v66 = vld [vmem:[%s1 + $0xa0] sm:$0xff]
  %v67 = vld [vmem:[%s1 + $0xa8] sm:$0xff]
  %v68 = vld [vmem:[%s1 + $0xb0] sm:$0xff]
  %v69 = vld [vmem:[%s1 + $0xb8] sm:$0xff]
  %v70 = vld [vmem:[%s1 + $0xc0] sm:$0xff]
  %v71 = vld [vmem:[%s1 + $0xc8] sm:$0xff]
  %v72 = vld [vmem:[%s1 + $0xd0] sm:$0xff]
  %v73 = vld [vmem:[%s1 + $0xd8] sm:$0xff]
  %v74 = vld [vmem:[%s1 + $0xe0] sm:$0xff]
  %v75 = vld [vmem:[%s1 + $0xe8] sm:$0xff]
  %v76 = vld [vmem:[%s1 + $0xf0] sm:$0xff]
  %v77 = vld [vmem:[%s1 + $0xf8] sm:$0xff]
  %v78 = vld [vmem:[%s1 + $0x100] sm:$0xff]
  %v79 = vld [vmem:[%s1 + $0x108] sm:$0xff]
  %v80 = vld [vmem:[%s1 + $0x110] sm:$0xff]
  %v81 = vld [vmem:[%s1 + $0x118] sm:$0xff]
  %v82 = vld [vmem:[%s1 + $0x120] sm:$0xff]
  %v83 = vld [vmem:[%s1 + $0x128] sm:$0xff]
  %v84 = vld [vmem:[%s1 + $0x130] sm:$0xff]
  %v85 = vld [vmem:[%s1 + $0x138] sm:$0xff]
  %v86 = vld [vmem:[%s1 + $0x140] sm:$0xff]
  %v87 = vld [vmem:[%s1 + $0x148] sm:$0xff]
  %v88 = vld [vmem:[%s1 + $0x150] sm:$0xff]
  %v89 = vld [vmem:[%s1 + $0x158] sm:$0xff]
  %v90 = vld [vmem:[%s1 + $0x160] sm:$0xff]
  %v91 = vld [vmem:[%s1 + $0x168] sm:$0xff]
  %v92 = vld [vmem:[%s1 + $0x170] sm:$0xff]
  %v93 = vld [vmem:[%s1 + $0x178] sm:$0xff]
  %94 = vmatprep.subr.mxu0 %v47
  %95 = vmatpush1.msra.mxu0 %v46
  %96 = vmatprep.subr.mxu0 %v50
  %97 = vmatpush1.msra.mxu0 %v49
  %98 = vmatprep.subr.mxu0 %v53
  %99 = vmatpush1.msra.mxu0 %v52
  %100 = vmatprep.subr.mxu0 %v56
  %101 = vmatpush1.msra.mxu0 %v55
  %102 = vmatprep.subr.mxu0 %v59
  %103 = vmatpush1.msra.mxu0 %v58
  %104 = vmatprep.subr.mxu0 %v62
  %105 = vmatpush1.msra.mxu0 %v61
  %106 = vmatprep.subr.mxu0 %v65
  %107 = vmatpush1.msra.mxu0 %v64
  %108 = vmatprep.subr.mxu0 %v68
  %109 = vmatpush1.msra.mxu0 %v67
  %110 = vmatprep.subr.mxu0 %v71
  %111 = vmatpush1.msra.mxu0 %v70
  %112 = vmatprep.subr.mxu0 %v74
  %113 = vmatpush1.msra.mxu0 %v73
  %114 = vmatprep.subr.mxu0 %v77
  %115 = vmatpush1.msra.mxu0 %v76
  %116 = vmatprep.subr.mxu0 %v80
  %117 = vmatpush1.msra.mxu0 %v79
  %118 = vmatprep.subr.mxu0 %v83
  %119 = vmatpush1.msra.mxu0 %v82
  %120 = vmatprep.subr.mxu0 %v86
  %121 = vmatpush1.msra.mxu0 %v85
  %122 = vmatprep.subr.mxu0 %v89
  %123 = vmatpush1.msra.mxu0 %v88
  %124 = vmatprep.subr.mxu0 %v92
  %125 = vmatpush1.msra.mxu0 %v91
  %126 = vmatprep.subr.mxu0 0.0
  %127 = vmatpush1.msra.mxu0 0.0
  %128 = vmatprep.subr.mxu0 0.0
  %129 = vmatpush1.msra.mxu0 0.0
  %130 = vmatprep.subr.mxu0 0.0
  %131 = vmatpush1.msra.mxu0 0.0
  %132 = vmatprep.subr.mxu0 0.0
  %133 = vmatpush1.msra.mxu0 0.0
  %134 = vmatprep.subr.mxu0 0.0
  %135 = vmatpush1.msra.mxu0 0.0
  %136 = vmatprep.subr.mxu0 0.0
  %137 = vmatpush1.msra.mxu0 0.0
  %138 = vmatprep.subr.mxu0 0.0
  %139 = vmatpush1.msra.mxu0 0.0
  %140 = vmatprep.subr.mxu0 0.0
  %141 = vmatpush1.msra.mxu0 0.0
  %142 = vmatprep.subr.mxu0 0.0
  %143 = vmatpush1.msra.mxu0 0.0
  %144 = vmatprep.subr.mxu0 0.0
  %145 = vmatpush1.msra.mxu0 0.0
  %146 = vmatprep.subr.mxu0 0.0
  %147 = vmatpush1.msra.mxu0 0.0
  %148 = vmatprep.subr.mxu0 0.0
  %149 = vmatpush1.msra.mxu0 0.0
  %150 = vmatprep.subr.mxu0 0.0
  %151 = vmatpush1.msra.mxu0 0.0
  %152 = vmatprep.subr.mxu0 0.0
  %153 = vmatpush1.msra.mxu0 0.0
  %154 = vmatprep.subr.mxu0 0.0
  %155 = vmatpush1.msra.mxu0 0.0
  %156 = vmatprep.subr.mxu0 0.0
  %157 = vmatpush1.msra.mxu0 0.0
  %158 = vmatprep.mubr.f32.mxu0 0.0
  %159 = vmatmul.mubr.f32.gmra.mrb[0].mxu0 %v42
  %v160 = vpop.f32.mrb[0].mxu0
  %v161 = vadd.f32 0.0, %v160
  %v162 = vpop.f32.mrb[0].mxu0
  %v163 = vadd.f32 0.0, %v162
  %164 = vmatprep.mubr.f32.mxu0 0.0
  %165 = vmatmul.mubr.f32.gmra.mrb[0].mxu0 %v43
  %v166 = vpop.f32.mrb[0].mxu0
  %v167 = vadd.f32 0.0, %v166
  %v168 = vpop.f32.mrb[0].mxu0
  %v169 = vadd.f32 0.0, %v168
  %170 = vmatprep.mubr.f32.mxu0 0.0
  %171 = vmatmul.mubr.f32.gmra.mrb[0].mxu0 %v44
  %v172 = vpop.f32.mrb[0].mxu0
  %v173 = vadd.f32 0.0, %v172
  %v174 = vpop.f32.mrb[0].mxu0
  %v175 = vadd.f32 0.0, %v174
  %176 = vmatprep.mubr.f32.mxu0 0.0
  %177 = vmatmul.mubr.f32.gmra.mrb[0].mxu0 %v45
  %v178 = vpop.f32.mrb[0].mxu0
  %v179 = vadd.f32 0.0, %v178
  %v180 = vpop.f32.mrb[0].mxu0
  %v181 = vadd.f32 0.0, %v180
  %182 = vdwg.mxu0
  %183 = vmatprep.subr.mxu0 0.0
  %184 = vmatpush1.msra.mxu0 %v48
  %185 = vmatprep.subr.mxu0 0.0
  %186 = vmatpush1.msra.mxu0 %v51
  %187 = vmatprep.subr.mxu0 0.0
  %188 = vmatpush1.msra.mxu0 %v54
  %189 = vmatprep.subr.mxu0 0.0
  %190 = vmatpush1.msra.mxu0 %v57
  %191 = vmatprep.subr.mxu0 0.0
  %192 = vmatpush1.msra.mxu0 %v60
  %193 = vmatprep.subr.mxu0 0.0
  %194 = vmatpush1.msra.mxu0 %v63
  %195 = vmatprep.subr.mxu0 0.0
  %196 = vmatpush1.msra.mxu0 %v66
  %197 = vmatprep.subr.mxu0 0.0
  %198 = vmatpush1.msra.mxu0 %v69
  %199 = vmatprep.subr.mxu0 0.0
  %200 = vmatpush1.msra.mxu0 %v72
  %201 = vmatprep.subr.mxu0 0.0
  %202 = vmatpush1.msra.mxu0 %v75
  %203 = vmatprep.subr.mxu0 0.0
  %204 = vmatpush1.msra.mxu0 %v78
  %205 = vmatprep.subr.mxu0 0.0
  %206 = vmatpush1.msra.mxu0 %v81
  %207 = vmatprep.subr.mxu0 0.0
  %208 = vmatpush1.msra.mxu0 %v84
  %209 = vmatprep.subr.mxu0 0.0
  %210 = vmatpush1.msra.mxu0 %v87
  %211 = vmatprep.subr.mxu0 0.0
  %212 = vmatpush1.msra.mxu0 %v90
  %213 = vmatprep.subr.mxu0 0.0
  %214 = vmatpush1.msra.mxu0 %v93
  %215 = vmatprep.subr.mxu0 0.0
  %216 = vmatpush1.msra.mxu0 0.0
  %217 = vmatprep.subr.mxu0 0.0
  %218 = vmatpush1.msra.mxu0 0.0
  %219 = vmatprep.subr.mxu0 0.0
  %220 = vmatpush1.msra.mxu0 0.0
  %221 = vmatprep.subr.mxu0 0.0
  %222 = vmatpush1.msra.mxu0 0.0
  %223 = vmatprep.subr.mxu0 0.0
  %224 = vmatpush1.msra.mxu0 0.0
  %225 = vmatprep.subr.mxu0 0.0
  %226 = vmatpush1.msra.mxu0 0.0
  %227 = vmatprep.subr.mxu0 0.0
  %228 = vmatpush1.msra.mxu0 0.0
  %229 = vmatprep.subr.mxu0 0.0
  %230 = vmatpush1.msra.mxu0 0.0
  %231 = vmatprep.subr.mxu0 0.0
  %232 = vmatpush1.msra.mxu0 0.0
  %233 = vmatprep.subr.mxu0 0.0
  %234 = vmatpush1.msra.mxu0 0.0
  %235 = vmatprep.subr.mxu0 0.0
  %236 = vmatpush1.msra.mxu0 0.0
  %237 = vmatprep.subr.mxu0 0.0
  %238 = vmatpush1.msra.mxu0 0.0
  %239 = vmatprep.subr.mxu0 0.0
  %240 = vmatpush1.msra.mxu0 0.0
  %241 = vmatprep.subr.mxu0 0.0
  %242 = vmatpush1.msra.mxu0 0.0
  %243 = vmatprep.subr.mxu0 0.0
  %244 = vmatpush1.msra.mxu0 0.0
  %245 = vmatprep.subr.mxu0 0.0
  %246 = vmatpush1.msra.mxu0 0.0
  %247 = vmatprep.mubr.f32.mxu0 0.0
  %248 = vmatmul.mubr.f32.gmra.mrb[0].mxu0 %v42
  %v249 = vpop.f32.mrb[0].mxu0
  %v250 = vadd.f32 0.0, %v249
  %v251 = vpop.f32.mrb[0].mxu0
  %252 = vmatprep.mubr.f32.mxu0 0.0
  %253 = vmatmul.mubr.f32.gmra.mrb[0].mxu0 %v43
  %v254 = vpop.f32.mrb[0].mxu0
  %v255 = vadd.f32 0.0, %v254
  %v256 = vpop.f32.mrb[0].mxu0
  %257 = vmatprep.mubr.f32.mxu0 0.0
  %258 = vmatmul.mubr.f32.gmra.mrb[0].mxu0 %v44
  %v259 = vpop.f32.mrb[0].mxu0
  %v260 = vadd.f32 0.0, %v259
  %v261 = vpop.f32.mrb[0].mxu0
  %262 = vmatprep.mubr.f32.mxu0 0.0
  %263 = vmatmul.mubr.f32.gmra.mrb[0].mxu0 %v45
  %v264 = vpop.f32.mrb[0].mxu0
  %v265 = vadd.f32 0.0, %v264
  %v266 = vpop.f32.mrb[0].mxu0
  %267 = vdwg.mxu0
  %v268 = vadd.f32 %v30, %v161
  %v269 = vadd.f32 %v31, %v163
  %v270 = vadd.f32 %v32, %v250
  %v271 = vadd.f32 %v33, %v167
  %v272 = vadd.f32 %v34, %v169
  %v273 = vadd.f32 %v35, %v255
  %v274 = vadd.f32 %v36, %v173
  %v275 = vadd.f32 %v37, %v175
  %v276 = vadd.f32 %v38, %v260
  %v277 = vadd.f32 %v39, %v179
  %v278 = vadd.f32 %v40, %v181
  %v279 = vadd.f32 %v41, %v265
  %280 = vst [vmem:[#allocation2] sm:$0xff] %v268
  %281 = vst [vmem:[#allocation2 + $0x8] sm:$0xff] %v269
  %282 = vst [vmem:[#allocation2 + $0x10] sm:$0xff] %v270
  %283 = vst [vmem:[#allocation2 + $0x18] sm:$0xff] %v271
  %284 = vst [vmem:[#allocation2 + $0x20] sm:$0xff] %v272
  %285 = vst [vmem:[#allocation2 + $0x28] sm:$0xff] %v273
  %286 = vst [vmem:[#allocation2 + $0x30] sm:$0xff] %v274
  %287 = vst [vmem:[#allocation2 + $0x38] sm:$0xff] %v275
  %288 = vst [vmem:[#allocation2 + $0x40] sm:$0xff] %v276
  %289 = vst [vmem:[#allocation2 + $0x48] sm:$0xff] %v277
  %290 = vst [vmem:[#allocation2 + $0x50] sm:$0xff] %v278
  %291 = vst [vmem:[#allocation2 + $0x58] sm:$0xff] %v279
  // Predicated region
  $region18: #{encoder_layer_forward.5} parent=0 // pred_check
    %p292 = pneg %p14
  $region19: #{encoder_layer_forward.5} parent=0 // pred_check_branch
    %294 = sbr.rel (%p292) target = $region21
  $region20: #{encoder_layer_forward.5} parent=0 // pred_region
    %v295 = vld [vmem:[#allocation2] sm:$0xff]
    %v296 = vld [vmem:[#allocation2 + $0x8] sm:$0xff]
    %v297 = vld [vmem:[#allocation2 + $0x10] sm:$0xff]
    %v298 = vld [vmem:[#allocation2 + $0x18] sm:$0xff]
    %v299 = vld [vmem:[#allocation2 + $0x20] sm:$0xff]
    %v300 = vld [vmem:[#allocation2 + $0x28] sm:$0xff]
    %v301 = vld [vmem:[#allocation2 + $0x30] sm:$0xff]
    %v302 = vld [vmem:[#allocation2 + $0x38] sm:$0xff]
    %v303 = vld [vmem:[#allocation2 + $0x40] sm:$0xff]
    %v304 = vld [vmem:[#allocation2 + $0x48] sm:$0xff]
    %v305 = vld [vmem:[#allocation2 + $0x50] sm:$0xff]
    %v306 = vld [vmem:[#allocation2 + $0x58] sm:$0xff]
    %v307 = vld [vmem:[%s2] sm:$0x7]
    %v309 = vlaneseq
    %v310 = vshrl.u32 %v309, 7
    %v311 = vsub.s32 0, %v310
    %v312 = vrot.slane %v307, %v311
    %v313 = vlaneseq
    %v314 = vshrl.u32 %v313, 7
    %v315 = vsub.s32 1, %v314
    %v316 = vrot.slane %v307, %v315
    %v317 = vlaneseq
    %v318 = vshrl.u32 %v317, 7
    %v319 = vsub.s32 2, %v318
    %v320 = vrot.slane %v307, %v319
    %v324 = vadd.f32 %v295, %v312
    %v325 = vadd.f32 %v296, %v316
    %v326 = vadd.f32 %v297, %v320
    %v327 = vadd.f32 %v298, %v312
    %v328 = vadd.f32 %v299, %v316
    %v329 = vadd.f32 %v300, %v320
    %v330 = vadd.f32 %v301, %v312
    %v331 = vadd.f32 %v302, %v316
    %v332 = vadd.f32 %v303, %v320
    %v333 = vadd.f32 %v304, %v312
    %v334 = vadd.f32 %v305, %v316
    %v335 = vadd.f32 %v306, %v320
    %336 = vst [vmem:[%s3] sm:$0xff] %v324
    %337 = vst [vmem:[%s3 + $0x8] sm:$0xff] %v325
    %338 = vst [vmem:[%s3 + $0x10] sm:$0xff] %v326
    %339 = vst [vmem:[%s3 + $0x18] sm:$0xff] %v327
    %340 = vst [vmem:[%s3 + $0x20] sm:$0xff] %v328
    %341 = vst [vmem:[%s3 + $0x28] sm:$0xff] %v329
    %342 = vst [vmem:[%s3 + $0x30] sm:$0xff] %v330
    %343 = vst [vmem:[%s3 + $0x38] sm:$0xff] %v331
    %344 = vst [vmem:[%s3 + $0x40] sm:$0xff] %v332
    %345 = vst [vmem:[%s3 + $0x48] sm:$0xff] %v333
    %346 = vst [vmem:[%s3 + $0x50] sm:$0xff] %v334
    %347 = vst [vmem:[%s3 + $0x58] sm:$0xff] %v335
  $region21: #{encoder_layer_forward.5} parent=0 // pred_fallthru
    _
  // Predicated region
  $region22: #{encoder_layer_forward.5} parent=0 // pred_check
    _
  $region23: #{encoder_layer_forward.5} parent=0 // pred_check_branch
    %349 = sbr.rel (0) target = $region25
  $region24: #{encoder_layer_forward.5} parent=0 // pred_region
    _
  $region25: #{encoder_layer_forward.5} parent=0 // pred_fallthru
    _
  // Predicated region
  $region26: #{encoder_layer_forward.5} parent=0 // pred_check
    _
  $region27: #{encoder_layer_forward.5} parent=0 // pred_check_branch
    %351 = sbr.rel (0) target = $region29
  $region28: #{encoder_layer_forward.5} parent=0 // pred_region
    _
  $region29: #{encoder_layer_forward.5} parent=0 // pred_fallthru
    _

// kernel: encoder_layer_forward.7
$region0: #{encoder_layer_forward.7}
  #allocation0 [shape = 'u32[]', space=smem, size = 0x4, offset = 0x4, fixed_abs, tag = 'smem constant byte address 0x4 - core index']
  #allocation1 [shape = 'u32[144,128]{1,0:T(1,128)}', space=vmem, size = 0x12000, scoped, tag = 'internal scratch']
  #allocation2 [shape = 'f32[32,128]{1,0:T(8,128)}', space=vmem, size = 0x4000, scoped, tag = 'scratch operand']
  %s0 = inlined_call_operand.vmem [shape: f32[32,128], index: 0, kind: input, shape index: {}]
  %s1 = inlined_call_operand.vmem [shape: f32[128,128], index: 1, kind: input, shape index: {}]
  %s2 = inlined_call_operand.vmem [shape: f32[1,128], index: 2, kind: input, shape index: {}]
  %s3 = inlined_call_operand.vmem [shape: f32[32,128], index: 3, kind: input, shape index: {}]
  %s4 = inlined_call_operand.vmem [shape: f32[32,1], index: 4, kind: input, shape index: {}]
  %s5 = inlined_call_operand.vmem [shape: f32[2], index: 5, kind: input, shape index: {}]
  %s6 = inlined_call_operand.vmem [shape: f32[32,128], index: 6, kind: output, shape index: {}]
  %s7 = sld [smem:[#allocation0]]
  $region46: #{encoder_layer_forward.7} parent=0
    _
  %s9 = ssub.s32 1, %s7
  %s10 = scalar_select 0, %s9, %s7
  $region1: #{encoder_layer_forward.7} parent=0
    #allocation3 [shape = 'u8[512]{0}', space=smem, size = 0x200, scoped, tag = 'input window, operand 5, single buffered']
    #allocation4 [shape = 's32[1]{0}', space=sflag, size = 0x4, scoped, tag = 'scoped memory for encoder_layer_forward.7']
    %11 = vsyncpa [#allocation4], 0
    // Predicated region
    $region2: #{encoder_layer_forward.7} parent=1 // pred_check
      _
    $region3: #{encoder_layer_forward.7} parent=1 // pred_check_branch
      %13 = sbr.rel (0) target = $region5
    $region4: #{encoder_layer_forward.7} parent=1 // pred_region
      _
    $region5: #{encoder_layer_forward.7} parent=1 // pred_fallthru
      _
    // Predicated region
    $region6: #{encoder_layer_forward.7} parent=1 // pred_check
      _
    $region7: #{encoder_layer_forward.7} parent=1 // pred_check_branch
      %15 = sbr.rel (0) target = $region9
    $region8: #{encoder_layer_forward.7} parent=1 // pred_region
      _
    $region9: #{encoder_layer_forward.7} parent=1 // pred_fallthru
      _
    // Predicated region
    $region10: #{encoder_layer_forward.7} parent=1 // pred_check
      _
    $region11: #{encoder_layer_forward.7} parent=1 // pred_check_branch
      %17 = sbr.rel (0) target = $region13
    $region12: #{encoder_layer_forward.7} parent=1 // pred_region
      _
    $region13: #{encoder_layer_forward.7} parent=1 // pred_fallthru
      _
    // Predicated region
    $region14: #{encoder_layer_forward.7} parent=1 // pred_check
      _
    $region15: #{encoder_layer_forward.7} parent=1 // pred_check_branch
      %19 = sbr.rel (0) target = $region17
    $region16: #{encoder_layer_forward.7} parent=1 // pred_region
      _
    $region17: #{encoder_layer_forward.7} parent=1 // pred_fallthru
      _
    // Predicated region
    $region18: #{encoder_layer_forward.7} parent=1 // pred_check
      _
    $region19: #{encoder_layer_forward.7} parent=1 // pred_check_branch
      %21 = sbr.rel (0) target = $region21
    $region20: #{encoder_layer_forward.7} parent=1 // pred_region
      _
    $region21: #{encoder_layer_forward.7} parent=1 // pred_fallthru
      _
    // Predicated region
    $region22: #{encoder_layer_forward.7} parent=1 // pred_check
      _
    $region23: #{encoder_layer_forward.7} parent=1 // pred_check_branch
      %23 = sbr.rel (0) target = $region25
    $region24: #{encoder_layer_forward.7} parent=1 // pred_region
      %s25 = ssub.s32 16, 16
      %26 = vsyncadd [#allocation4], %s25
      %s28 = sshll.u32 %s5, 4
      %s29 = int_to_ptr.vmem [resolvable:$true] %s28
      %31 = dma.vmem_to_smem %s29, 16, [#allocation3], [#allocation4]
    $region25: #{encoder_layer_forward.7} parent=1 // pred_fallthru
      _
    // Predicated region
    $region26: #{encoder_layer_forward.7} parent=1 // pred_check
      _
    $region27: #{encoder_layer_forward.7} parent=1 // pred_check_branch
      %33 = sbr.rel (0) target = $region29
    $region28: #{encoder_layer_forward.7} parent=1 // pred_region
      %34 = dma.done [#allocation4], 16
    $region29: #{encoder_layer_forward.7} parent=1 // pred_fallthru
      _
    %35 = sfence
    %p36 = scmp.eq.s32.totalorder 0, 0
    // Predicated region
    $region30: #{encoder_layer_forward.7} parent=1 // pred_check
      %p37 = pneg %p36
    $region31: #{encoder_layer_forward.7} parent=1 // pred_check_branch
      %39 = sbr.rel (%p37) target = $region33
    $region32: #{encoder_layer_forward.7} parent=1 // pred_region
      %40 = vst [vmem:[#allocation2] sm:$0xff] 0.0
      %41 = vst [vmem:[#allocation2 + $0x8] sm:$0xff] 0.0
      %42 = vst [vmem:[#allocation2 + $0x10] sm:$0xff] 0.0
      %43 = vst [vmem:[#allocation2 + $0x18] sm:$0xff] 0.0
    $region33: #{encoder_layer_forward.7} parent=1 // pred_fallthru
      _
    %v44 = vld [vmem:[#allocation2] sm:$0xff]
    %v45 = vld [vmem:[#allocation2 + $0x8] sm:$0xff]
    %v46 = vld [vmem:[#allocation2 + $0x10] sm:$0xff]
    %v47 = vld [vmem:[#allocation2 + $0x18] sm:$0xff]
    %v48 = vld [vmem:[%s0] sm:$0xff]
    %v49 = vld [vmem:[%s0 + $0x8] sm:$0xff]
    %v50 = vld [vmem:[%s0 + $0x10] sm:$0xff]
    %v51 = vld [vmem:[%s0 + $0x18] sm:$0xff]
    %v52 = vld [vmem:[%s1] sm:$0xff]
    %v53 = vld [vmem:[%s1 + $0x8] sm:$0xff]
    %v54 = vld [vmem:[%s1 + $0x10] sm:$0xff]
    %v55 = vld [vmem:[%s1 + $0x18] sm:$0xff]
    %v56 = vld [vmem:[%s1 + $0x20] sm:$0xff]
    %v57 = vld [vmem:[%s1 + $0x28] sm:$0xff]
    %v58 = vld [vmem:[%s1 + $0x30] sm:$0xff]
    %v59 = vld [vmem:[%s1 + $0x38] sm:$0xff]
    %v60 = vld [vmem:[%s1 + $0x40] sm:$0xff]
    %v61 = vld [vmem:[%s1 + $0x48] sm:$0xff]
    %v62 = vld [vmem:[%s1 + $0x50] sm:$0xff]
    %v63 = vld [vmem:[%s1 + $0x58] sm:$0xff]
    %v64 = vld [vmem:[%s1 + $0x60] sm:$0xff]
    %v65 = vld [vmem:[%s1 + $0x68] sm:$0xff]
    %v66 = vld [vmem:[%s1 + $0x70] sm:$0xff]
    %v67 = vld [vmem:[%s1 + $0x78] sm:$0xff]
    %68 = vmatprep.subr.mxu0 0.0
    %69 = vmatpush1.msra.mxu0 %v52
    %70 = vmatprep.subr.mxu0 0.0
    %71 = vmatpush1.msra.mxu0 %v53
    %72 = vmatprep.subr.mxu0 0.0
    %73 = vmatpush1.msra.mxu0 %v54
    %74 = vmatprep.subr.mxu0 0.0
    %75 = vmatpush1.msra.mxu0 %v55
    %76 = vmatprep.subr.mxu0 0.0
    %77 = vmatpush1.msra.mxu0 %v56
    %78 = vmatprep.subr.mxu0 0.0
    %79 = vmatpush1.msra.mxu0 %v57
    %80 = vmatprep.subr.mxu0 0.0
    %81 = vmatpush1.msra.mxu0 %v58
    %82 = vmatprep.subr.mxu0 0.0
    %83 = vmatpush1.msra.mxu0 %v59
    %84 = vmatprep.subr.mxu0 0.0
    %85 = vmatpush1.msra.mxu0 %v60
    %86 = vmatprep.subr.mxu0 0.0
    %87 = vmatpush1.msra.mxu0 %v61
    %88 = vmatprep.subr.mxu0 0.0
    %89 = vmatpush1.msra.mxu0 %v62
    %90 = vmatprep.subr.mxu0 0.0
    %91 = vmatpush1.msra.mxu0 %v63
    %92 = vmatprep.subr.mxu0 0.0
    %93 = vmatpush1.msra.mxu0 %v64
    %94 = vmatprep.subr.mxu0 0.0
    %95 = vmatpush1.msra.mxu0 %v65
    %96 = vmatprep.subr.mxu0 0.0
    %97 = vmatpush1.msra.mxu0 %v66
    %98 = vmatprep.subr.mxu0 0.0
    %99 = vmatpush1.msra.mxu0 %v67
    %100 = vmatprep.subr.mxu0 0.0
    %101 = vmatpush1.msra.mxu0 0.0
    %102 = vmatprep.subr.mxu0 0.0
    %103 = vmatpush1.msra.mxu0 0.0
    %104 = vmatprep.subr.mxu0 0.0
    %105 = vmatpush1.msra.mxu0 0.0
    %106 = vmatprep.subr.mxu0 0.0
    %107 = vmatpush1.msra.mxu0 0.0
    %108 = vmatprep.subr.mxu0 0.0
    %109 = vmatpush1.msra.mxu0 0.0
    %110 = vmatprep.subr.mxu0 0.0
    %111 = vmatpush1.msra.mxu0 0.0
    %112 = vmatprep.subr.mxu0 0.0
    %113 = vmatpush1.msra.mxu0 0.0
    %114 = vmatprep.subr.mxu0 0.0
    %115 = vmatpush1.msra.mxu0 0.0
    %116 = vmatprep.subr.mxu0 0.0
    %117 = vmatpush1.msra.mxu0 0.0
    %118 = vmatprep.subr.mxu0 0.0
    %119 = vmatpush1.msra.mxu0 0.0
    %120 = vmatprep.subr.mxu0 0.0
    %121 = vmatpush1.msra.mxu0 0.0
    %122 = vmatprep.subr.mxu0 0.0
    %123 = vmatpush1.msra.mxu0 0.0
    %124 = vmatprep.subr.mxu0 0.0
    %125 = vmatpush1.msra.mxu0 0.0
    %126 = vmatprep.subr.mxu0 0.0
    %127 = vmatpush1.msra.mxu0 0.0
    %128 = vmatprep.subr.mxu0 0.0
    %129 = vmatpush1.msra.mxu0 0.0
    %130 = vmatprep.subr.mxu0 0.0
    %131 = vmatpush1.msra.mxu0 0.0
    %132 = vmatprep.mubr.f32.mxu0 0.0
    %133 = vmatmul.mubr.f32.gmra.mrb[0].mxu0 %v48
    %v134 = vpop.f32.mrb[0].mxu0
    %v135 = vadd.f32 0.0, %v134
    %v136 = vpop.f32.mrb[0].mxu0
    %137 = vmatprep.mubr.f32.mxu0 0.0
    %138 = vmatmul.mubr.f32.gmra.mrb[0].mxu0 %v49
    %v139 = vpop.f32.mrb[0].mxu0
    %v140 = vadd.f32 0.0, %v139
    %v141 = vpop.f32.mrb[0].mxu0
    %142 = vmatprep.mubr.f32.mxu0 0.0
    %143 = vmatmul.mubr.f32.gmra.mrb[0].mxu0 %v50
    %v144 = vpop.f32.mrb[0].mxu0
    %v145 = vadd.f32 0.0, %v144
    %v146 = vpop.f32.mrb[0].mxu0
    %147 = vmatprep.mubr.f32.mxu0 0.0
    %148 = vmatmul.mubr.f32.gmra.mrb[0].mxu0 %v51
    %v149 = vpop.f32.mrb[0].mxu0
    %v150 = vadd.f32 0.0, %v149
    %v151 = vpop.f32.mrb[0].mxu0
    %152 = vdwg.mxu0
    %v153 = vadd.f32 %v44, %v135
    %v154 = vadd.f32 %v45, %v140
    %v155 = vadd.f32 %v46, %v145
    %v156 = vadd.f32 %v47, %v150
    %157 = vst [vmem:[#allocation2] sm:$0xff] %v153
    %158 = vst [vmem:[#allocation2 + $0x8] sm:$0xff] %v154
    %159 = vst [vmem:[#allocation2 + $0x10] sm:$0xff] %v155
    %160 = vst [vmem:[#allocation2 + $0x18] sm:$0xff] %v156
    // Predicated region
    $region34: #{encoder_layer_forward.7} parent=1 // pred_check
      %p161 = pneg %p36
    $region35: #{encoder_layer_forward.7} parent=1 // pred_check_branch
      %163 = sbr.rel (%p161) target = $region37
    $region36: #{encoder_layer_forward.7} parent=1 // pred_region
      %v164 = vld [vmem:[#allocation2] sm:$0xff]
      %v165 = vld [vmem:[#allocation2 + $0x8] sm:$0xff]
      %v166 = vld [vmem:[#allocation2 + $0x10] sm:$0xff]
      %v167 = vld [vmem:[#allocation2 + $0x18] sm:$0xff]
      %v168 = vld [vmem:[%s2] sm:$0x1]
      %v170 = vlaneseq
      %v171 = vshrl.u32 %v170, 7
      %v172 = vsub.s32 0, %v171
      %v173 = vrot.slane %v168, %v172
      %v175 = vadd.f32 %v164, %v173
      %v176 = vadd.f32 %v165, %v173
      %v177 = vadd.f32 %v166, %v173
      %v178 = vadd.f32 %v167, %v173
      %v179 = vld [vmem:[%s3] sm:$0xff]
      %v180 = vld [vmem:[%s3 + $0x8] sm:$0xff]
      %v181 = vld [vmem:[%s3 + $0x10] sm:$0xff]
      %v182 = vld [vmem:[%s3 + $0x18] sm:$0xff]
      %v183 = vadd.f32 %v175, %v179
      %v184 = vadd.f32 %v176, %v180
      %v185 = vadd.f32 %v177, %v181
      %v186 = vadd.f32 %v178, %v182
      %187 = vadd.xlane.f32.xlu0 %v183
      %v188 = vpop.xlane.xlu0 %187
      %189 = vadd.xlane.f32.xlu0 %v184
      %v190 = vpop.xlane.xlu0 %189
      %191 = vadd.xlane.f32.xlu0 %v185
      %v192 = vpop.xlane.xlu0 %191
      %193 = vadd.xlane.f32.xlu0 %v186
      %v194 = vpop.xlane.xlu0 %193
      %v195 = vrcp.pop 128.0
      %v196 = vmul.f32 %v188, %v195
      %v197 = vmul.f32 %v190, %v195
      %v198 = vmul.f32 %v192, %v195
      %v199 = vmul.f32 %v194, %v195
      %v200 = vsub.f32 %v183, %v196
      %v201 = vsub.f32 %v184, %v197
      %v202 = vsub.f32 %v185, %v198
      %v203 = vsub.f32 %v186, %v199
      %v204 = vmul.f32 %v200, %v200
      %v205 = vmul.f32 %v201, %v201
      %v206 = vmul.f32 %v202, %v202
      %v207 = vmul.f32 %v203, %v203
      %208 = vadd.xlane.f32.xlu0 %v204
      %v209 = vpop.xlane.xlu0 %208
      %210 = vadd.xlane.f32.xlu0 %v205
      %v211 = vpop.xlane.xlu0 %210
      %212 = vadd.xlane.f32.xlu0 %v206
      %v213 = vpop.xlane.xlu0 %212
      %214 = vadd.xlane.f32.xlu0 %v207
      %v215 = vpop.xlane.xlu0 %214
      %v216 = vmul.f32 %v209, 0.007874016
      %v217 = vmul.f32 %v211, 0.007874016
      %v218 = vmul.f32 %v213, 0.007874016
      %v219 = vmul.f32 %v215, 0.007874016
      %v220 = vadd.f32 %v216, 1e-08
      %v221 = vadd.f32 %v217, 1e-08
      %v222 = vadd.f32 %v218, 1e-08
      %v223 = vadd.f32 %v219, 1e-08
      %v224 = vrsqrt.pop %v220
      %v225 = vrsqrt.pop %v221
      %v226 = vrsqrt.pop %v222
      %v227 = vrsqrt.pop %v223
      %v228 = vmul.f32 %v200, %v224
      %v229 = vmul.f32 %v201, %v225
      %v230 = vmul.f32 %v202, %v226
      %v231 = vmul.f32 %v203, %v227
      %s232 = sld [smem:[#allocation3]]
      %v233 = vstv %s232
      %v234 = vmul.f32 %v233, %v228
      %v235 = vmul.f32 %v233, %v229
      %v236 = vmul.f32 %v233, %v230
      %v237 = vmul.f32 %v233, %v231
      %s238 = sld [smem:[#allocation3 + $0x1]]
      %v239 = vstv %s238
      %v240 = vadd.f32 %v234, %v239
      %v241 = vadd.f32 %v235, %v239
      %v242 = vadd.f32 %v236, %v239
      %v243 = vadd.f32 %v237, %v239
      %v244 = vld [vmem:[%s4] sm:$0xff]
      %v245 = vld [vmem:[%s4 + $0x8] sm:$0xff]
      %v246 = vld [vmem:[%s4 + $0x10] sm:$0xff]
      %v247 = vld [vmem:[%s4 + $0x18] sm:$0xff]
      %vm248 = vcmp.ne.f32.partialorder %v244, 0.0
      %vm249 = vcmp.ne.f32.partialorder %v245, 0.0
      %vm250 = vcmp.ne.f32.partialorder %v246, 0.0
      %vm251 = vcmp.ne.f32.partialorder %v247, 0.0
      %v252 = vsel %vm248, 1, 0
      %v253 = vsel %vm249, 1, 0
      %v254 = vsel %vm250, 1, 0
      %v255 = vsel %vm251, 1, 0
      %256 = vset.pattern.permute.xlu0 0
      %257 = vperm.xlu0 %256, %v252
      %v258 = vpop.permute.xlu0 %257
      %259 = vset.pattern.permute.xlu0 0
      %260 = vperm.xlu0 %259, %v253
      %v261 = vpop.permute.xlu0 %260
      %262 = vset.pattern.permute.xlu0 0
      %263 = vperm.xlu0 %262, %v254
      %v264 = vpop.permute.xlu0 %263
      %265 = vset.pattern.permute.xlu0 0
      %266 = vperm.xlu0 %265, %v255
      %v267 = vpop.permute.xlu0 %266
      %vm268 = vcmp.eq.s32.totalorder %v258, 1
      %vm269 = vcmp.eq.s32.totalorder %v261, 1
      %vm270 = vcmp.eq.s32.totalorder %v264, 1
      %vm271 = vcmp.eq.s32.totalorder %v267, 1
      %v272 = vsel %vm268, %v240, 0.0
      %v273 = vsel %vm269, %v241, 0.0
      %v274 = vsel %vm270, %v242, 0.0
      %v275 = vsel %vm271, %v243, 0.0
      %276 = vst [vmem:[%s6] sm:$0xff] %v272
      %277 = vst [vmem:[%s6 + $0x8] sm:$0xff] %v273
      %278 = vst [vmem:[%s6 + $0x10] sm:$0xff] %v274
      %279 = vst [vmem:[%s6 + $0x18] sm:$0xff] %v275
    $region37: #{encoder_layer_forward.7} parent=1 // pred_fallthru
      _
    // Predicated region
    $region38: #{encoder_layer_forward.7} parent=1 // pred_check
      _
    $region39: #{encoder_layer_forward.7} parent=1 // pred_check_branch
      %281 = sbr.rel (0) target = $region41
    $region40: #{encoder_layer_forward.7} parent=1 // pred_region
      _
    $region41: #{encoder_layer_forward.7} parent=1 // pred_fallthru
      _
    // Predicated region
    $region42: #{encoder_layer_forward.7} parent=1 // pred_check
      _
    $region43: #{encoder_layer_forward.7} parent=1 // pred_check_branch
      %283 = sbr.rel (0) target = $region45
    $region44: #{encoder_layer_forward.7} parent=1 // pred_region
      _
    $region45: #{encoder_layer_forward.7} parent=1 // pred_fallthru
      _
    %284 = vsyncpa [#allocation4], 1

// kernel: encoder_layer_forward.6
$region0: #{encoder_layer_forward.6}
  #allocation0 [shape = 'u32[]', space=smem, size = 0x4, offset = 0x4, fixed_abs, tag = 'smem constant byte address 0x4 - core index']
  #allocation1 [shape = 'u32[144,128]{1,0:T(1,128)}', space=vmem, size = 0x12000, scoped, tag = 'internal scratch']
  %s0 = inlined_call_operand.vmem [shape: f32[2,16,384], index: 0, kind: input, shape index: {}, may-alias: {0,1}]
  %s1 = inlined_call_operand.vmem [shape: f32[2,16,384], index: 1, kind: input, shape index: {}, may-alias: {0,1}]
  %s2 = inlined_call_operand.vmem [shape: s32[2,16,16], index: 2, kind: input, shape index: {}]
  %s3 = inlined_call_operand.vmem [shape: f32[2,16,128], index: 3, kind: output, shape index: {}]
  %s4 = sld [smem:[#allocation0]]
  $region83: #{encoder_layer_forward.6} parent=0
    _
  %s6 = ssub.s32 1, %s4
  %s7 = scalar_select 0, %s6, %s4
  $region1: #{encoder_layer_forward.6} parent=0
    #allocation2 [shape = 'u8[16384]{0}', space=vmem, size = 0x4000, scoped, tag = 'input window, operand 0']
    loop: start=0, step=1, limit=4
    $region2: #{encoder_layer_forward.6} parent=1 // loop_pre_header
      _
    $region3: #{encoder_layer_forward.6} parent=1 // loop_header
      %s9 = sphi 0, %s13
      %p10 = scmp.ge.s32.totalorder %s9, 4
      %s16 = sphi 0, %s28
      %s17 = sphi 0, %s24
      %s18 = sphi 0, %s16
      %s19 = sphi 0, %s17
      %s20 = sphi 0, %s18
      %s21 = sphi 0, %s19
      %s33 = sphi 0, %s35
      %s36 = sphi 0, %s33
      %s37 = sphi 0, %s36
      %s53 = sphi 0, %s37
      %s59 = sphi 0, %s61
      %s62 = sphi 0, %s59
      %s63 = sphi 0, %s62
      %s79 = sphi 0, %s63
      %s87 = sphi 0, %s89
      %s90 = sphi 0, %s87
      %s91 = sphi 0, %s90
      %s107 = sphi 0, %s91
      %s115 = sphi 0, %s117
      %s118 = sphi 0, %s115
      %s119 = sphi 0, %s118
      %s135 = sphi 0, %s119
    $region4: #{encoder_layer_forward.6} parent=1 // loop_header_branch
      %12 = sbr.rel (%p10) target = $region8
    $region5: #{encoder_layer_forward.6} parent=1 // loop_body
      %s14 = ssub.s32 %s9, 1
      %s15 = ssub.s32 %s9, 2
      %s22 = sadd.s32 1, %s17
      %p23 = scmp.ge.s32.totalorder %s22, 1
      %s24 = scalar_select %p23, 0, %s22
      %s25 = sadd.s32 1, %s16
      %s26 = scalar_select %p23, %s25, %s16
      %p27 = scmp.ge.s32.totalorder %s26, 2
      %s28 = scalar_select %p27, 0, %s26
      %s29 = ssub.s32 %s16, %s28
      %s30 = ssub.s32 %s17, %s24
      %s31 = sor.u32 %s29, %s30
      %p32 = scmp.eq.s32.totalorder %s31, 0
      %s34 = sadd.s32 %s33, 1
      %s35 = scalar_select %p32, %s33, %s34
      %p38 = pneg %p32
      %p39 = scmp.eq.s32.totalorder %s9, 1
      %p40 = por %p38, %p39
      %p41 = scmp.ne.s32.totalorder %s33, %s36
      %p42 = scmp.eq.s32.totalorder %s9, 0
      %p43 = por %p41, %p42
      %p44 = scmp.ne.s32.totalorder %s33, %s36
      %p45 = scmp.eq.s32.totalorder %s14, 1
      %p46 = por %p44, %p45
      %p47 = scmp.ne.s32.totalorder %s36, %s37
      %p48 = scmp.eq.s32.totalorder %s14, 0
      %p49 = por %p47, %p48
      %p50 = scmp.ne.s32.totalorder %s36, %s37
      %p51 = scmp.eq.s32.totalorder %s15, 1
      %p52 = por %p50, %p51
      %p54 = scmp.ne.s32.totalorder %s37, %s53
      %p55 = scmp.eq.s32.totalorder %s15, 0
      %p56 = por %p54, %p55
      %s57 = ssub.s32 %s16, %s28
      %p58 = scmp.eq.s32.totalorder %s57, 0
      %s60 = sadd.s32 %s59, 1
      %s61 = scalar_select %p58, %s59, %s60
      %p64 = pneg %p58
      %p65 = scmp.eq.s32.totalorder %s9, 1
      %p66 = por %p64, %p65
      %p67 = scmp.ne.s32.totalorder %s59, %s62
      %p68 = scmp.eq.s32.totalorder %s9, 0
      %p69 = por %p67, %p68
      %p70 = scmp.ne.s32.totalorder %s59, %s62
      %p71 = scmp.eq.s32.totalorder %s14, 1
      %p72 = por %p70, %p71
      %p73 = scmp.ne.s32.totalorder %s62, %s63
      %p74 = scmp.eq.s32.totalorder %s14, 0
      %p75 = por %p73, %p74
      %p76 = scmp.ne.s32.totalorder %s62, %s63
      %p77 = scmp.eq.s32.totalorder %s15, 1
      %p78 = por %p76, %p77
      %p80 = scmp.ne.s32.totalorder %s63, %s79
      %p81 = scmp.eq.s32.totalorder %s15, 0
      %p82 = por %p80, %p81
      %s83 = ssub.s32 %s16, %s28
      %s84 = ssub.s32 %s17, %s24
      %s85 = sor.u32 %s83, %s84
      %p86 = scmp.eq.s32.totalorder %s85, 0
      %s88 = sadd.s32 %s87, 1
      %s89 = scalar_select %p86, %s87, %s88
      %p92 = pneg %p86
      %p93 = scmp.eq.s32.totalorder %s9, 1
      %p94 = por %p92, %p93
      %p95 = scmp.ne.s32.totalorder %s87, %s90
      %p96 = scmp.eq.s32.totalorder %s9, 0
      %p97 = por %p95, %p96
      %p98 = scmp.ne.s32.totalorder %s87, %s90
      %p99 = scmp.eq.s32.totalorder %s14, 1
      %p100 = por %p98, %p99
      %p101 = scmp.ne.s32.totalorder %s90, %s91
      %p102 = scmp.eq.s32.totalorder %s14, 0
      %p103 = por %p101, %p102
      %p104 = scmp.ne.s32.totalorder %s90, %s91
      %p105 = scmp.eq.s32.totalorder %s15, 1
      %p106 = por %p104, %p105
      %p108 = scmp.ne.s32.totalorder %s91, %s107
      %p109 = scmp.eq.s32.totalorder %s15, 0
      %p110 = por %p108, %p109
      %s111 = ssub.s32 %s16, %s28
      %s112 = ssub.s32 %s17, %s24
      %s113 = sor.u32 %s111, %s112
      %p114 = scmp.eq.s32.totalorder %s113, 0
      %s116 = sadd.s32 %s115, 1
      %s117 = scalar_select %p114, %s115, %s116
      %p120 = pneg %p114
      %p121 = scmp.eq.s32.totalorder %s9, 1
      %p122 = por %p120, %p121
      %p123 = scmp.ne.s32.totalorder %s115, %s118
      %p124 = scmp.eq.s32.totalorder %s9, 0
      %p125 = por %p123, %p124
      %p126 = scmp.ne.s32.totalorder %s115, %s118
      %p127 = scmp.eq.s32.totalorder %s14, 1
      %p128 = por %p126, %p127
      %p129 = scmp.ne.s32.totalorder %s118, %s119
      %p130 = scmp.eq.s32.totalorder %s14, 0
      %p131 = por %p129, %p130
      %p132 = scmp.ne.s32.totalorder %s118, %s119
      %p133 = scmp.eq.s32.totalorder %s15, 1
      %p134 = por %p132, %p133
      %p136 = scmp.ne.s32.totalorder %s119, %s135
      %p137 = scmp.eq.s32.totalorder %s15, 0
      %p138 = por %p136, %p137
      %p139 = scmp.le.s32.totalorder 1, %s9
      %p140 = scmp.lt.s32.totalorder %s9, 3
      %p141 = pnand %p139, %p140
      %p142 = pneg %p141
      // Predicated region
      $region9: #{encoder_layer_forward.6} parent=5 // pred_check
        _
      $region10: #{encoder_layer_forward.6} parent=5 // pred_check_branch
        %144 = sbr.rel (%p141) target = $region12
      $region11: #{encoder_layer_forward.6} parent=5 // pred_region
        %s145 = ssub.s32 %s9, 1
      $region12: #{encoder_layer_forward.6} parent=5 // pred_fallthru
        _
      %p146 = scmp.lt.s32.totalorder %s9, 2
      // Predicated region
      $region13: #{encoder_layer_forward.6} parent=5 // pred_check
        %p147 = pneg %p146
      $region14: #{encoder_layer_forward.6} parent=5 // pred_check_branch
        %149 = sbr.rel (%p147) target = $region16
      $region15: #{encoder_layer_forward.6} parent=5 // pred_region
        // Predicated region
        $region17: #{encoder_layer_forward.6} parent=15 // pred_check
          %p150 = pneg %p43
        $region18: #{encoder_layer_forward.6} parent=15 // pred_check_branch
          %152 = sbr.rel (%p150) target = $region20
        $region19: #{encoder_layer_forward.6} parent=15 // pred_region
          %s153 = sand.u32 %s33, 1
          %s154 = sand.u32 %s33, 1
          %s155 = smul.addr %s154, 16
          %s156 = scalar_lea.vmem [#allocation2], %s155
          %s157 = smul.u32 2, %s17
          %s158 = smul.addr %s157, 3
          %s159 = smul.addr %s16, 6
          %s160 = sadd.s32 %s158, %s159
          %s161 = smul.addr %s160, 8
          %s162 = scalar_lea.vmem %s0, %s161
          // Predicated region
          $region21: #{encoder_layer_forward.6} parent=19 // pred_check
            _
          $region22: #{encoder_layer_forward.6} parent=19 // pred_check_branch
            %164 = sbr.rel (0) target = $region24
          $region23: #{encoder_layer_forward.6} parent=19 // pred_region
            // Predicated region
            $region25: #{encoder_layer_forward.6} parent=23 // pred_check
              _
            $region26: #{encoder_layer_forward.6} parent=23 // pred_check_branch
              %166 = sbr.rel (0) target = $region28
            $region27: #{encoder_layer_forward.6} parent=23 // pred_region
              // Predicated region
              $region40: #{encoder_layer_forward.6} parent=27 // pred_check
                _
              $region41: #{encoder_layer_forward.6} parent=27 // pred_check_branch
                %183 = sbr.rel (0) target = $region43
              $region42: #{encoder_layer_forward.6} parent=27 // pred_region
                loop: start=0, step=1, limit=1
                $region44: #{encoder_layer_forward.6} parent=42 // loop_pre_header
                  _
                $region45: #{encoder_layer_forward.6} parent=42 // loop_header
                  %s185 = sphi 0, %s189
                  %p186 = scmp.ge.s32.totalorder %s185, 1
                  %s190 = sphi %s162, %s162
                  %s191 = sphi %s156, %s156
                $region46: #{encoder_layer_forward.6} parent=42 // loop_header_branch
                  %188 = sbr.rel (%p186) target = $region50
                $region47: #{encoder_layer_forward.6} parent=42 // loop_body
                  %v192 = vld [vmem:[%s190] sm:$0xff]
                  %193 = vst [vmem:[%s191] sm:$0xff] %v192
                  %v194 = vld [vmem:[%s190 + $0x18] sm:$0xff]
                  %195 = vst [vmem:[%s191 + $0x8] sm:$0xff] %v194
                $region48: #{encoder_layer_forward.6} parent=42 // loop_footer
                  %s189 = sadd.s32 1, %s185
                $region49: #{encoder_layer_forward.6} parent=42 // loop_footer_branch
                  %184 = sbr.rel target = $region45
                $region50: #{encoder_layer_forward.6} parent=42 // loop_exit
                  _
              $region43: #{encoder_layer_forward.6} parent=27 // pred_fallthru
                _
              // Predicated region
              $region51: #{encoder_layer_forward.6} parent=27 // pred_check
                _
              $region52: #{encoder_layer_forward.6} parent=27 // pred_check_branch
                %197 = sbr.rel target = $region54
              $region53: #{encoder_layer_forward.6} parent=27 // pred_region
                _
              $region54: #{encoder_layer_forward.6} parent=27 // pred_fallthru
                _
            $region28: #{encoder_layer_forward.6} parent=23 // pred_fallthru
              _
            // Predicated region
            $region29: #{encoder_layer_forward.6} parent=23 // pred_check
              _
            $region30: #{encoder_layer_forward.6} parent=23 // pred_check_branch
              %168 = sbr.rel target = $region32
            $region31: #{encoder_layer_forward.6} parent=23 // pred_region
              loop: start=0, step=1, limit=1
              $region33: #{encoder_layer_forward.6} parent=31 // loop_pre_header
                _
              $region34: #{encoder_layer_forward.6} parent=31 // loop_header
                %s171 = sphi 0, %s175
                %p172 = scmp.ge.s32.totalorder %s171, 1
                %s176 = sphi %s162, %s162
                %s177 = sphi %s156, %s156
              $region35: #{encoder_layer_forward.6} parent=31 // loop_header_branch
                %174 = sbr.rel (%p172) target = $region39
              $region36: #{encoder_layer_forward.6} parent=31 // loop_body
                %v178 = vld [vmem:[%s176] sm:$0xff]
                %179 = vst [vmem:[%s177] sm:$0xff] %v178
                %v180 = vld [vmem:[%s176 + $0x18] sm:$0xff]
                %181 = vst [vmem:[%s177 + $0x8] sm:$0xff] %v180
              $region37: #{encoder_layer_forward.6} parent=31 // loop_footer
                %s175 = sadd.s32 1, %s171
              $region38: #{encoder_layer_forward.6} parent=31 // loop_footer_branch
                %170 = sbr.rel target = $region34
              $region39: #{encoder_layer_forward.6} parent=31 // loop_exit
                _
            $region32: #{encoder_layer_forward.6} parent=23 // pred_fallthru
              _
          $region24: #{encoder_layer_forward.6} parent=19 // pred_fallthru
            _
          %198 = vnop
        $region20: #{encoder_layer_forward.6} parent=15 // pred_fallthru
          _
        // Predicated region
        $region55: #{encoder_layer_forward.6} parent=15 // pred_check
          %p199 = pneg %p69
        $region56: #{encoder_layer_forward.6} parent=15 // pred_check_branch
          %201 = sbr.rel (%p199) target = $region58
        $region57: #{encoder_layer_forward.6} parent=15 // pred_region
          %p202 = scmp.lt.s32.totalorder %s16, 1
          %s203 = scalar_select %p202, %s16, 1
          %s204 = smul.addr %s203, 6
          %s205 = smul.addr %s204, 8
          %s206 = scalar_lea.vmem %s1, %s205
        $region58: #{encoder_layer_forward.6} parent=15 // pred_fallthru
          _
        // Predicated region
        $region59: #{encoder_layer_forward.6} parent=15 // pred_check
          %p207 = pneg %p97
        $region60: #{encoder_layer_forward.6} parent=15 // pred_check_branch
          %209 = sbr.rel (%p207) target = $region62
        $region61: #{encoder_layer_forward.6} parent=15 // pred_region
          %s210 = smul.u32 2, %s17
          %p211 = scmp.lt.s32.totalorder %s16, 1
          %s212 = scalar_select %p211, %s16, 1
          %p213 = scmp.lt.s32.totalorder %s210, 1
          %s214 = scalar_select %p213, %s210, 1
          %s215 = smul.addr %s212, 2
          %s216 = sadd.s32 %s214, %s215
          %s217 = smul.addr %s216, 8
          %s218 = scalar_lea.vmem %s2, %s217
          %s219 = smul.u32 2, %s17
        $region62: #{encoder_layer_forward.6} parent=15 // pred_fallthru
          _
      $region16: #{encoder_layer_forward.6} parent=5 // pred_fallthru
        _
      %p220 = scmp.le.s32.totalorder 1, %s9
      %p221 = scmp.lt.s32.totalorder %s9, 3
      %p222 = pnand %p220, %p221
      %p223 = pneg %p222
      // Predicated region
      $region63: #{encoder_layer_forward.6} parent=5 // pred_check
        _
      $region64: #{encoder_layer_forward.6} parent=5 // pred_check_branch
        %225 = sbr.rel (%p222) target = $region66
      $region65: #{encoder_layer_forward.6} parent=5 // pred_region
        %s226 = ssub.s32 %s9, 1
        %s227 = sand.u32 %s36, 1
        %s228 = sand.u32 %s36, 1
        %s229 = smul.addr %s228, 16
        %s230 = scalar_lea.vmem [#allocation2], %s229
        // Predicated region
        $region67: #{encoder_layer_forward.6} parent=65 // pred_check
          %p231 = pneg %p49
        $region68: #{encoder_layer_forward.6} parent=65 // pred_check_branch
          %233 = sbr.rel (%p231) target = $region70
        $region69: #{encoder_layer_forward.6} parent=65 // pred_region
          _
        $region70: #{encoder_layer_forward.6} parent=65 // pred_fallthru
          _
        %s234 = sand.u32 %s36, 1
        %s235 = sand.u32 %s36, 1
        %s236 = smul.addr %s235, 16
        %s237 = scalar_lea.vmem [#allocation2], %s236
        %p238 = pneg %p49
        %p239 = pneg %p46
        %p240 = scmp.lt.s32.totalorder %s18, 1
        %s241 = scalar_select %p240, %s18, 1
        %s242 = smul.addr %s241, 6
        %s243 = smul.addr %s242, 8
        %s244 = scalar_lea.vmem %s1, %s243
        %p245 = pneg %p75
        %p246 = pneg %p72
        %s247 = smul.u32 2, %s19
        %p248 = scmp.lt.s32.totalorder %s18, 1
        %s249 = scalar_select %p248, %s18, 1
        %p250 = scmp.lt.s32.totalorder %s247, 1
        %s251 = scalar_select %p250, %s247, 1
        %s252 = smul.addr %s249, 2
        %s253 = sadd.s32 %s251, %s252
        %s254 = smul.addr %s253, 8
        %s255 = scalar_lea.vmem %s2, %s254
        %p256 = pneg %p103
        %p257 = pneg %p100
        %p258 = pneg %p131
        %p259 = pneg %p128
        %s260 = smul.u32 2, %s19
        %p261 = scmp.lt.s32.totalorder %s18, 1
        %s262 = scalar_select %p261, %s18, 1
        %p263 = scmp.lt.s32.totalorder %s260, 1
        %s264 = scalar_select %p263, %s260, 1
        %s265 = smul.addr %s262, 2
        %s266 = sadd.s32 %s264, %s265
        %s267 = smul.addr %s266, 8
        %s268 = scalar_lea.vmem %s3, %s267
        %s269 = smul.u32 2, %s19
        %p270 = scmp.lt.s32.totalorder %s18, 1
        %s271 = scalar_select %p270, %s18, 1
        %s272 = smul.addr %s271, 6
        %s273 = smul.addr %s272, 8
        %s274 = scalar_lea.vmem %s1, %s273
        %s275 = smul.u32 2, %s19
        %p276 = scmp.lt.s32.totalorder %s18, 1
        %s277 = scalar_select %p276, %s18, 1
        %p278 = scmp.lt.s32.totalorder %s275, 1
        %s279 = scalar_select %p278, %s275, 1
        %s280 = smul.addr %s277, 2
        %s281 = sadd.s32 %s279, %s280
        %s282 = smul.addr %s281, 8
        %s283 = scalar_lea.vmem %s2, %s282
        %s284 = smul.u32 2, %s19
        %s285 = smul.u32 2, %s19
        %p286 = scmp.lt.s32.totalorder %s18, 1
        %s287 = scalar_select %p286, %s18, 1
        %p288 = scmp.lt.s32.totalorder %s285, 1
        %s289 = scalar_select %p288, %s285, 1
        %s290 = smul.addr %s287, 2
        %s291 = sadd.s32 %s289, %s290
        %s292 = smul.addr %s291, 8
        %s293 = scalar_lea.vmem %s3, %s292
        %s294 = smul.u32 2, %s19
        %v295 = vld [vmem:[%s283] sm:$0xff]
        %v296 = vld [vmem:[%s283 + $0x8] sm:$0xff]
        %vm297 = vcmp.ne.s32.totalorder %v295, 0
        %vm298 = vcmp.ne.s32.totalorder %v296, 0
        %v299 = vld [vmem:[%s230] sm:$0xff]
        %v300 = vld [vmem:[%s230 + $0x8] sm:$0xff]
        %v301 = vmul.f32 %v299, 0.088388346
        %v302 = vmul.f32 %v300, 0.088388346
        %v303 = vld [vmem:[%s274 + $0x8] sm:$0xff]
        %v304 = vld [vmem:[%s274 + $0x20] sm:$0xff]
        %v305 = vld [vmem:[%s274 + $0x10] sm:$0xff]
        %v306 = vld [vmem:[%s274 + $0x28] sm:$0xff]
        %vm307 = vcmask 130048
        %v309 = vsel %vm307, %v301, 0
        %v312 = vsel %vm307, %v302, 0
        %v315 = vsel %vm307, %v303, 0
        %v318 = vsel %vm307, %v304, 0
        %320 = vmatprep.subr.mxu0 0.0
        %321 = vmatpush1.xpose.msra.mxu0 %v315
        %322 = vmatprep.subr.mxu0 0.0
        %323 = vmatpush1.xpose.msra.mxu0 %v318
        %324 = vmatprep.subr.mxu0 0.0
        %325 = vmatpush1.xpose.msra.mxu0 0.0
        %326 = vmatprep.subr.mxu0 0.0
        %327 = vmatpush1.xpose.msra.mxu0 0.0
        %328 = vmatprep.subr.mxu0 0.0
        %329 = vmatpush1.xpose.msra.mxu0 0.0
        %330 = vmatprep.subr.mxu0 0.0
        %331 = vmatpush1.xpose.msra.mxu0 0.0
        %332 = vmatprep.subr.mxu0 0.0
        %333 = vmatpush1.xpose.msra.mxu0 0.0
        %334 = vmatprep.subr.mxu0 0.0
        %335 = vmatpush1.xpose.msra.mxu0 0.0
        %336 = vmatprep.subr.mxu0 0.0
        %337 = vmatpush1.xpose.msra.mxu0 0.0
        %338 = vmatprep.subr.mxu0 0.0
        %339 = vmatpush1.xpose.msra.mxu0 0.0
        %340 = vmatprep.subr.mxu0 0.0
        %341 = vmatpush1.xpose.msra.mxu0 0.0
        %342 = vmatprep.subr.mxu0 0.0
        %343 = vmatpush1.xpose.msra.mxu0 0.0
        %344 = vmatprep.subr.mxu0 0.0
        %345 = vmatpush1.xpose.msra.mxu0 0.0
        %346 = vmatprep.subr.mxu0 0.0
        %347 = vmatpush1.xpose.msra.mxu0 0.0
        %348 = vmatprep.subr.mxu0 0.0
        %349 = vmatpush1.xpose.msra.mxu0 0.0
        %350 = vmatprep.subr.mxu0 0.0
        %351 = vmatpush1.xpose.msra.mxu0 0.0
        %352 = vmatprep.subr.mxu0 0.0
        %353 = vmatpush1.xpose.msra.mxu0 0.0
        %354 = vmatprep.subr.mxu0 0.0
        %355 = vmatpush1.xpose.msra.mxu0 0.0
        %356 = vmatprep.subr.mxu0 0.0
        %357 = vmatpush1.xpose.msra.mxu0 0.0
        %358 = vmatprep.subr.mxu0 0.0
        %359 = vmatpush1.xpose.msra.mxu0 0.0
        %360 = vmatprep.subr.mxu0 0.0
        %361 = vmatpush1.xpose.msra.mxu0 0.0
        %362 = vmatprep.subr.mxu0 0.0
        %363 = vmatpush1.xpose.msra.mxu0 0.0
        %364 = vmatprep.subr.mxu0 0.0
        %365 = vmatpush1.xpose.msra.mxu0 0.0
        %366 = vmatprep.subr.mxu0 0.0
        %367 = vmatpush1.xpose.msra.mxu0 0.0
        %368 = vmatprep.subr.mxu0 0.0
        %369 = vmatpush1.xpose.msra.mxu0 0.0
        %370 = vmatprep.subr.mxu0 0.0
        %371 = vmatpush1.xpose.msra.mxu0 0.0
        %372 = vmatprep.subr.mxu0 0.0
        %373 = vmatpush1.xpose.msra.mxu0 0.0
        %374 = vmatprep.subr.mxu0 0.0
        %375 = vmatpush1.xpose.msra.mxu0 0.0
        %376 = vmatprep.subr.mxu0 0.0
        %377 = vmatpush1.xpose.msra.mxu0 0.0
        %378 = vmatprep.subr.mxu0 0.0
        %379 = vmatpush1.xpose.msra.mxu0 0.0
        %380 = vmatprep.subr.mxu0 0.0
        %381 = vmatpush1.xpose.msra.mxu0 0.0
        %382 = vmatprep.subr.mxu0 0.0
        %383 = vmatpush1.xpose.msra.mxu0 0.0
        %384 = vmatprep.mubr.f32.mxu0 0.0
        %385 = vmatmul.mubr.f32.gmra.mrb[0].mxu0 %v309
        %v386 = vpop.f32.mrb[0].mxu0
        %v387 = vadd.f32 0.0, %v386
        %v388 = vpop.f32.mrb[0].mxu0
        %389 = vmatprep.mubr.f32.mxu0 0.0
        %390 = vmatmul.mubr.f32.gmra.mrb[0].mxu0 %v312
        %v391 = vpop.f32.mrb[0].mxu0
        %v392 = vadd.f32 0.0, %v391
        %v393 = vpop.f32.mrb[0].mxu0
        %394 = vdwg.mxu0
        %v395 = vsel %vm297, -1e+10, %v387
        %v396 = vsel %vm298, -1e+10, %v392
        %v397 = vsel %vm307, %v395, -inf
        %398 = vmax.xlane.f32.xlu0 %v397
        %v399 = vpop.xlane.xlu0 %398
        %v400 = vsel %vm307, %v396, -inf
        %401 = vmax.xlane.f32.xlu0 %v400
        %v402 = vpop.xlane.xlu0 %401
        %v403 = vsub.f32 %v395, %v399
        %v404 = vsub.f32 %v396, %v402
        %v405 = vmul.f32 %v403, 1.442695
        %v406 = vpow.pop %v405
        %v407 = vmul.f32 %v404, 1.442695
        %v408 = vpow.pop %v407
        %v409 = vsel %vm307, %v406, 0.0
        %410 = vadd.xlane.f32.xlu0 %v409
        %v411 = vpop.xlane.xlu0 %410
        %v412 = vsel %vm307, %v408, 0.0
        %413 = vadd.xlane.f32.xlu0 %v412
        %v414 = vpop.xlane.xlu0 %413
        %v415 = vrcp.pop %v411
        %v416 = vrcp.pop %v414
        %v417 = vmul.f32 %v406, %v415
        %v418 = vmul.f32 %v408, %v416
        %v420 = vsel %vm307, %v417, 0
        %v423 = vsel %vm307, %v418, 0
        %425 = vmatprep.subr.mxu0 0.0
        %426 = vmatpush1.msra.mxu0 %v305
        %427 = vmatprep.subr.mxu0 0.0
        %428 = vmatpush1.msra.mxu0 %v306
        %429 = vmatprep.subr.mxu0 0.0
        %430 = vmatpush1.msra.mxu0 0.0
        %431 = vmatprep.subr.mxu0 0.0
        %432 = vmatpush1.msra.mxu0 0.0
        %433 = vmatprep.subr.mxu0 0.0
        %434 = vmatpush1.msra.mxu0 0.0
        %435 = vmatprep.subr.mxu0 0.0
        %436 = vmatpush1.msra.mxu0 0.0
        %437 = vmatprep.subr.mxu0 0.0
        %438 = vmatpush1.msra.mxu0 0.0
        %439 = vmatprep.subr.mxu0 0.0
        %440 = vmatpush1.msra.mxu0 0.0
        %441 = vmatprep.subr.mxu0 0.0
        %442 = vmatpush1.msra.mxu0 0.0
        %443 = vmatprep.subr.mxu0 0.0
        %444 = vmatpush1.msra.mxu0 0.0
        %445 = vmatprep.subr.mxu0 0.0
        %446 = vmatpush1.msra.mxu0 0.0
        %447 = vmatprep.subr.mxu0 0.0
        %448 = vmatpush1.msra.mxu0 0.0
        %449 = vmatprep.subr.mxu0 0.0
        %450 = vmatpush1.msra.mxu0 0.0
        %451 = vmatprep.subr.mxu0 0.0
        %452 = vmatpush1.msra.mxu0 0.0
        %453 = vmatprep.subr.mxu0 0.0
        %454 = vmatpush1.msra.mxu0 0.0
        %455 = vmatprep.subr.mxu0 0.0
        %456 = vmatpush1.msra.mxu0 0.0
        %457 = vmatprep.subr.mxu0 0.0
        %458 = vmatpush1.msra.mxu0 0.0
        %459 = vmatprep.subr.mxu0 0.0
        %460 = vmatpush1.msra.mxu0 0.0
        %461 = vmatprep.subr.mxu0 0.0
        %462 = vmatpush1.msra.mxu0 0.0
        %463 = vmatprep.subr.mxu0 0.0
        %464 = vmatpush1.msra.mxu0 0.0
        %465 = vmatprep.subr.mxu0 0.0
        %466 = vmatpush1.msra.mxu0 0.0
        %467 = vmatprep.subr.mxu0 0.0
        %468 = vmatpush1.msra.mxu0 0.0
        %469 = vmatprep.subr.mxu0 0.0
        %470 = vmatpush1.msra.mxu0 0.0
        %471 = vmatprep.subr.mxu0 0.0
        %472 = vmatpush1.msra.mxu0 0.0
        %473 = vmatprep.subr.mxu0 0.0
        %474 = vmatpush1.msra.mxu0 0.0
        %475 = vmatprep.subr.mxu0 0.0
        %476 = vmatpush1.msra.mxu0 0.0
        %477 = vmatprep.subr.mxu0 0.0
        %478 = vmatpush1.msra.mxu0 0.0
        %479 = vmatprep.subr.mxu0 0.0
        %480 = vmatpush1.msra.mxu0 0.0
        %481 = vmatprep.subr.mxu0 0.0
        %482 = vmatpush1.msra.mxu0 0.0
        %483 = vmatprep.subr.mxu0 0.0
        %484 = vmatpush1.msra.mxu0 0.0
        %485 = vmatprep.subr.mxu0 0.0
        %486 = vmatpush1.msra.mxu0 0.0
        %487 = vmatprep.subr.mxu0 0.0
        %488 = vmatpush1.msra.mxu0 0.0
        %489 = vmatprep.mubr.f32.mxu0 0.0
        %490 = vmatmul.mubr.f32.gmra.mrb[0].mxu0 %v420
        %v491 = vpop.f32.mrb[0].mxu0
        %v492 = vadd.f32 0.0, %v491
        %v493 = vpop.f32.mrb[0].mxu0
        %494 = vmatprep.mubr.f32.mxu0 0.0
        %495 = vmatmul.mubr.f32.gmra.mrb[0].mxu0 %v423
        %v496 = vpop.f32.mrb[0].mxu0
        %v497 = vadd.f32 0.0, %v496
        %v498 = vpop.f32.mrb[0].mxu0
        %499 = vdwg.mxu0
        %500 = vst.msk [vmem:[%s293] sm:$0xff] %vm307, %v492
        %501 = vst.msk [vmem:[%s293 + $0x8] sm:$0xff] %vm307, %v497
        %v502 = vld [vmem:[%s230] sm:$0xff]
        %v503 = vld [vmem:[%s230 + $0x8] sm:$0xff]
        %v504 = vmul.f32 %v502, 0.088388346
        %v505 = vmul.f32 %v503, 0.088388346
        %v506 = vld [vmem:[%s274 + $0x8] sm:$0xff]
        %v507 = vld [vmem:[%s274 + $0x20] sm:$0xff]
        %v508 = vld [vmem:[%s274 + $0x10] sm:$0xff]
        %v509 = vld [vmem:[%s274 + $0x28] sm:$0xff]
        %512 = vrot.lane.b32.xlu0 %v504, 112
        %v513 = vpop.permute.xlu0 %512
        %514 = vrot.lane.b32.xlu0 %v505, 112
        %v515 = vpop.permute.xlu0 %514
        %518 = vrot.lane.b32.xlu0 %v506, 112
        %v519 = vpop.permute.xlu0 %518
        %520 = vrot.lane.b32.xlu0 %v507, 112
        %v521 = vpop.permute.xlu0 %520
        %v522 = vsel %vm307, %v513, 0
        %v524 = vsel %vm307, %v515, 0
        %v526 = vsel %vm307, %v519, 0
        %v528 = vsel %vm307, %v521, 0
        %530 = vmatprep.subr.mxu0 0.0
        %531 = vmatpush1.xpose.msra.mxu0 %v526
        %532 = vmatprep.subr.mxu0 0.0
        %533 = vmatpush1.xpose.msra.mxu0 %v528
        %534 = vmatprep.subr.mxu0 0.0
        %535 = vmatpush1.xpose.msra.mxu0 0.0
        %536 = vmatprep.subr.mxu0 0.0
        %537 = vmatpush1.xpose.msra.mxu0 0.0
        %538 = vmatprep.subr.mxu0 0.0
        %539 = vmatpush1.xpose.msra.mxu0 0.0
        %540 = vmatprep.subr.mxu0 0.0
        %541 = vmatpush1.xpose.msra.mxu0 0.0
        %542 = vmatprep.subr.mxu0 0.0
        %543 = vmatpush1.xpose.msra.mxu0 0.0
        %544 = vmatprep.subr.mxu0 0.0
        %545 = vmatpush1.xpose.msra.mxu0 0.0
        %546 = vmatprep.subr.mxu0 0.0
        %547 = vmatpush1.xpose.msra.mxu0 0.0
        %548 = vmatprep.subr.mxu0 0.0
        %549 = vmatpush1.xpose.msra.mxu0 0.0
        %550 = vmatprep.subr.mxu0 0.0
        %551 = vmatpush1.xpose.msra.mxu0 0.0
        %552 = vmatprep.subr.mxu0 0.0
        %553 = vmatpush1.xpose.msra.mxu0 0.0
        %554 = vmatprep.subr.mxu0 0.0
        %555 = vmatpush1.xpose.msra.mxu0 0.0
        %556 = vmatprep.subr.mxu0 0.0
        %557 = vmatpush1.xpose.msra.mxu0 0.0
        %558 = vmatprep.subr.mxu0 0.0
        %559 = vmatpush1.xpose.msra.mxu0 0.0
        %560 = vmatprep.subr.mxu0 0.0
        %561 = vmatpush1.xpose.msra.mxu0 0.0
        %562 = vmatprep.subr.mxu0 0.0
        %563 = vmatpush1.xpose.msra.mxu0 0.0
        %564 = vmatprep.subr.mxu0 0.0
        %565 = vmatpush1.xpose.msra.mxu0 0.0
        %566 = vmatprep.subr.mxu0 0.0
        %567 = vmatpush1.xpose.msra.mxu0 0.0
        %568 = vmatprep.subr.mxu0 0.0
        %569 = vmatpush1.xpose.msra.mxu0 0.0
        %570 = vmatprep.subr.mxu0 0.0
        %571 = vmatpush1.xpose.msra.mxu0 0.0
        %572 = vmatprep.subr.mxu0 0.0
        %573 = vmatpush1.xpose.msra.mxu0 0.0
        %574 = vmatprep.subr.mxu0 0.0
        %575 = vmatpush1.xpose.msra.mxu0 0.0
        %576 = vmatprep.subr.mxu0 0.0
        %577 = vmatpush1.xpose.msra.mxu0 0.0
        %578 = vmatprep.subr.mxu0 0.0
        %579 = vmatpush1.xpose.msra.mxu0 0.0
        %580 = vmatprep.subr.mxu0 0.0
        %581 = vmatpush1.xpose.msra.mxu0 0.0
        %582 = vmatprep.subr.mxu0 0.0
        %583 = vmatpush1.xpose.msra.mxu0 0.0
        %584 = vmatprep.subr.mxu0 0.0
        %585 = vmatpush1.xpose.msra.mxu0 0.0
        %586 = vmatprep.subr.mxu0 0.0
        %587 = vmatpush1.xpose.msra.mxu0 0.0
        %588 = vmatprep.subr.mxu0 0.0
        %589 = vmatpush1.xpose.msra.mxu0 0.0
        %590 = vmatprep.subr.mxu0 0.0
        %591 = vmatpush1.xpose.msra.mxu0 0.0
        %592 = vmatprep.subr.mxu0 0.0
        %593 = vmatpush1.xpose.msra.mxu0 0.0
        %594 = vmatprep.mubr.f32.mxu0 0.0
        %595 = vmatmul.mubr.f32.gmra.mrb[0].mxu0 %v522
        %v596 = vpop.f32.mrb[0].mxu0
        %v597 = vadd.f32 0.0, %v596
        %v598 = vpop.f32.mrb[0].mxu0
        %599 = vmatprep.mubr.f32.mxu0 0.0
        %600 = vmatmul.mubr.f32.gmra.mrb[0].mxu0 %v524
        %v601 = vpop.f32.mrb[0].mxu0
        %v602 = vadd.f32 0.0, %v601
        %v603 = vpop.f32.mrb[0].mxu0
        %604 = vdwg.mxu0
        %v605 = vsel %vm297, -1e+10, %v597
        %v606 = vsel %vm298, -1e+10, %v602
        %v607 = vsel %vm307, %v605, -inf
        %608 = vmax.xlane.f32.xlu0 %v607
        %v609 = vpop.xlane.xlu0 %608
        %v610 = vsel %vm307, %v606, -inf
        %611 = vmax.xlane.f32.xlu0 %v610
        %v612 = vpop.xlane.xlu0 %611
        %v613 = vsub.f32 %v605, %v609
        %v614 = vsub.f32 %v606, %v612
        %v615 = vmul.f32 %v613, 1.442695
        %v616 = vpow.pop %v615
        %v617 = vmul.f32 %v614, 1.442695
        %v618 = vpow.pop %v617
        %v619 = vsel %vm307, %v616, 0.0
        %620 = vadd.xlane.f32.xlu0 %v619
        %v621 = vpop.xlane.xlu0 %620
        %v622 = vsel %vm307, %v618, 0.0
        %623 = vadd.xlane.f32.xlu0 %v622
        %v624 = vpop.xlane.xlu0 %623
        %v625 = vrcp.pop %v621
        %v626 = vrcp.pop %v624
        %v627 = vmul.f32 %v616, %v625
        %v628 = vmul.f32 %v618, %v626
        %631 = vrot.lane.b32.xlu0 %v508, 112
        %v632 = vpop.permute.xlu0 %631
        %633 = vrot.lane.b32.xlu0 %v509, 112
        %v634 = vpop.permute.xlu0 %633
        %v638 = vsel %vm307, %v627, 0
        %v641 = vsel %vm307, %v628, 0
        %643 = vmatprep.subr.mxu0 0.0
        %644 = vmatpush1.msra.mxu0 %v632
        %645 = vmatprep.subr.mxu0 0.0
        %646 = vmatpush1.msra.mxu0 %v634
        %647 = vmatprep.subr.mxu0 0.0
        %648 = vmatpush1.msra.mxu0 0.0
        %649 = vmatprep.subr.mxu0 0.0
        %650 = vmatpush1.msra.mxu0 0.0
        %651 = vmatprep.subr.mxu0 0.0
        %652 = vmatpush1.msra.mxu0 0.0
        %653 = vmatprep.subr.mxu0 0.0
        %654 = vmatpush1.msra.mxu0 0.0
        %655 = vmatprep.subr.mxu0 0.0
        %656 = vmatpush1.msra.mxu0 0.0
        %657 = vmatprep.subr.mxu0 0.0
        %658 = vmatpush1.msra.mxu0 0.0
        %659 = vmatprep.subr.mxu0 0.0
        %660 = vmatpush1.msra.mxu0 0.0
        %661 = vmatprep.subr.mxu0 0.0
        %662 = vmatpush1.msra.mxu0 0.0
        %663 = vmatprep.subr.mxu0 0.0
        %664 = vmatpush1.msra.mxu0 0.0
        %665 = vmatprep.subr.mxu0 0.0
        %666 = vmatpush1.msra.mxu0 0.0
        %667 = vmatprep.subr.mxu0 0.0
        %668 = vmatpush1.msra.mxu0 0.0
        %669 = vmatprep.subr.mxu0 0.0
        %670 = vmatpush1.msra.mxu0 0.0
        %671 = vmatprep.subr.mxu0 0.0
        %672 = vmatpush1.msra.mxu0 0.0
        %673 = vmatprep.subr.mxu0 0.0
        %674 = vmatpush1.msra.mxu0 0.0
        %675 = vmatprep.subr.mxu0 0.0
        %676 = vmatpush1.msra.mxu0 0.0
        %677 = vmatprep.subr.mxu0 0.0
        %678 = vmatpush1.msra.mxu0 0.0
        %679 = vmatprep.subr.mxu0 0.0
        %680 = vmatpush1.msra.mxu0 0.0
        %681 = vmatprep.subr.mxu0 0.0
        %682 = vmatpush1.msra.mxu0 0.0
        %683 = vmatprep.subr.mxu0 0.0
        %684 = vmatpush1.msra.mxu0 0.0
        %685 = vmatprep.subr.mxu0 0.0
        %686 = vmatpush1.msra.mxu0 0.0
        %687 = vmatprep.subr.mxu0 0.0
        %688 = vmatpush1.msra.mxu0 0.0
        %689 = vmatprep.subr.mxu0 0.0
        %690 = vmatpush1.msra.mxu0 0.0
        %691 = vmatprep.subr.mxu0 0.0
        %692 = vmatpush1.msra.mxu0 0.0
        %693 = vmatprep.subr.mxu0 0.0
        %694 = vmatpush1.msra.mxu0 0.0
        %695 = vmatprep.subr.mxu0 0.0
        %696 = vmatpush1.msra.mxu0 0.0
        %697 = vmatprep.subr.mxu0 0.0
        %698 = vmatpush1.msra.mxu0 0.0
        %699 = vmatprep.subr.mxu0 0.0
        %700 = vmatpush1.msra.mxu0 0.0
        %701 = vmatprep.subr.mxu0 0.0
        %702 = vmatpush1.msra.mxu0 0.0
        %703 = vmatprep.subr.mxu0 0.0
        %704 = vmatpush1.msra.mxu0 0.0
        %705 = vmatprep.subr.mxu0 0.0
        %706 = vmatpush1.msra.mxu0 0.0
        %707 = vmatprep.mubr.f32.mxu0 0.0
        %708 = vmatmul.mubr.f32.gmra.mrb[0].mxu0 %v638
        %v709 = vpop.f32.mrb[0].mxu0
        %v710 = vadd.f32 0.0, %v709
        %v711 = vpop.f32.mrb[0].mxu0
        %712 = vmatprep.mubr.f32.mxu0 0.0
        %713 = vmatmul.mubr.f32.gmra.mrb[0].mxu0 %v641
        %v714 = vpop.f32.mrb[0].mxu0
        %v715 = vadd.f32 0.0, %v714
        %v716 = vpop.f32.mrb[0].mxu0
        %717 = vdwg.mxu0
        %720 = vrot.lane.b32.xlu0 %v710, 16
        %v721 = vpop.permute.xlu0 %720
        %722 = vrot.lane.b32.xlu0 %v715, 16
        %v723 = vpop.permute.xlu0 %722
        %vm726 = vcmask 261248
        %727 = vst.msk [vmem:[%s293] sm:$0xff] %vm726, %v721
        %728 = vst.msk [vmem:[%s293 + $0x8] sm:$0xff] %vm726, %v723
        %v729 = vld [vmem:[%s230] sm:$0xff]
        %v730 = vld [vmem:[%s230 + $0x8] sm:$0xff]
        %v731 = vmul.f32 %v729, 0.088388346
        %v732 = vmul.f32 %v730, 0.088388346
        %v733 = vld [vmem:[%s274 + $0x8] sm:$0xff]
        %v734 = vld [vmem:[%s274 + $0x20] sm:$0xff]
        %v735 = vld [vmem:[%s274 + $0x10] sm:$0xff]
        %v736 = vld [vmem:[%s274 + $0x28] sm:$0xff]
        %739 = vrot.lane.b32.xlu0 %v731, 96
        %v740 = vpop.permute.xlu0 %739
        %741 = vrot.lane.b32.xlu0 %v732, 96
        %v742 = vpop.permute.xlu0 %741
        %745 = vrot.lane.b32.xlu0 %v733, 96
        %v746 = vpop.permute.xlu0 %745
        %747 = vrot.lane.b32.xlu0 %v734, 96
        %v748 = vpop.permute.xlu0 %747
        %v749 = vsel %vm307, %v740, 0
        %v751 = vsel %vm307, %v742, 0
        %v753 = vsel %vm307, %v746, 0
        %v755 = vsel %vm307, %v748, 0
        %757 = vmatprep.subr.mxu0 0.0
        %758 = vmatpush1.xpose.msra.mxu0 %v753
        %759 = vmatprep.subr.mxu0 0.0
        %760 = vmatpush1.xpose.msra.mxu0 %v755
        %761 = vmatprep.subr.mxu0 0.0
        %762 = vmatpush1.xpose.msra.mxu0 0.0
        %763 = vmatprep.subr.mxu0 0.0
        %764 = vmatpush1.xpose.msra.mxu0 0.0
        %765 = vmatprep.subr.mxu0 0.0
        %766 = vmatpush1.xpose.msra.mxu0 0.0
        %767 = vmatprep.subr.mxu0 0.0
        %768 = vmatpush1.xpose.msra.mxu0 0.0
        %769 = vmatprep.subr.mxu0 0.0
        %770 = vmatpush1.xpose.msra.mxu0 0.0
        %771 = vmatprep.subr.mxu0 0.0
        %772 = vmatpush1.xpose.msra.mxu0 0.0
        %773 = vmatprep.subr.mxu0 0.0
        %774 = vmatpush1.xpose.msra.mxu0 0.0
        %775 = vmatprep.subr.mxu0 0.0
        %776 = vmatpush1.xpose.msra.mxu0 0.0
        %777 = vmatprep.subr.mxu0 0.0
        %778 = vmatpush1.xpose.msra.mxu0 0.0
        %779 = vmatprep.subr.mxu0 0.0
        %780 = vmatpush1.xpose.msra.mxu0 0.0
        %781 = vmatprep.subr.mxu0 0.0
        %782 = vmatpush1.xpose.msra.mxu0 0.0
        %783 = vmatprep.subr.mxu0 0.0
        %784 = vmatpush1.xpose.msra.mxu0 0.0
        %785 = vmatprep.subr.mxu0 0.0
        %786 = vmatpush1.xpose.msra.mxu0 0.0
        %787 = vmatprep.subr.mxu0 0.0
        %788 = vmatpush1.xpose.msra.mxu0 0.0
        %789 = vmatprep.subr.mxu0 0.0
        %790 = vmatpush1.xpose.msra.mxu0 0.0
        %791 = vmatprep.subr.mxu0 0.0
        %792 = vmatpush1.xpose.msra.mxu0 0.0
        %793 = vmatprep.subr.mxu0 0.0
        %794 = vmatpush1.xpose.msra.mxu0 0.0
        %795 = vmatprep.subr.mxu0 0.0
        %796 = vmatpush1.xpose.msra.mxu0 0.0
        %797 = vmatprep.subr.mxu0 0.0
        %798 = vmatpush1.xpose.msra.mxu0 0.0
        %799 = vmatprep.subr.mxu0 0.0
        %800 = vmatpush1.xpose.msra.mxu0 0.0
        %801 = vmatprep.subr.mxu0 0.0
        %802 = vmatpush1.xpose.msra.mxu0 0.0
        %803 = vmatprep.subr.mxu0 0.0
        %804 = vmatpush1.xpose.msra.mxu0 0.0
        %805 = vmatprep.subr.mxu0 0.0
        %806 = vmatpush1.xpose.msra.mxu0 0.0
        %807 = vmatprep.subr.mxu0 0.0
        %808 = vmatpush1.xpose.msra.mxu0 0.0
        %809 = vmatprep.subr.mxu0 0.0
        %810 = vmatpush1.xpose.msra.mxu0 0.0
        %811 = vmatprep.subr.mxu0 0.0
        %812 = vmatpush1.xpose.msra.mxu0 0.0
        %813 = vmatprep.subr.mxu0 0.0
        %814 = vmatpush1.xpose.msra.mxu0 0.0
        %815 = vmatprep.subr.mxu0 0.0
        %816 = vmatpush1.xpose.msra.mxu0 0.0
        %817 = vmatprep.subr.mxu0 0.0
        %818 = vmatpush1.xpose.msra.mxu0 0.0
        %819 = vmatprep.subr.mxu0 0.0
        %820 = vmatpush1.xpose.msra.mxu0 0.0
        %821 = vmatprep.mubr.f32.mxu0 0.0
        %822 = vmatmul.mubr.f32.gmra.mrb[0].mxu0 %v749
        %v823 = vpop.f32.mrb[0].mxu0
        %v824 = vadd.f32 0.0, %v823
        %v825 = vpop.f32.mrb[0].mxu0
        %826 = vmatprep.mubr.f32.mxu0 0.0
        %827 = vmatmul.mubr.f32.gmra.mrb[0].mxu0 %v751
        %v828 = vpop.f32.mrb[0].mxu0
        %v829 = vadd.f32 0.0, %v828
        %v830 = vpop.f32.mrb[0].mxu0
        %831 = vdwg.mxu0
        %v832 = vsel %vm297, -1e+10, %v824
        %v833 = vsel %vm298, -1e+10, %v829
        %v834 = vsel %vm307, %v832, -inf
        %835 = vmax.xlane.f32.xlu0 %v834
        %v836 = vpop.xlane.xlu0 %835
        %v837 = vsel %vm307, %v833, -inf
        %838 = vmax.xlane.f32.xlu0 %v837
        %v839 = vpop.xlane.xlu0 %838
        %v840 = vsub.f32 %v832, %v836
        %v841 = vsub.f32 %v833, %v839
        %v842 = vmul.f32 %v840, 1.442695
        %v843 = vpow.pop %v842
        %v844 = vmul.f32 %v841, 1.442695
        %v845 = vpow.pop %v844
        %v846 = vsel %vm307, %v843, 0.0
        %847 = vadd.xlane.f32.xlu0 %v846
        %v848 = vpop.xlane.xlu0 %847
        %v849 = vsel %vm307, %v845, 0.0
        %850 = vadd.xlane.f32.xlu0 %v849
        %v851 = vpop.xlane.xlu0 %850
        %v852 = vrcp.pop %v848
        %v853 = vrcp.pop %v851
        %v854 = vmul.f32 %v843, %v852
        %v855 = vmul.f32 %v845, %v853
        %858 = vrot.lane.b32.xlu0 %v735, 96
        %v859 = vpop.permute.xlu0 %858
        %860 = vrot.lane.b32.xlu0 %v736, 96
        %v861 = vpop.permute.xlu0 %860
        %v865 = vsel %vm307, %v854, 0
        %v868 = vsel %vm307, %v855, 0
        %870 = vmatprep.subr.mxu0 0.0
        %871 = vmatpush1.msra.mxu0 %v859
        %872 = vmatprep.subr.mxu0 0.0
        %873 = vmatpush1.msra.mxu0 %v861
        %874 = vmatprep.subr.mxu0 0.0
        %875 = vmatpush1.msra.mxu0 0.0
        %876 = vmatprep.subr.mxu0 0.0
        %877 = vmatpush1.msra.mxu0 0.0
        %878 = vmatprep.subr.mxu0 0.0
        %879 = vmatpush1.msra.mxu0 0.0
        %880 = vmatprep.subr.mxu0 0.0
        %881 = vmatpush1.msra.mxu0 0.0
        %882 = vmatprep.subr.mxu0 0.0
        %883 = vmatpush1.msra.mxu0 0.0
        %884 = vmatprep.subr.mxu0 0.0
        %885 = vmatpush1.msra.mxu0 0.0
        %886 = vmatprep.subr.mxu0 0.0
        %887 = vmatpush1.msra.mxu0 0.0
        %888 = vmatprep.subr.mxu0 0.0
        %889 = vmatpush1.msra.mxu0 0.0
        %890 = vmatprep.subr.mxu0 0.0
        %891 = vmatpush1.msra.mxu0 0.0
        %892 = vmatprep.subr.mxu0 0.0
        %893 = vmatpush1.msra.mxu0 0.0
        %894 = vmatprep.subr.mxu0 0.0
        %895 = vmatpush1.msra.mxu0 0.0
        %896 = vmatprep.subr.mxu0 0.0
        %897 = vmatpush1.msra.mxu0 0.0
        %898 = vmatprep.subr.mxu0 0.0
        %899 = vmatpush1.msra.mxu0 0.0
        %900 = vmatprep.subr.mxu0 0.0
        %901 = vmatpush1.msra.mxu0 0.0
        %902 = vmatprep.subr.mxu0 0.0
        %903 = vmatpush1.msra.mxu0 0.0
        %904 = vmatprep.subr.mxu0 0.0
        %905 = vmatpush1.msra.mxu0 0.0
        %906 = vmatprep.subr.mxu0 0.0
        %907 = vmatpush1.msra.mxu0 0.0
        %908 = vmatprep.subr.mxu0 0.0
        %909 = vmatpush1.msra.mxu0 0.0
        %910 = vmatprep.subr.mxu0 0.0
        %911 = vmatpush1.msra.mxu0 0.0
        %912 = vmatprep.subr.mxu0 0.0
        %913 = vmatpush1.msra.mxu0 0.0
        %914 = vmatprep.subr.mxu0 0.0
        %915 = vmatpush1.msra.mxu0 0.0
        %916 = vmatprep.subr.mxu0 0.0
        %917 = vmatpush1.msra.mxu0 0.0
        %918 = vmatprep.subr.mxu0 0.0
        %919 = vmatpush1.msra.mxu0 0.0
        %920 = vmatprep.subr.mxu0 0.0
        %921 = vmatpush1.msra.mxu0 0.0
        %922 = vmatprep.subr.mxu0 0.0
        %923 = vmatpush1.msra.mxu0 0.0
        %924 = vmatprep.subr.mxu0 0.0
        %925 = vmatpush1.msra.mxu0 0.0
        %926 = vmatprep.subr.mxu0 0.0
        %927 = vmatpush1.msra.mxu0 0.0
        %928 = vmatprep.subr.mxu0 0.0
        %929 = vmatpush1.msra.mxu0 0.0
        %930 = vmatprep.subr.mxu0 0.0
        %931 = vmatpush1.msra.mxu0 0.0
        %932 = vmatprep.subr.mxu0 0.0
        %933 = vmatpush1.msra.mxu0 0.0
        %934 = vmatprep.mubr.f32.mxu0 0.0
        %935 = vmatmul.mubr.f32.gmra.mrb[0].mxu0 %v865
        %v936 = vpop.f32.mrb[0].mxu0
        %v937 = vadd.f32 0.0, %v936
        %v938 = vpop.f32.mrb[0].mxu0
        %939 = vmatprep.mubr.f32.mxu0 0.0
        %940 = vmatmul.mubr.f32.gmra.mrb[0].mxu0 %v868
        %v941 = vpop.f32.mrb[0].mxu0
        %v942 = vadd.f32 0.0, %v941
        %v943 = vpop.f32.mrb[0].mxu0
        %944 = vdwg.mxu0
        %947 = vrot.lane.b32.xlu0 %v937, 32
        %v948 = vpop.permute.xlu0 %947
        %949 = vrot.lane.b32.xlu0 %v942, 32
        %v950 = vpop.permute.xlu0 %949
        %vm953 = vcmask 392448
        %954 = vst.msk [vmem:[%s293] sm:$0xff] %vm953, %v948
        %955 = vst.msk [vmem:[%s293 + $0x8] sm:$0xff] %vm953, %v950
        %v956 = vld [vmem:[%s230] sm:$0xff]
        %v957 = vld [vmem:[%s230 + $0x8] sm:$0xff]
        %v958 = vmul.f32 %v956, 0.088388346
        %v959 = vmul.f32 %v957, 0.088388346
        %v960 = vld [vmem:[%s274 + $0x8] sm:$0xff]
        %v961 = vld [vmem:[%s274 + $0x20] sm:$0xff]
        %v962 = vld [vmem:[%s274 + $0x10] sm:$0xff]
        %v963 = vld [vmem:[%s274 + $0x28] sm:$0xff]
        %966 = vrot.lane.b32.xlu0 %v958, 80
        %v967 = vpop.permute.xlu0 %966
        %968 = vrot.lane.b32.xlu0 %v959, 80
        %v969 = vpop.permute.xlu0 %968
        %972 = vrot.lane.b32.xlu0 %v960, 80
        %v973 = vpop.permute.xlu0 %972
        %974 = vrot.lane.b32.xlu0 %v961, 80
        %v975 = vpop.permute.xlu0 %974
        %v976 = vsel %vm307, %v967, 0
        %v978 = vsel %vm307, %v969, 0
        %v980 = vsel %vm307, %v973, 0
        %v982 = vsel %vm307, %v975, 0
        %984 = vmatprep.subr.mxu0 0.0
        %985 = vmatpush1.xpose.msra.mxu0 %v980
        %986 = vmatprep.subr.mxu0 0.0
        %987 = vmatpush1.xpose.msra.mxu0 %v982
        %988 = vmatprep.subr.mxu0 0.0
        %989 = vmatpush1.xpose.msra.mxu0 0.0
        %990 = vmatprep.subr.mxu0 0.0
        %991 = vmatpush1.xpose.msra.mxu0 0.0
        %992 = vmatprep.subr.mxu0 0.0
        %993 = vmatpush1.xpose.msra.mxu0 0.0
        %994 = vmatprep.subr.mxu0 0.0
        %995 = vmatpush1.xpose.msra.mxu0 0.0
        %996 = vmatprep.subr.mxu0 0.0
        %997 = vmatpush1.xpose.msra.mxu0 0.0
        %998 = vmatprep.subr.mxu0 0.0
        %999 = vmatpush1.xpose.msra.mxu0 0.0
        %1000 = vmatprep.subr.mxu0 0.0
        %1001 = vmatpush1.xpose.msra.mxu0 0.0
        %1002 = vmatprep.subr.mxu0 0.0
        %1003 = vmatpush1.xpose.msra.mxu0 0.0
        %1004 = vmatprep.subr.mxu0 0.0
        %1005 = vmatpush1.xpose.msra.mxu0 0.0
        %1006 = vmatprep.subr.mxu0 0.0
        %1007 = vmatpush1.xpose.msra.mxu0 0.0
        %1008 = vmatprep.subr.mxu0 0.0
        %1009 = vmatpush1.xpose.msra.mxu0 0.0
        %1010 = vmatprep.subr.mxu0 0.0
        %1011 = vmatpush1.xpose.msra.mxu0 0.0
        %1012 = vmatprep.subr.mxu0 0.0
        %1013 = vmatpush1.xpose.msra.mxu0 0.0
        %1014 = vmatprep.subr.mxu0 0.0
        %1015 = vmatpush1.xpose.msra.mxu0 0.0
        %1016 = vmatprep.subr.mxu0 0.0
        %1017 = vmatpush1.xpose.msra.mxu0 0.0
        %1018 = vmatprep.subr.mxu0 0.0
        %1019 = vmatpush1.xpose.msra.mxu0 0.0
        %1020 = vmatprep.subr.mxu0 0.0
        %1021 = vmatpush1.xpose.msra.mxu0 0.0
        %1022 = vmatprep.subr.mxu0 0.0
        %1023 = vmatpush1.xpose.msra.mxu0 0.0
        %1024 = vmatprep.subr.mxu0 0.0
        %1025 = vmatpush1.xpose.msra.mxu0 0.0
        %1026 = vmatprep.subr.mxu0 0.0
        %1027 = vmatpush1.xpose.msra.mxu0 0.0
        %1028 = vmatprep.subr.mxu0 0.0
        %1029 = vmatpush1.xpose.msra.mxu0 0.0
        %1030 = vmatprep.subr.mxu0 0.0
        %1031 = vmatpush1.xpose.msra.mxu0 0.0
        %1032 = vmatprep.subr.mxu0 0.0
        %1033 = vmatpush1.xpose.msra.mxu0 0.0
        %1034 = vmatprep.subr.mxu0 0.0
        %1035 = vmatpush1.xpose.msra.mxu0 0.0
        %1036 = vmatprep.subr.mxu0 0.0
        %1037 = vmatpush1.xpose.msra.mxu0 0.0
        %1038 = vmatprep.subr.mxu0 0.0
        %1039 = vmatpush1.xpose.msra.mxu0 0.0
        %1040 = vmatprep.subr.mxu0 0.0
        %1041 = vmatpush1.xpose.msra.mxu0 0.0
        %1042 = vmatprep.subr.mxu0 0.0
        %1043 = vmatpush1.xpose.msra.mxu0 0.0
        %1044 = vmatprep.subr.mxu0 0.0
        %1045 = vmatpush1.xpose.msra.mxu0 0.0
        %1046 = vmatprep.subr.mxu0 0.0
        %1047 = vmatpush1.xpose.msra.mxu0 0.0
        %1048 = vmatprep.mubr.f32.mxu0 0.0
        %1049 = vmatmul.mubr.f32.gmra.mrb[0].mxu0 %v976
        %v1050 = vpop.f32.mrb[0].mxu0
        %v1051 = vadd.f32 0.0, %v1050
        %v1052 = vpop.f32.mrb[0].mxu0
        %1053 = vmatprep.mubr.f32.mxu0 0.0
        %1054 = vmatmul.mubr.f32.gmra.mrb[0].mxu0 %v978
        %v1055 = vpop.f32.mrb[0].mxu0
        %v1056 = vadd.f32 0.0, %v1055
        %v1057 = vpop.f32.mrb[0].mxu0
        %1058 = vdwg.mxu0
        %v1059 = vsel %vm297, -1e+10, %v1051
        %v1060 = vsel %vm298, -1e+10, %v1056
        %v1061 = vsel %vm307, %v1059, -inf
        %1062 = vmax.xlane.f32.xlu0 %v1061
        %v1063 = vpop.xlane.xlu0 %1062
        %v1064 = vsel %vm307, %v1060, -inf
        %1065 = vmax.xlane.f32.xlu0 %v1064
        %v1066 = vpop.xlane.xlu0 %1065
        %v1067 = vsub.f32 %v1059, %v1063
        %v1068 = vsub.f32 %v1060, %v1066
        %v1069 = vmul.f32 %v1067, 1.442695
        %v1070 = vpow.pop %v1069
        %v1071 = vmul.f32 %v1068, 1.442695
        %v1072 = vpow.pop %v1071
        %v1073 = vsel %vm307, %v1070, 0.0
        %1074 = vadd.xlane.f32.xlu0 %v1073
        %v1075 = vpop.xlane.xlu0 %1074
        %v1076 = vsel %vm307, %v1072, 0.0
        %1077 = vadd.xlane.f32.xlu0 %v1076
        %v1078 = vpop.xlane.xlu0 %1077
        %v1079 = vrcp.pop %v1075
        %v1080 = vrcp.pop %v1078
        %v1081 = vmul.f32 %v1070, %v1079
        %v1082 = vmul.f32 %v1072, %v1080
        %1085 = vrot.lane.b32.xlu0 %v962, 80
        %v1086 = vpop.permute.xlu0 %1085
        %1087 = vrot.lane.b32.xlu0 %v963, 80
        %v1088 = vpop.permute.xlu0 %1087
        %v1092 = vsel %vm307, %v1081, 0
        %v1095 = vsel %vm307, %v1082, 0
        %1097 = vmatprep.subr.mxu0 0.0
        %1098 = vmatpush1.msra.mxu0 %v1086
        %1099 = vmatprep.subr.mxu0 0.0
        %1100 = vmatpush1.msra.mxu0 %v1088
        %1101 = vmatprep.subr.mxu0 0.0
        %1102 = vmatpush1.msra.mxu0 0.0
        %1103 = vmatprep.subr.mxu0 0.0
        %1104 = vmatpush1.msra.mxu0 0.0
        %1105 = vmatprep.subr.mxu0 0.0
        %1106 = vmatpush1.msra.mxu0 0.0
        %1107 = vmatprep.subr.mxu0 0.0
        %1108 = vmatpush1.msra.mxu0 0.0
        %1109 = vmatprep.subr.mxu0 0.0
        %1110 = vmatpush1.msra.mxu0 0.0
        %1111 = vmatprep.subr.mxu0 0.0
        %1112 = vmatpush1.msra.mxu0 0.0
        %1113 = vmatprep.subr.mxu0 0.0
        %1114 = vmatpush1.msra.mxu0 0.0
        %1115 = vmatprep.subr.mxu0 0.0
        %1116 = vmatpush1.msra.mxu0 0.0
        %1117 = vmatprep.subr.mxu0 0.0
        %1118 = vmatpush1.msra.mxu0 0.0
        %1119 = vmatprep.subr.mxu0 0.0
        %1120 = vmatpush1.msra.mxu0 0.0
        %1121 = vmatprep.subr.mxu0 0.0
        %1122 = vmatpush1.msra.mxu0 0.0
        %1123 = vmatprep.subr.mxu0 0.0
        %1124 = vmatpush1.msra.mxu0 0.0
        %1125 = vmatprep.subr.mxu0 0.0
        %1126 = vmatpush1.msra.mxu0 0.0
        %1127 = vmatprep.subr.mxu0 0.0
        %1128 = vmatpush1.msra.mxu0 0.0
        %1129 = vmatprep.subr.mxu0 0.0
        %1130 = vmatpush1.msra.mxu0 0.0
        %1131 = vmatprep.subr.mxu0 0.0
        %1132 = vmatpush1.msra.mxu0 0.0
        %1133 = vmatprep.subr.mxu0 0.0
        %1134 = vmatpush1.msra.mxu0 0.0
        %1135 = vmatprep.subr.mxu0 0.0
        %1136 = vmatpush1.msra.mxu0 0.0
        %1137 = vmatprep.subr.mxu0 0.0
        %1138 = vmatpush1.msra.mxu0 0.0
        %1139 = vmatprep.subr.mxu0 0.0
        %1140 = vmatpush1.msra.mxu0 0.0
        %1141 = vmatprep.subr.mxu0 0.0
        %1142 = vmatpush1.msra.mxu0 0.0
        %1143 = vmatprep.subr.mxu0 0.0
        %1144 = vmatpush1.msra.mxu0 0.0
        %1145 = vmatprep.subr.mxu0 0.0
        %1146 = vmatpush1.msra.mxu0 0.0
        %1147 = vmatprep.subr.mxu0 0.0
        %1148 = vmatpush1.msra.mxu0 0.0
        %1149 = vmatprep.subr.mxu0 0.0
        %1150 = vmatpush1.msra.mxu0 0.0
        %1151 = vmatprep.subr.mxu0 0.0
        %1152 = vmatpush1.msra.mxu0 0.0
        %1153 = vmatprep.subr.mxu0 0.0
        %1154 = vmatpush1.msra.mxu0 0.0
        %1155 = vmatprep.subr.mxu0 0.0
        %1156 = vmatpush1.msra.mxu0 0.0
        %1157 = vmatprep.subr.mxu0 0.0
        %1158 = vmatpush1.msra.mxu0 0.0
        %1159 = vmatprep.subr.mxu0 0.0
        %1160 = vmatpush1.msra.mxu0 0.0
        %1161 = vmatprep.mubr.f32.mxu0 0.0
        %1162 = vmatmul.mubr.f32.gmra.mrb[0].mxu0 %v1092
        %v1163 = vpop.f32.mrb[0].mxu0
        %v1164 = vadd.f32 0.0, %v1163
        %v1165 = vpop.f32.mrb[0].mxu0
        %1166 = vmatprep.mubr.f32.mxu0 0.0
        %1167 = vmatmul.mubr.f32.gmra.mrb[0].mxu0 %v1095
        %v1168 = vpop.f32.mrb[0].mxu0
        %v1169 = vadd.f32 0.0, %v1168
        %v1170 = vpop.f32.mrb[0].mxu0
        %1171 = vdwg.mxu0
        %1174 = vrot.lane.b32.xlu0 %v1164, 48
        %v1175 = vpop.permute.xlu0 %1174
        %1176 = vrot.lane.b32.xlu0 %v1169, 48
        %v1177 = vpop.permute.xlu0 %1176
        %vm1180 = vcmask 523648
        %1181 = vst.msk [vmem:[%s293] sm:$0xff] %vm1180, %v1175
        %1182 = vst.msk [vmem:[%s293 + $0x8] sm:$0xff] %vm1180, %v1177
        %v1183 = vld [vmem:[%s230] sm:$0xff]
        %v1184 = vld [vmem:[%s230 + $0x8] sm:$0xff]
        %v1185 = vmul.f32 %v1183, 0.088388346
        %v1186 = vmul.f32 %v1184, 0.088388346
        %v1187 = vld [vmem:[%s274 + $0x8] sm:$0xff]
        %v1188 = vld [vmem:[%s274 + $0x20] sm:$0xff]
        %v1189 = vld [vmem:[%s274 + $0x10] sm:$0xff]
        %v1190 = vld [vmem:[%s274 + $0x28] sm:$0xff]
        %1193 = vrot.lane.b32.xlu0 %v1185, 64
        %v1194 = vpop.permute.xlu0 %1193
        %1195 = vrot.lane.b32.xlu0 %v1186, 64
        %v1196 = vpop.permute.xlu0 %1195
        %1199 = vrot.lane.b32.xlu0 %v1187, 64
        %v1200 = vpop.permute.xlu0 %1199
        %1201 = vrot.lane.b32.xlu0 %v1188, 64
        %v1202 = vpop.permute.xlu0 %1201
        %v1203 = vsel %vm307, %v1194, 0
        %v1205 = vsel %vm307, %v1196, 0
        %v1207 = vsel %vm307, %v1200, 0
        %v1209 = vsel %vm307, %v1202, 0
        %1211 = vmatprep.subr.mxu0 0.0
        %1212 = vmatpush1.xpose.msra.mxu0 %v1207
        %1213 = vmatprep.subr.mxu0 0.0
        %1214 = vmatpush1.xpose.msra.mxu0 %v1209
        %1215 = vmatprep.subr.mxu0 0.0
        %1216 = vmatpush1.xpose.msra.mxu0 0.0
        %1217 = vmatprep.subr.mxu0 0.0
        %1218 = vmatpush1.xpose.msra.mxu0 0.0
        %1219 = vmatprep.subr.mxu0 0.0
        %1220 = vmatpush1.xpose.msra.mxu0 0.0
        %1221 = vmatprep.subr.mxu0 0.0
        %1222 = vmatpush1.xpose.msra.mxu0 0.0
        %1223 = vmatprep.subr.mxu0 0.0
        %1224 = vmatpush1.xpose.msra.mxu0 0.0
        %1225 = vmatprep.subr.mxu0 0.0
        %1226 = vmatpush1.xpose.msra.mxu0 0.0
        %1227 = vmatprep.subr.mxu0 0.0
        %1228 = vmatpush1.xpose.msra.mxu0 0.0
        %1229 = vmatprep.subr.mxu0 0.0
        %1230 = vmatpush1.xpose.msra.mxu0 0.0
        %1231 = vmatprep.subr.mxu0 0.0
        %1232 = vmatpush1.xpose.msra.mxu0 0.0
        %1233 = vmatprep.subr.mxu0 0.0
        %1234 = vmatpush1.xpose.msra.mxu0 0.0
        %1235 = vmatprep.subr.mxu0 0.0
        %1236 = vmatpush1.xpose.msra.mxu0 0.0
        %1237 = vmatprep.subr.mxu0 0.0
        %1238 = vmatpush1.xpose.msra.mxu0 0.0
        %1239 = vmatprep.subr.mxu0 0.0
        %1240 = vmatpush1.xpose.msra.mxu0 0.0
        %1241 = vmatprep.subr.mxu0 0.0
        %1242 = vmatpush1.xpose.msra.mxu0 0.0
        %1243 = vmatprep.subr.mxu0 0.0
        %1244 = vmatpush1.xpose.msra.mxu0 0.0
        %1245 = vmatprep.subr.mxu0 0.0
        %1246 = vmatpush1.xpose.msra.mxu0 0.0
        %1247 = vmatprep.subr.mxu0 0.0
        %1248 = vmatpush1.xpose.msra.mxu0 0.0
        %1249 = vmatprep.subr.mxu0 0.0
        %1250 = vmatpush1.xpose.msra.mxu0 0.0
        %1251 = vmatprep.subr.mxu0 0.0
        %1252 = vmatpush1.xpose.msra.mxu0 0.0
        %1253 = vmatprep.subr.mxu0 0.0
        %1254 = vmatpush1.xpose.msra.mxu0 0.0
        %1255 = vmatprep.subr.mxu0 0.0
        %1256 = vmatpush1.xpose.msra.mxu0 0.0
        %1257 = vmatprep.subr.mxu0 0.0
        %1258 = vmatpush1.xpose.msra.mxu0 0.0
        %1259 = vmatprep.subr.mxu0 0.0
        %1260 = vmatpush1.xpose.msra.mxu0 0.0
        %1261 = vmatprep.subr.mxu0 0.0
        %1262 = vmatpush1.xpose.msra.mxu0 0.0
        %1263 = vmatprep.subr.mxu0 0.0
        %1264 = vmatpush1.xpose.msra.mxu0 0.0
        %1265 = vmatprep.subr.mxu0 0.0
        %1266 = vmatpush1.xpose.msra.mxu0 0.0
        %1267 = vmatprep.subr.mxu0 0.0
        %1268 = vmatpush1.xpose.msra.mxu0 0.0
        %1269 = vmatprep.subr.mxu0 0.0
        %1270 = vmatpush1.xpose.msra.mxu0 0.0
        %1271 = vmatprep.subr.mxu0 0.0
        %1272 = vmatpush1.xpose.msra.mxu0 0.0
        %1273 = vmatprep.subr.mxu0 0.0
        %1274 = vmatpush1.xpose.msra.mxu0 0.0
        %1275 = vmatprep.mubr.f32.mxu0 0.0
        %1276 = vmatmul.mubr.f32.gmra.mrb[0].mxu0 %v1203
        %v1277 = vpop.f32.mrb[0].mxu0
        %v1278 = vadd.f32 0.0, %v1277
        %v1279 = vpop.f32.mrb[0].mxu0
        %1280 = vmatprep.mubr.f32.mxu0 0.0
        %1281 = vmatmul.mubr.f32.gmra.mrb[0].mxu0 %v1205
        %v1282 = vpop.f32.mrb[0].mxu0
        %v1283 = vadd.f32 0.0, %v1282
        %v1284 = vpop.f32.mrb[0].mxu0
        %1285 = vdwg.mxu0
        %v1286 = vsel %vm297, -1e+10, %v1278
        %v1287 = vsel %vm298, -1e+10, %v1283
        %v1288 = vsel %vm307, %v1286, -inf
        %1289 = vmax.xlane.f32.xlu0 %v1288
        %v1290 = vpop.xlane.xlu0 %1289
        %v1291 = vsel %vm307, %v1287, -inf
        %1292 = vmax.xlane.f32.xlu0 %v1291
        %v1293 = vpop.xlane.xlu0 %1292
        %v1294 = vsub.f32 %v1286, %v1290
        %v1295 = vsub.f32 %v1287, %v1293
        %v1296 = vmul.f32 %v1294, 1.442695
        %v1297 = vpow.pop %v1296
        %v1298 = vmul.f32 %v1295, 1.442695
        %v1299 = vpow.pop %v1298
        %v1300 = vsel %vm307, %v1297, 0.0
        %1301 = vadd.xlane.f32.xlu0 %v1300
        %v1302 = vpop.xlane.xlu0 %1301
        %v1303 = vsel %vm307, %v1299, 0.0
        %1304 = vadd.xlane.f32.xlu0 %v1303
        %v1305 = vpop.xlane.xlu0 %1304
        %v1306 = vrcp.pop %v1302
        %v1307 = vrcp.pop %v1305
        %v1308 = vmul.f32 %v1297, %v1306
        %v1309 = vmul.f32 %v1299, %v1307
        %1312 = vrot.lane.b32.xlu0 %v1189, 64
        %v1313 = vpop.permute.xlu0 %1312
        %1314 = vrot.lane.b32.xlu0 %v1190, 64
        %v1315 = vpop.permute.xlu0 %1314
        %v1319 = vsel %vm307, %v1308, 0
        %v1322 = vsel %vm307, %v1309, 0
        %1324 = vmatprep.subr.mxu0 0.0
        %1325 = vmatpush1.msra.mxu0 %v1313
        %1326 = vmatprep.subr.mxu0 0.0
        %1327 = vmatpush1.msra.mxu0 %v1315
        %1328 = vmatprep.subr.mxu0 0.0
        %1329 = vmatpush1.msra.mxu0 0.0
        %1330 = vmatprep.subr.mxu0 0.0
        %1331 = vmatpush1.msra.mxu0 0.0
        %1332 = vmatprep.subr.mxu0 0.0
        %1333 = vmatpush1.msra.mxu0 0.0
        %1334 = vmatprep.subr.mxu0 0.0
        %1335 = vmatpush1.msra.mxu0 0.0
        %1336 = vmatprep.subr.mxu0 0.0
        %1337 = vmatpush1.msra.mxu0 0.0
        %1338 = vmatprep.subr.mxu0 0.0
        %1339 = vmatpush1.msra.mxu0 0.0
        %1340 = vmatprep.subr.mxu0 0.0
        %1341 = vmatpush1.msra.mxu0 0.0
        %1342 = vmatprep.subr.mxu0 0.0
        %1343 = vmatpush1.msra.mxu0 0.0
        %1344 = vmatprep.subr.mxu0 0.0
        %1345 = vmatpush1.msra.mxu0 0.0
        %1346 = vmatprep.subr.mxu0 0.0
        %1347 = vmatpush1.msra.mxu0 0.0
        %1348 = vmatprep.subr.mxu0 0.0
        %1349 = vmatpush1.msra.mxu0 0.0
        %1350 = vmatprep.subr.mxu0 0.0
        %1351 = vmatpush1.msra.mxu0 0.0
        %1352 = vmatprep.subr.mxu0 0.0
        %1353 = vmatpush1.msra.mxu0 0.0
        %1354 = vmatprep.subr.mxu0 0.0
        %1355 = vmatpush1.msra.mxu0 0.0
        %1356 = vmatprep.subr.mxu0 0.0
        %1357 = vmatpush1.msra.mxu0 0.0
        %1358 = vmatprep.subr.mxu0 0.0
        %1359 = vmatpush1.msra.mxu0 0.0
        %1360 = vmatprep.subr.mxu0 0.0
        %1361 = vmatpush1.msra.mxu0 0.0
        %1362 = vmatprep.subr.mxu0 0.0
        %1363 = vmatpush1.msra.mxu0 0.0
        %1364 = vmatprep.subr.mxu0 0.0
        %1365 = vmatpush1.msra.mxu0 0.0
        %1366 = vmatprep.subr.mxu0 0.0
        %1367 = vmatpush1.msra.mxu0 0.0
        %1368 = vmatprep.subr.mxu0 0.0
        %1369 = vmatpush1.msra.mxu0 0.0
        %1370 = vmatprep.subr.mxu0 0.0
        %1371 = vmatpush1.msra.mxu0 0.0
        %1372 = vmatprep.subr.mxu0 0.0
        %1373 = vmatpush1.msra.mxu0 0.0
        %1374 = vmatprep.subr.mxu0 0.0
        %1375 = vmatpush1.msra.mxu0 0.0
        %1376 = vmatprep.subr.mxu0 0.0
        %1377 = vmatpush1.msra.mxu0 0.0
        %1378 = vmatprep.subr.mxu0 0.0
        %1379 = vmatpush1.msra.mxu0 0.0
        %1380 = vmatprep.subr.mxu0 0.0
        %1381 = vmatpush1.msra.mxu0 0.0
        %1382 = vmatprep.subr.mxu0 0.0
        %1383 = vmatpush1.msra.mxu0 0.0
        %1384 = vmatprep.subr.mxu0 0.0
        %1385 = vmatpush1.msra.mxu0 0.0
        %1386 = vmatprep.subr.mxu0 0.0
        %1387 = vmatpush1.msra.mxu0 0.0
        %1388 = vmatprep.mubr.f32.mxu0 0.0
        %1389 = vmatmul.mubr.f32.gmra.mrb[0].mxu0 %v1319
        %v1390 = vpop.f32.mrb[0].mxu0
        %v1391 = vadd.f32 0.0, %v1390
        %v1392 = vpop.f32.mrb[0].mxu0
        %1393 = vmatprep.mubr.f32.mxu0 0.0
        %1394 = vmatmul.mubr.f32.gmra.mrb[0].mxu0 %v1322
        %v1395 = vpop.f32.mrb[0].mxu0
        %v1396 = vadd.f32 0.0, %v1395
        %v1397 = vpop.f32.mrb[0].mxu0
        %1398 = vdwg.mxu0
        %1401 = vrot.lane.b32.xlu0 %v1391, 64
        %v1402 = vpop.permute.xlu0 %1401
        %1403 = vrot.lane.b32.xlu0 %v1396, 64
        %v1404 = vpop.permute.xlu0 %1403
        %vm1407 = vcmask 654848
        %1408 = vst.msk [vmem:[%s293] sm:$0xff] %vm1407, %v1402
        %1409 = vst.msk [vmem:[%s293 + $0x8] sm:$0xff] %vm1407, %v1404
        %v1410 = vld [vmem:[%s230] sm:$0xff]
        %v1411 = vld [vmem:[%s230 + $0x8] sm:$0xff]
        %v1412 = vmul.f32 %v1410, 0.088388346
        %v1413 = vmul.f32 %v1411, 0.088388346
        %v1414 = vld [vmem:[%s274 + $0x8] sm:$0xff]
        %v1415 = vld [vmem:[%s274 + $0x20] sm:$0xff]
        %v1416 = vld [vmem:[%s274 + $0x10] sm:$0xff]
        %v1417 = vld [vmem:[%s274 + $0x28] sm:$0xff]
        %1420 = vrot.lane.b32.xlu0 %v1412, 48
        %v1421 = vpop.permute.xlu0 %1420
        %1422 = vrot.lane.b32.xlu0 %v1413, 48
        %v1423 = vpop.permute.xlu0 %1422
        %1426 = vrot.lane.b32.xlu0 %v1414, 48
        %v1427 = vpop.permute.xlu0 %1426
        %1428 = vrot.lane.b32.xlu0 %v1415, 48
        %v1429 = vpop.permute.xlu0 %1428
        %v1430 = vsel %vm307, %v1421, 0
        %v1432 = vsel %vm307, %v1423, 0
        %v1434 = vsel %vm307, %v1427, 0
        %v1436 = vsel %vm307, %v1429, 0
        %1438 = vmatprep.subr.mxu0 0.0
        %1439 = vmatpush1.xpose.msra.mxu0 %v1434
        %1440 = vmatprep.subr.mxu0 0.0
        %1441 = vmatpush1.xpose.msra.mxu0 %v1436
        %1442 = vmatprep.subr.mxu0 0.0
        %1443 = vmatpush1.xpose.msra.mxu0 0.0
        %1444 = vmatprep.subr.mxu0 0.0
        %1445 = vmatpush1.xpose.msra.mxu0 0.0
        %1446 = vmatprep.subr.mxu0 0.0
        %1447 = vmatpush1.xpose.msra.mxu0 0.0
        %1448 = vmatprep.subr.mxu0 0.0
        %1449 = vmatpush1.xpose.msra.mxu0 0.0
        %1450 = vmatprep.subr.mxu0 0.0
        %1451 = vmatpush1.xpose.msra.mxu0 0.0
        %1452 = vmatprep.subr.mxu0 0.0
        %1453 = vmatpush1.xpose.msra.mxu0 0.0
        %1454 = vmatprep.subr.mxu0 0.0
        %1455 = vmatpush1.xpose.msra.mxu0 0.0
        %1456 = vmatprep.subr.mxu0 0.0
        %1457 = vmatpush1.xpose.msra.mxu0 0.0
        %1458 = vmatprep.subr.mxu0 0.0
        %1459 = vmatpush1.xpose.msra.mxu0 0.0
        %1460 = vmatprep.subr.mxu0 0.0
        %1461 = vmatpush1.xpose.msra.mxu0 0.0
        %1462 = vmatprep.subr.mxu0 0.0
        %1463 = vmatpush1.xpose.msra.mxu0 0.0
        %1464 = vmatprep.subr.mxu0 0.0
        %1465 = vmatpush1.xpose.msra.mxu0 0.0
        %1466 = vmatprep.subr.mxu0 0.0
        %1467 = vmatpush1.xpose.msra.mxu0 0.0
        %1468 = vmatprep.subr.mxu0 0.0
        %1469 = vmatpush1.xpose.msra.mxu0 0.0
        %1470 = vmatprep.subr.mxu0 0.0
        %1471 = vmatpush1.xpose.msra.mxu0 0.0
        %1472 = vmatprep.subr.mxu0 0.0
        %1473 = vmatpush1.xpose.msra.mxu0 0.0
        %1474 = vmatprep.subr.mxu0 0.0
        %1475 = vmatpush1.xpose.msra.mxu0 0.0
        %1476 = vmatprep.subr.mxu0 0.0
        %1477 = vmatpush1.xpose.msra.mxu0 0.0
        %1478 = vmatprep.subr.mxu0 0.0
        %1479 = vmatpush1.xpose.msra.mxu0 0.0
        %1480 = vmatprep.subr.mxu0 0.0
        %1481 = vmatpush1.xpose.msra.mxu0 0.0
        %1482 = vmatprep.subr.mxu0 0.0
        %1483 = vmatpush1.xpose.msra.mxu0 0.0
        %1484 = vmatprep.subr.mxu0 0.0
        %1485 = vmatpush1.xpose.msra.mxu0 0.0
        %1486 = vmatprep.subr.mxu0 0.0
        %1487 = vmatpush1.xpose.msra.mxu0 0.0
        %1488 = vmatprep.subr.mxu0 0.0
        %1489 = vmatpush1.xpose.msra.mxu0 0.0
        %1490 = vmatprep.subr.mxu0 0.0
        %1491 = vmatpush1.xpose.msra.mxu0 0.0
        %1492 = vmatprep.subr.mxu0 0.0
        %1493 = vmatpush1.xpose.msra.mxu0 0.0
        %1494 = vmatprep.subr.mxu0 0.0
        %1495 = vmatpush1.xpose.msra.mxu0 0.0
        %1496 = vmatprep.subr.mxu0 0.0
        %1497 = vmatpush1.xpose.msra.mxu0 0.0
        %1498 = vmatprep.subr.mxu0 0.0
        %1499 = vmatpush1.xpose.msra.mxu0 0.0
        %1500 = vmatprep.subr.mxu0 0.0
        %1501 = vmatpush1.xpose.msra.mxu0 0.0
        %1502 = vmatprep.mubr.f32.mxu0 0.0
        %1503 = vmatmul.mubr.f32.gmra.mrb[0].mxu0 %v1430
        %v1504 = vpop.f32.mrb[0].mxu0
        %v1505 = vadd.f32 0.0, %v1504
        %v1506 = vpop.f32.mrb[0].mxu0
        %1507 = vmatprep.mubr.f32.mxu0 0.0
        %1508 = vmatmul.mubr.f32.gmra.mrb[0].mxu0 %v1432
        %v1509 = vpop.f32.mrb[0].mxu0
        %v1510 = vadd.f32 0.0, %v1509
        %v1511 = vpop.f32.mrb[0].mxu0
        %1512 = vdwg.mxu0
        %v1513 = vsel %vm297, -1e+10, %v1505
        %v1514 = vsel %vm298, -1e+10, %v1510
        %v1515 = vsel %vm307, %v1513, -inf
        %1516 = vmax.xlane.f32.xlu0 %v1515
        %v1517 = vpop.xlane.xlu0 %1516
        %v1518 = vsel %vm307, %v1514, -inf
        %1519 = vmax.xlane.f32.xlu0 %v1518
        %v1520 = vpop.xlane.xlu0 %1519
        %v1521 = vsub.f32 %v1513, %v1517
        %v1522 = vsub.f32 %v1514, %v1520
        %v1523 = vmul.f32 %v1521, 1.442695
        %v1524 = vpow.pop %v1523
        %v1525 = vmul.f32 %v1522, 1.442695
        %v1526 = vpow.pop %v1525
        %v1527 = vsel %vm307, %v1524, 0.0
        %1528 = vadd.xlane.f32.xlu0 %v1527
        %v1529 = vpop.xlane.xlu0 %1528
        %v1530 = vsel %vm307, %v1526, 0.0
        %1531 = vadd.xlane.f32.xlu0 %v1530
        %v1532 = vpop.xlane.xlu0 %1531
        %v1533 = vrcp.pop %v1529
        %v1534 = vrcp.pop %v1532
        %v1535 = vmul.f32 %v1524, %v1533
        %v1536 = vmul.f32 %v1526, %v1534
        %1539 = vrot.lane.b32.xlu0 %v1416, 48
        %v1540 = vpop.permute.xlu0 %1539
        %1541 = vrot.lane.b32.xlu0 %v1417, 48
        %v1542 = vpop.permute.xlu0 %1541
        %v1546 = vsel %vm307, %v1535, 0
        %v1549 = vsel %vm307, %v1536, 0
        %1551 = vmatprep.subr.mxu0 0.0
        %1552 = vmatpush1.msra.mxu0 %v1540
        %1553 = vmatprep.subr.mxu0 0.0
        %1554 = vmatpush1.msra.mxu0 %v1542
        %1555 = vmatprep.subr.mxu0 0.0
        %1556 = vmatpush1.msra.mxu0 0.0
        %1557 = vmatprep.subr.mxu0 0.0
        %1558 = vmatpush1.msra.mxu0 0.0
        %1559 = vmatprep.subr.mxu0 0.0
        %1560 = vmatpush1.msra.mxu0 0.0
        %1561 = vmatprep.subr.mxu0 0.0
        %1562 = vmatpush1.msra.mxu0 0.0
        %1563 = vmatprep.subr.mxu0 0.0
        %1564 = vmatpush1.msra.mxu0 0.0
        %1565 = vmatprep.subr.mxu0 0.0
        %1566 = vmatpush1.msra.mxu0 0.0
        %1567 = vmatprep.subr.mxu0 0.0
        %1568 = vmatpush1.msra.mxu0 0.0
        %1569 = vmatprep.subr.mxu0 0.0
        %1570 = vmatpush1.msra.mxu0 0.0
        %1571 = vmatprep.subr.mxu0 0.0
        %1572 = vmatpush1.msra.mxu0 0.0
        %1573 = vmatprep.subr.mxu0 0.0
        %1574 = vmatpush1.msra.mxu0 0.0
        %1575 = vmatprep.subr.mxu0 0.0
        %1576 = vmatpush1.msra.mxu0 0.0
        %1577 = vmatprep.subr.mxu0 0.0
        %1578 = vmatpush1.msra.mxu0 0.0
        %1579 = vmatprep.subr.mxu0 0.0
        %1580 = vmatpush1.msra.mxu0 0.0
        %1581 = vmatprep.subr.mxu0 0.0
        %1582 = vmatpush1.msra.mxu0 0.0
        %1583 = vmatprep.subr.mxu0 0.0
        %1584 = vmatpush1.msra.mxu0 0.0
        %1585 = vmatprep.subr.mxu0 0.0
        %1586 = vmatpush1.msra.mxu0 0.0
        %1587 = vmatprep.subr.mxu0 0.0
        %1588 = vmatpush1.msra.mxu0 0.0
        %1589 = vmatprep.subr.mxu0 0.0
        %1590 = vmatpush1.msra.mxu0 0.0
        %1591 = vmatprep.subr.mxu0 0.0
        %1592 = vmatpush1.msra.mxu0 0.0
        %1593 = vmatprep.subr.mxu0 0.0
        %1594 = vmatpush1.msra.mxu0 0.0
        %1595 = vmatprep.subr.mxu0 0.0
        %1596 = vmatpush1.msra.mxu0 0.0
        %1597 = vmatprep.subr.mxu0 0.0
        %1598 = vmatpush1.msra.mxu0 0.0
        %1599 = vmatprep.subr.mxu0 0.0
        %1600 = vmatpush1.msra.mxu0 0.0
        %1601 = vmatprep.subr.mxu0 0.0
        %1602 = vmatpush1.msra.mxu0 0.0
        %1603 = vmatprep.subr.mxu0 0.0
        %1604 = vmatpush1.msra.mxu0 0.0
        %1605 = vmatprep.subr.mxu0 0.0
        %1606 = vmatpush1.msra.mxu0 0.0
        %1607 = vmatprep.subr.mxu0 0.0
        %1608 = vmatpush1.msra.mxu0 0.0
        %1609 = vmatprep.subr.mxu0 0.0
        %1610 = vmatpush1.msra.mxu0 0.0
        %1611 = vmatprep.subr.mxu0 0.0
        %1612 = vmatpush1.msra.mxu0 0.0
        %1613 = vmatprep.subr.mxu0 0.0
        %1614 = vmatpush1.msra.mxu0 0.0
        %1615 = vmatprep.mubr.f32.mxu0 0.0
        %1616 = vmatmul.mubr.f32.gmra.mrb[0].mxu0 %v1546
        %v1617 = vpop.f32.mrb[0].mxu0
        %v1618 = vadd.f32 0.0, %v1617
        %v1619 = vpop.f32.mrb[0].mxu0
        %1620 = vmatprep.mubr.f32.mxu0 0.0
        %1621 = vmatmul.mubr.f32.gmra.mrb[0].mxu0 %v1549
        %v1622 = vpop.f32.mrb[0].mxu0
        %v1623 = vadd.f32 0.0, %v1622
        %v1624 = vpop.f32.mrb[0].mxu0
        %1625 = vdwg.mxu0
        %1628 = vrot.lane.b32.xlu0 %v1618, 80
        %v1629 = vpop.permute.xlu0 %1628
        %1630 = vrot.lane.b32.xlu0 %v1623, 80
        %v1631 = vpop.permute.xlu0 %1630
        %vm1634 = vcmask 786048
        %1635 = vst.msk [vmem:[%s293] sm:$0xff] %vm1634, %v1629
        %1636 = vst.msk [vmem:[%s293 + $0x8] sm:$0xff] %vm1634, %v1631
        %v1637 = vld [vmem:[%s230] sm:$0xff]
        %v1638 = vld [vmem:[%s230 + $0x8] sm:$0xff]
        %v1639 = vmul.f32 %v1637, 0.088388346
        %v1640 = vmul.f32 %v1638, 0.088388346
        %v1641 = vld [vmem:[%s274 + $0x8] sm:$0xff]
        %v1642 = vld [vmem:[%s274 + $0x20] sm:$0xff]
        %v1643 = vld [vmem:[%s274 + $0x10] sm:$0xff]
        %v1644 = vld [vmem:[%s274 + $0x28] sm:$0xff]
        %1647 = vrot.lane.b32.xlu0 %v1639, 32
        %v1648 = vpop.permute.xlu0 %1647
        %1649 = vrot.lane.b32.xlu0 %v1640, 32
        %v1650 = vpop.permute.xlu0 %1649
        %1653 = vrot.lane.b32.xlu0 %v1641, 32
        %v1654 = vpop.permute.xlu0 %1653
        %1655 = vrot.lane.b32.xlu0 %v1642, 32
        %v1656 = vpop.permute.xlu0 %1655
        %v1657 = vsel %vm307, %v1648, 0
        %v1659 = vsel %vm307, %v1650, 0
        %v1661 = vsel %vm307, %v1654, 0
        %v1663 = vsel %vm307, %v1656, 0
        %1665 = vmatprep.subr.mxu0 0.0
        %1666 = vmatpush1.xpose.msra.mxu0 %v1661
        %1667 = vmatprep.subr.mxu0 0.0
        %1668 = vmatpush1.xpose.msra.mxu0 %v1663
        %1669 = vmatprep.subr.mxu0 0.0
        %1670 = vmatpush1.xpose.msra.mxu0 0.0
        %1671 = vmatprep.subr.mxu0 0.0
        %1672 = vmatpush1.xpose.msra.mxu0 0.0
        %1673 = vmatprep.subr.mxu0 0.0
        %1674 = vmatpush1.xpose.msra.mxu0 0.0
        %1675 = vmatprep.subr.mxu0 0.0
        %1676 = vmatpush1.xpose.msra.mxu0 0.0
        %1677 = vmatprep.subr.mxu0 0.0
        %1678 = vmatpush1.xpose.msra.mxu0 0.0
        %1679 = vmatprep.subr.mxu0 0.0
        %1680 = vmatpush1.xpose.msra.mxu0 0.0
        %1681 = vmatprep.subr.mxu0 0.0
        %1682 = vmatpush1.xpose.msra.mxu0 0.0
        %1683 = vmatprep.subr.mxu0 0.0
        %1684 = vmatpush1.xpose.msra.mxu0 0.0
        %1685 = vmatprep.subr.mxu0 0.0
        %1686 = vmatpush1.xpose.msra.mxu0 0.0
        %1687 = vmatprep.subr.mxu0 0.0
        %1688 = vmatpush1.xpose.msra.mxu0 0.0
        %1689 = vmatprep.subr.mxu0 0.0
        %1690 = vmatpush1.xpose.msra.mxu0 0.0
        %1691 = vmatprep.subr.mxu0 0.0
        %1692 = vmatpush1.xpose.msra.mxu0 0.0
        %1693 = vmatprep.subr.mxu0 0.0
        %1694 = vmatpush1.xpose.msra.mxu0 0.0
        %1695 = vmatprep.subr.mxu0 0.0
        %1696 = vmatpush1.xpose.msra.mxu0 0.0
        %1697 = vmatprep.subr.mxu0 0.0
        %1698 = vmatpush1.xpose.msra.mxu0 0.0
        %1699 = vmatprep.subr.mxu0 0.0
        %1700 = vmatpush1.xpose.msra.mxu0 0.0
        %1701 = vmatprep.subr.mxu0 0.0
        %1702 = vmatpush1.xpose.msra.mxu0 0.0
        %1703 = vmatprep.subr.mxu0 0.0
        %1704 = vmatpush1.xpose.msra.mxu0 0.0
        %1705 = vmatprep.subr.mxu0 0.0
        %1706 = vmatpush1.xpose.msra.mxu0 0.0
        %1707 = vmatprep.subr.mxu0 0.0
        %1708 = vmatpush1.xpose.msra.mxu0 0.0
        %1709 = vmatprep.subr.mxu0 0.0
        %1710 = vmatpush1.xpose.msra.mxu0 0.0
        %1711 = vmatprep.subr.mxu0 0.0
        %1712 = vmatpush1.xpose.msra.mxu0 0.0
        %1713 = vmatprep.subr.mxu0 0.0
        %1714 = vmatpush1.xpose.msra.mxu0 0.0
        %1715 = vmatprep.subr.mxu0 0.0
        %1716 = vmatpush1.xpose.msra.mxu0 0.0
        %1717 = vmatprep.subr.mxu0 0.0
        %1718 = vmatpush1.xpose.msra.mxu0 0.0
        %1719 = vmatprep.subr.mxu0 0.0
        %1720 = vmatpush1.xpose.msra.mxu0 0.0
        %1721 = vmatprep.subr.mxu0 0.0
        %1722 = vmatpush1.xpose.msra.mxu0 0.0
        %1723 = vmatprep.subr.mxu0 0.0
        %1724 = vmatpush1.xpose.msra.mxu0 0.0
        %1725 = vmatprep.subr.mxu0 0.0
        %1726 = vmatpush1.xpose.msra.mxu0 0.0
        %1727 = vmatprep.subr.mxu0 0.0
        %1728 = vmatpush1.xpose.msra.mxu0 0.0
        %1729 = vmatprep.mubr.f32.mxu0 0.0
        %1730 = vmatmul.mubr.f32.gmra.mrb[0].mxu0 %v1657
        %v1731 = vpop.f32.mrb[0].mxu0
        %v1732 = vadd.f32 0.0, %v1731
        %v1733 = vpop.f32.mrb[0].mxu0
        %1734 = vmatprep.mubr.f32.mxu0 0.0
        %1735 = vmatmul.mubr.f32.gmra.mrb[0].mxu0 %v1659
        %v1736 = vpop.f32.mrb[0].mxu0
        %v1737 = vadd.f32 0.0, %v1736
        %v1738 = vpop.f32.mrb[0].mxu0
        %1739 = vdwg.mxu0
        %v1740 = vsel %vm297, -1e+10, %v1732
        %v1741 = vsel %vm298, -1e+10, %v1737
        %v1742 = vsel %vm307, %v1740, -inf
        %1743 = vmax.xlane.f32.xlu0 %v1742
        %v1744 = vpop.xlane.xlu0 %1743
        %v1745 = vsel %vm307, %v1741, -inf
        %1746 = vmax.xlane.f32.xlu0 %v1745
        %v1747 = vpop.xlane.xlu0 %1746
        %v1748 = vsub.f32 %v1740, %v1744
        %v1749 = vsub.f32 %v1741, %v1747
        %v1750 = vmul.f32 %v1748, 1.442695
        %v1751 = vpow.pop %v1750
        %v1752 = vmul.f32 %v1749, 1.442695
        %v1753 = vpow.pop %v1752
        %v1754 = vsel %vm307, %v1751, 0.0
        %1755 = vadd.xlane.f32.xlu0 %v1754
        %v1756 = vpop.xlane.xlu0 %1755
        %v1757 = vsel %vm307, %v1753, 0.0
        %1758 = vadd.xlane.f32.xlu0 %v1757
        %v1759 = vpop.xlane.xlu0 %1758
        %v1760 = vrcp.pop %v1756
        %v1761 = vrcp.pop %v1759
        %v1762 = vmul.f32 %v1751, %v1760
        %v1763 = vmul.f32 %v1753, %v1761
        %1766 = vrot.lane.b32.xlu0 %v1643, 32
        %v1767 = vpop.permute.xlu0 %1766
        %1768 = vrot.lane.b32.xlu0 %v1644, 32
        %v1769 = vpop.permute.xlu0 %1768
        %v1773 = vsel %vm307, %v1762, 0
        %v1776 = vsel %vm307, %v1763, 0
        %1778 = vmatprep.subr.mxu0 0.0
        %1779 = vmatpush1.msra.mxu0 %v1767
        %1780 = vmatprep.subr.mxu0 0.0
        %1781 = vmatpush1.msra.mxu0 %v1769
        %1782 = vmatprep.subr.mxu0 0.0
        %1783 = vmatpush1.msra.mxu0 0.0
        %1784 = vmatprep.subr.mxu0 0.0
        %1785 = vmatpush1.msra.mxu0 0.0
        %1786 = vmatprep.subr.mxu0 0.0
        %1787 = vmatpush1.msra.mxu0 0.0
        %1788 = vmatprep.subr.mxu0 0.0
        %1789 = vmatpush1.msra.mxu0 0.0
        %1790 = vmatprep.subr.mxu0 0.0
        %1791 = vmatpush1.msra.mxu0 0.0
        %1792 = vmatprep.subr.mxu0 0.0
        %1793 = vmatpush1.msra.mxu0 0.0
        %1794 = vmatprep.subr.mxu0 0.0
        %1795 = vmatpush1.msra.mxu0 0.0
        %1796 = vmatprep.subr.mxu0 0.0
        %1797 = vmatpush1.msra.mxu0 0.0
        %1798 = vmatprep.subr.mxu0 0.0
        %1799 = vmatpush1.msra.mxu0 0.0
        %1800 = vmatprep.subr.mxu0 0.0
        %1801 = vmatpush1.msra.mxu0 0.0
        %1802 = vmatprep.subr.mxu0 0.0
        %1803 = vmatpush1.msra.mxu0 0.0
        %1804 = vmatprep.subr.mxu0 0.0
        %1805 = vmatpush1.msra.mxu0 0.0
        %1806 = vmatprep.subr.mxu0 0.0
        %1807 = vmatpush1.msra.mxu0 0.0
        %1808 = vmatprep.subr.mxu0 0.0
        %1809 = vmatpush1.msra.mxu0 0.0
        %1810 = vmatprep.subr.mxu0 0.0
        %1811 = vmatpush1.msra.mxu0 0.0
        %1812 = vmatprep.subr.mxu0 0.0
        %1813 = vmatpush1.msra.mxu0 0.0
        %1814 = vmatprep.subr.mxu0 0.0
        %1815 = vmatpush1.msra.mxu0 0.0
        %1816 = vmatprep.subr.mxu0 0.0
        %1817 = vmatpush1.msra.mxu0 0.0
        %1818 = vmatprep.subr.mxu0 0.0
        %1819 = vmatpush1.msra.mxu0 0.0
        %1820 = vmatprep.subr.mxu0 0.0
        %1821 = vmatpush1.msra.mxu0 0.0
        %1822 = vmatprep.subr.mxu0 0.0
        %1823 = vmatpush1.msra.mxu0 0.0
        %1824 = vmatprep.subr.mxu0 0.0
        %1825 = vmatpush1.msra.mxu0 0.0
        %1826 = vmatprep.subr.mxu0 0.0
        %1827 = vmatpush1.msra.mxu0 0.0
        %1828 = vmatprep.subr.mxu0 0.0
        %1829 = vmatpush1.msra.mxu0 0.0
        %1830 = vmatprep.subr.mxu0 0.0
        %1831 = vmatpush1.msra.mxu0 0.0
        %1832 = vmatprep.subr.mxu0 0.0
        %1833 = vmatpush1.msra.mxu0 0.0
        %1834 = vmatprep.subr.mxu0 0.0
        %1835 = vmatpush1.msra.mxu0 0.0
        %1836 = vmatprep.subr.mxu0 0.0
        %1837 = vmatpush1.msra.mxu0 0.0
        %1838 = vmatprep.subr.mxu0 0.0
        %1839 = vmatpush1.msra.mxu0 0.0
        %1840 = vmatprep.subr.mxu0 0.0
        %1841 = vmatpush1.msra.mxu0 0.0
        %1842 = vmatprep.mubr.f32.mxu0 0.0
        %1843 = vmatmul.mubr.f32.gmra.mrb[0].mxu0 %v1773
        %v1844 = vpop.f32.mrb[0].mxu0
        %v1845 = vadd.f32 0.0, %v1844
        %v1846 = vpop.f32.mrb[0].mxu0
        %1847 = vmatprep.mubr.f32.mxu0 0.0
        %1848 = vmatmul.mubr.f32.gmra.mrb[0].mxu0 %v1776
        %v1849 = vpop.f32.mrb[0].mxu0
        %v1850 = vadd.f32 0.0, %v1849
        %v1851 = vpop.f32.mrb[0].mxu0
        %1852 = vdwg.mxu0
        %1855 = vrot.lane.b32.xlu0 %v1845, 96
        %v1856 = vpop.permute.xlu0 %1855
        %1857 = vrot.lane.b32.xlu0 %v1850, 96
        %v1858 = vpop.permute.xlu0 %1857
        %vm1861 = vcmask 917248
        %1862 = vst.msk [vmem:[%s293] sm:$0xff] %vm1861, %v1856
        %1863 = vst.msk [vmem:[%s293 + $0x8] sm:$0xff] %vm1861, %v1858
        %v1864 = vld [vmem:[%s230] sm:$0xff]
        %v1865 = vld [vmem:[%s230 + $0x8] sm:$0xff]
        %v1866 = vmul.f32 %v1864, 0.088388346
        %v1867 = vmul.f32 %v1865, 0.088388346
        %v1868 = vld [vmem:[%s274 + $0x8] sm:$0xff]
        %v1869 = vld [vmem:[%s274 + $0x20] sm:$0xff]
        %v1870 = vld [vmem:[%s274 + $0x10] sm:$0xff]
        %v1871 = vld [vmem:[%s274 + $0x28] sm:$0xff]
        %1874 = vrot.lane.b32.xlu0 %v1866, 16
        %v1875 = vpop.permute.xlu0 %1874
        %1876 = vrot.lane.b32.xlu0 %v1867, 16
        %v1877 = vpop.permute.xlu0 %1876
        %1880 = vrot.lane.b32.xlu0 %v1868, 16
        %v1881 = vpop.permute.xlu0 %1880
        %1882 = vrot.lane.b32.xlu0 %v1869, 16
        %v1883 = vpop.permute.xlu0 %1882
        %v1884 = vsel %vm307, %v1875, 0
        %v1886 = vsel %vm307, %v1877, 0
        %v1888 = vsel %vm307, %v1881, 0
        %v1890 = vsel %vm307, %v1883, 0
        %1892 = vmatprep.subr.mxu0 0.0
        %1893 = vmatpush1.xpose.msra.mxu0 %v1888
        %1894 = vmatprep.subr.mxu0 0.0
        %1895 = vmatpush1.xpose.msra.mxu0 %v1890
        %1896 = vmatprep.subr.mxu0 0.0
        %1897 = vmatpush1.xpose.msra.mxu0 0.0
        %1898 = vmatprep.subr.mxu0 0.0
        %1899 = vmatpush1.xpose.msra.mxu0 0.0
        %1900 = vmatprep.subr.mxu0 0.0
        %1901 = vmatpush1.xpose.msra.mxu0 0.0
        %1902 = vmatprep.subr.mxu0 0.0
        %1903 = vmatpush1.xpose.msra.mxu0 0.0
        %1904 = vmatprep.subr.mxu0 0.0
        %1905 = vmatpush1.xpose.msra.mxu0 0.0
        %1906 = vmatprep.subr.mxu0 0.0
        %1907 = vmatpush1.xpose.msra.mxu0 0.0
        %1908 = vmatprep.subr.mxu0 0.0
        %1909 = vmatpush1.xpose.msra.mxu0 0.0
        %1910 = vmatprep.subr.mxu0 0.0
        %1911 = vmatpush1.xpose.msra.mxu0 0.0
        %1912 = vmatprep.subr.mxu0 0.0
        %1913 = vmatpush1.xpose.msra.mxu0 0.0
        %1914 = vmatprep.subr.mxu0 0.0
        %1915 = vmatpush1.xpose.msra.mxu0 0.0
        %1916 = vmatprep.subr.mxu0 0.0
        %1917 = vmatpush1.xpose.msra.mxu0 0.0
        %1918 = vmatprep.subr.mxu0 0.0
        %1919 = vmatpush1.xpose.msra.mxu0 0.0
        %1920 = vmatprep.subr.mxu0 0.0
        %1921 = vmatpush1.xpose.msra.mxu0 0.0
        %1922 = vmatprep.subr.mxu0 0.0
        %1923 = vmatpush1.xpose.msra.mxu0 0.0
        %1924 = vmatprep.subr.mxu0 0.0
        %1925 = vmatpush1.xpose.msra.mxu0 0.0
        %1926 = vmatprep.subr.mxu0 0.0
        %1927 = vmatpush1.xpose.msra.mxu0 0.0
        %1928 = vmatprep.subr.mxu0 0.0
        %1929 = vmatpush1.xpose.msra.mxu0 0.0
        %1930 = vmatprep.subr.mxu0 0.0
        %1931 = vmatpush1.xpose.msra.mxu0 0.0
        %1932 = vmatprep.subr.mxu0 0.0
        %1933 = vmatpush1.xpose.msra.mxu0 0.0
        %1934 = vmatprep.subr.mxu0 0.0
        %1935 = vmatpush1.xpose.msra.mxu0 0.0
        %1936 = vmatprep.subr.mxu0 0.0
        %1937 = vmatpush1.xpose.msra.mxu0 0.0
        %1938 = vmatprep.subr.mxu0 0.0
        %1939 = vmatpush1.xpose.msra.mxu0 0.0
        %1940 = vmatprep.subr.mxu0 0.0
        %1941 = vmatpush1.xpose.msra.mxu0 0.0
        %1942 = vmatprep.subr.mxu0 0.0
        %1943 = vmatpush1.xpose.msra.mxu0 0.0
        %1944 = vmatprep.subr.mxu0 0.0
        %1945 = vmatpush1.xpose.msra.mxu0 0.0
        %1946 = vmatprep.subr.mxu0 0.0
        %1947 = vmatpush1.xpose.msra.mxu0 0.0
        %1948 = vmatprep.subr.mxu0 0.0
        %1949 = vmatpush1.xpose.msra.mxu0 0.0
        %1950 = vmatprep.subr.mxu0 0.0
        %1951 = vmatpush1.xpose.msra.mxu0 0.0
        %1952 = vmatprep.subr.mxu0 0.0
        %1953 = vmatpush1.xpose.msra.mxu0 0.0
        %1954 = vmatprep.subr.mxu0 0.0
        %1955 = vmatpush1.xpose.msra.mxu0 0.0
        %1956 = vmatprep.mubr.f32.mxu0 0.0
        %1957 = vmatmul.mubr.f32.gmra.mrb[0].mxu0 %v1884
        %v1958 = vpop.f32.mrb[0].mxu0
        %v1959 = vadd.f32 0.0, %v1958
        %v1960 = vpop.f32.mrb[0].mxu0
        %1961 = vmatprep.mubr.f32.mxu0 0.0
        %1962 = vmatmul.mubr.f32.gmra.mrb[0].mxu0 %v1886
        %v1963 = vpop.f32.mrb[0].mxu0
        %v1964 = vadd.f32 0.0, %v1963
        %v1965 = vpop.f32.mrb[0].mxu0
        %1966 = vdwg.mxu0
        %v1967 = vsel %vm297, -1e+10, %v1959
        %v1968 = vsel %vm298, -1e+10, %v1964
        %v1969 = vsel %vm307, %v1967, -inf
        %1970 = vmax.xlane.f32.xlu0 %v1969
        %v1971 = vpop.xlane.xlu0 %1970
        %v1972 = vsel %vm307, %v1968, -inf
        %1973 = vmax.xlane.f32.xlu0 %v1972
        %v1974 = vpop.xlane.xlu0 %1973
        %v1975 = vsub.f32 %v1967, %v1971
        %v1976 = vsub.f32 %v1968, %v1974
        %v1977 = vmul.f32 %v1975, 1.442695
        %v1978 = vpow.pop %v1977
        %v1979 = vmul.f32 %v1976, 1.442695
        %v1980 = vpow.pop %v1979
        %v1981 = vsel %vm307, %v1978, 0.0
        %1982 = vadd.xlane.f32.xlu0 %v1981
        %v1983 = vpop.xlane.xlu0 %1982
        %v1984 = vsel %vm307, %v1980, 0.0
        %1985 = vadd.xlane.f32.xlu0 %v1984
        %v1986 = vpop.xlane.xlu0 %1985
        %v1987 = vrcp.pop %v1983
        %v1988 = vrcp.pop %v1986
        %v1989 = vmul.f32 %v1978, %v1987
        %v1990 = vmul.f32 %v1980, %v1988
        %1993 = vrot.lane.b32.xlu0 %v1870, 16
        %v1994 = vpop.permute.xlu0 %1993
        %1995 = vrot.lane.b32.xlu0 %v1871, 16
        %v1996 = vpop.permute.xlu0 %1995
        %v2000 = vsel %vm307, %v1989, 0
        %v2003 = vsel %vm307, %v1990, 0
        %2005 = vmatprep.subr.mxu0 0.0
        %2006 = vmatpush1.msra.mxu0 %v1994
        %2007 = vmatprep.subr.mxu0 0.0
        %2008 = vmatpush1.msra.mxu0 %v1996
        %2009 = vmatprep.subr.mxu0 0.0
        %2010 = vmatpush1.msra.mxu0 0.0
        %2011 = vmatprep.subr.mxu0 0.0
        %2012 = vmatpush1.msra.mxu0 0.0
        %2013 = vmatprep.subr.mxu0 0.0
        %2014 = vmatpush1.msra.mxu0 0.0
        %2015 = vmatprep.subr.mxu0 0.0
        %2016 = vmatpush1.msra.mxu0 0.0
        %2017 = vmatprep.subr.mxu0 0.0
        %2018 = vmatpush1.msra.mxu0 0.0
        %2019 = vmatprep.subr.mxu0 0.0
        %2020 = vmatpush1.msra.mxu0 0.0
        %2021 = vmatprep.subr.mxu0 0.0
        %2022 = vmatpush1.msra.mxu0 0.0
        %2023 = vmatprep.subr.mxu0 0.0
        %2024 = vmatpush1.msra.mxu0 0.0
        %2025 = vmatprep.subr.mxu0 0.0
        %2026 = vmatpush1.msra.mxu0 0.0
        %2027 = vmatprep.subr.mxu0 0.0
        %2028 = vmatpush1.msra.mxu0 0.0
        %2029 = vmatprep.subr.mxu0 0.0
        %2030 = vmatpush1.msra.mxu0 0.0
        %2031 = vmatprep.subr.mxu0 0.0
        %2032 = vmatpush1.msra.mxu0 0.0
        %2033 = vmatprep.subr.mxu0 0.0
        %2034 = vmatpush1.msra.mxu0 0.0
        %2035 = vmatprep.subr.mxu0 0.0
        %2036 = vmatpush1.msra.mxu0 0.0
        %2037 = vmatprep.subr.mxu0 0.0
        %2038 = vmatpush1.msra.mxu0 0.0
        %2039 = vmatprep.subr.mxu0 0.0
        %2040 = vmatpush1.msra.mxu0 0.0
        %2041 = vmatprep.subr.mxu0 0.0
        %2042 = vmatpush1.msra.mxu0 0.0
        %2043 = vmatprep.subr.mxu0 0.0
        %2044 = vmatpush1.msra.mxu0 0.0
        %2045 = vmatprep.subr.mxu0 0.0
        %2046 = vmatpush1.msra.mxu0 0.0
        %2047 = vmatprep.subr.mxu0 0.0
        %2048 = vmatpush1.msra.mxu0 0.0
        %2049 = vmatprep.subr.mxu0 0.0
        %2050 = vmatpush1.msra.mxu0 0.0
        %2051 = vmatprep.subr.mxu0 0.0
        %2052 = vmatpush1.msra.mxu0 0.0
        %2053 = vmatprep.subr.mxu0 0.0
        %2054 = vmatpush1.msra.mxu0 0.0
        %2055 = vmatprep.subr.mxu0 0.0
        %2056 = vmatpush1.msra.mxu0 0.0
        %2057 = vmatprep.subr.mxu0 0.0
        %2058 = vmatpush1.msra.mxu0 0.0
        %2059 = vmatprep.subr.mxu0 0.0
        %2060 = vmatpush1.msra.mxu0 0.0
        %2061 = vmatprep.subr.mxu0 0.0
        %2062 = vmatpush1.msra.mxu0 0.0
        %2063 = vmatprep.subr.mxu0 0.0
        %2064 = vmatpush1.msra.mxu0 0.0
        %2065 = vmatprep.subr.mxu0 0.0
        %2066 = vmatpush1.msra.mxu0 0.0
        %2067 = vmatprep.subr.mxu0 0.0
        %2068 = vmatpush1.msra.mxu0 0.0
        %2069 = vmatprep.mubr.f32.mxu0 0.0
        %2070 = vmatmul.mubr.f32.gmra.mrb[0].mxu0 %v2000
        %v2071 = vpop.f32.mrb[0].mxu0
        %v2072 = vadd.f32 0.0, %v2071
        %v2073 = vpop.f32.mrb[0].mxu0
        %2074 = vmatprep.mubr.f32.mxu0 0.0
        %2075 = vmatmul.mubr.f32.gmra.mrb[0].mxu0 %v2003
        %v2076 = vpop.f32.mrb[0].mxu0
        %v2077 = vadd.f32 0.0, %v2076
        %v2078 = vpop.f32.mrb[0].mxu0
        %2079 = vdwg.mxu0
        %2082 = vrot.lane.b32.xlu0 %v2072, 112
        %v2083 = vpop.permute.xlu0 %2082
        %2084 = vrot.lane.b32.xlu0 %v2077, 112
        %v2085 = vpop.permute.xlu0 %2084
        %vm2088 = vcmask 1048448
        %2089 = vst.msk [vmem:[%s293] sm:$0xff] %vm2088, %v2083
        %2090 = vst.msk [vmem:[%s293 + $0x8] sm:$0xff] %vm2088, %v2085
        %s2091 = smul.u32 2, %s19
        %p2092 = scmp.lt.s32.totalorder %s18, 1
        %s2093 = scalar_select %p2092, %s18, 1
        %p2094 = scmp.lt.s32.totalorder %s2091, 1
        %s2095 = scalar_select %p2094, %s2091, 1
        %s2096 = smul.addr %s2093, 2
        %s2097 = sadd.s32 %s2095, %s2096
        %s2098 = smul.addr %s2097, 8
        %s2099 = scalar_lea.vmem %s3, %s2098
        // Predicated region
        $region71: #{encoder_layer_forward.6} parent=65 // pred_check
          %p2100 = pneg %p128
        $region72: #{encoder_layer_forward.6} parent=65 // pred_check_branch
          %2102 = sbr.rel (%p2100) target = $region74
        $region73: #{encoder_layer_forward.6} parent=65 // pred_region
          %s2103 = smul.u32 2, %s19
        $region74: #{encoder_layer_forward.6} parent=65 // pred_fallthru
          _
      $region66: #{encoder_layer_forward.6} parent=5 // pred_fallthru
        _
      %p2104 = scmp.le.s32.totalorder 2, %s9
      // Predicated region
      $region75: #{encoder_layer_forward.6} parent=5 // pred_check
        %p2105 = pneg %p2104
      $region76: #{encoder_layer_forward.6} parent=5 // pred_check_branch
        %2107 = sbr.rel (%p2105) target = $region78
      $region77: #{encoder_layer_forward.6} parent=5 // pred_region
        %s2108 = ssub.s32 %s9, 2
        // Predicated region
        $region79: #{encoder_layer_forward.6} parent=77 // pred_check
          %p2109 = pneg %p134
        $region80: #{encoder_layer_forward.6} parent=77 // pred_check_branch
          %2111 = sbr.rel (%p2109) target = $region82
        $region81: #{encoder_layer_forward.6} parent=77 // pred_region
          %s2112 = smul.u32 2, %s21
          %p2113 = scmp.lt.s32.totalorder %s20, 1
          %s2114 = scalar_select %p2113, %s20, 1
          %p2115 = scmp.lt.s32.totalorder %s2112, 1
          %s2116 = scalar_select %p2115, %s2112, 1
          %s2117 = smul.addr %s2114, 2
          %s2118 = sadd.s32 %s2116, %s2117
          %s2119 = smul.addr %s2118, 8
          %s2120 = scalar_lea.vmem %s3, %s2119
        $region82: #{encoder_layer_forward.6} parent=77 // pred_fallthru
          _
      $region78: #{encoder_layer_forward.6} parent=5 // pred_fallthru
        _
    $region6: #{encoder_layer_forward.6} parent=1 // loop_footer
      %s13 = sadd.s32 1, %s9
    $region7: #{encoder_layer_forward.6} parent=1 // loop_footer_branch
      %8 = sbr.rel target = $region3
    $region8: #{encoder_layer_forward.6} parent=1 // loop_exit
      _

// kernel: encoder_layer_forward.8
$region0: #{encoder_layer_forward.8}
  #allocation0 [shape = 'u32[]', space=smem, size = 0x4, offset = 0x4, fixed_abs, tag = 'smem constant byte address 0x4 - core index']
  #allocation1 [shape = 'u32[144,128]{1,0:T(1,128)}', space=vmem, size = 0x12000, scoped, tag = 'internal scratch']
  #allocation2 [shape = 'f32[32,512]{1,0:T(8,128)}', space=vmem, size = 0x10000, scoped, tag = 'scratch operand']
  %s0 = inlined_call_operand.vmem [shape: f32[32,128], index: 0, kind: input, shape index: {}]
  %s1 = inlined_call_operand.vmem [shape: f32[128,512], index: 1, kind: input, shape index: {}]
  %s2 = inlined_call_operand.vmem [shape: f32[1,512], index: 2, kind: input, shape index: {}]
  %s3 = inlined_call_operand.vmem [shape: f32[32,512], index: 3, kind: output, shape index: {}]
  %s4 = sld [smem:[#allocation0]]
  $region30: #{encoder_layer_forward.8} parent=0
    _
  %s6 = ssub.s32 1, %s4
  %s7 = scalar_select 0, %s6, %s4
  // Predicated region
  $region2: #{encoder_layer_forward.8} parent=0 // pred_check
    _
  $region3: #{encoder_layer_forward.8} parent=0 // pred_check_branch
    %9 = sbr.rel (0) target = $region5
  $region4: #{encoder_layer_forward.8} parent=0 // pred_region
    _
  $region5: #{encoder_layer_forward.8} parent=0 // pred_fallthru
    _
  // Predicated region
  $region6: #{encoder_layer_forward.8} parent=0 // pred_check
    _
  $region7: #{encoder_layer_forward.8} parent=0 // pred_check_branch
    %11 = sbr.rel (0) target = $region9
  $region8: #{encoder_layer_forward.8} parent=0 // pred_region
    _
  $region9: #{encoder_layer_forward.8} parent=0 // pred_fallthru
    _
  // Predicated region
  $region10: #{encoder_layer_forward.8} parent=0 // pred_check
    _
  $region11: #{encoder_layer_forward.8} parent=0 // pred_check_branch
    %13 = sbr.rel (0) target = $region13
  $region12: #{encoder_layer_forward.8} parent=0 // pred_region
    _
  $region13: #{encoder_layer_forward.8} parent=0 // pred_fallthru
    _
  %p14 = scmp.eq.s32.totalorder 0, 0
  // Predicated region
  $region14: #{encoder_layer_forward.8} parent=0 // pred_check
    %p15 = pneg %p14
  $region15: #{encoder_layer_forward.8} parent=0 // pred_check_branch
    %17 = sbr.rel (%p15) target = $region17
  $region16: #{encoder_layer_forward.8} parent=0 // pred_region
    %18 = vst [vmem:[#allocation2] sm:$0xff] 0.0
    %19 = vst [vmem:[#allocation2 + $0x8] sm:$0xff] 0.0
    %20 = vst [vmem:[#allocation2 + $0x10] sm:$0xff] 0.0
    %21 = vst [vmem:[#allocation2 + $0x18] sm:$0xff] 0.0
    %22 = vst [vmem:[#allocation2 + $0x20] sm:$0xff] 0.0
    %23 = vst [vmem:[#allocation2 + $0x28] sm:$0xff] 0.0
    %24 = vst [vmem:[#allocation2 + $0x30] sm:$0xff] 0.0
    %25 = vst [vmem:[#allocation2 + $0x38] sm:$0xff] 0.0
    %26 = vst [vmem:[#allocation2 + $0x40] sm:$0xff] 0.0
    %27 = vst [vmem:[#allocation2 + $0x48] sm:$0xff] 0.0
    %28 = vst [vmem:[#allocation2 + $0x50] sm:$0xff] 0.0
    %29 = vst [vmem:[#allocation2 + $0x58] sm:$0xff] 0.0
    %30 = vst [vmem:[#allocation2 + $0x60] sm:$0xff] 0.0
    %31 = vst [vmem:[#allocation2 + $0x68] sm:$0xff] 0.0
    %32 = vst [vmem:[#allocation2 + $0x70] sm:$0xff] 0.0
    %33 = vst [vmem:[#allocation2 + $0x78] sm:$0xff] 0.0
  $region17: #{encoder_layer_forward.8} parent=0 // pred_fallthru
    _
  %v34 = vld [vmem:[#allocation2] sm:$0xff]
  %v35 = vld [vmem:[#allocation2 + $0x8] sm:$0xff]
  %v36 = vld [vmem:[#allocation2 + $0x10] sm:$0xff]
  %v37 = vld [vmem:[#allocation2 + $0x18] sm:$0xff]
  %v38 = vld [vmem:[#allocation2 + $0x20] sm:$0xff]
  %v39 = vld [vmem:[#allocation2 + $0x28] sm:$0xff]
  %v40 = vld [vmem:[#allocation2 + $0x30] sm:$0xff]
  %v41 = vld [vmem:[#allocation2 + $0x38] sm:$0xff]
  %v42 = vld [vmem:[#allocation2 + $0x40] sm:$0xff]
  %v43 = vld [vmem:[#allocation2 + $0x48] sm:$0xff]
  %v44 = vld [vmem:[#allocation2 + $0x50] sm:$0xff]
  %v45 = vld [vmem:[#allocation2 + $0x58] sm:$0xff]
  %v46 = vld [vmem:[#allocation2 + $0x60] sm:$0xff]
  %v47 = vld [vmem:[#allocation2 + $0x68] sm:$0xff]
  %v48 = vld [vmem:[#allocation2 + $0x70] sm:$0xff]
  %v49 = vld [vmem:[#allocation2 + $0x78] sm:$0xff]
  %v50 = vld [vmem:[%s0] sm:$0xff]
  %v51 = vld [vmem:[%s0 + $0x8] sm:$0xff]
  %v52 = vld [vmem:[%s0 + $0x10] sm:$0xff]
  %v53 = vld [vmem:[%s0 + $0x18] sm:$0xff]
  %v54 = vld [vmem:[%s1] sm:$0xff]
  %v55 = vld [vmem:[%s1 + $0x8] sm:$0xff]
  %v56 = vld [vmem:[%s1 + $0x10] sm:$0xff]
  %v57 = vld [vmem:[%s1 + $0x18] sm:$0xff]
  %v58 = vld [vmem:[%s1 + $0x20] sm:$0xff]
  %v59 = vld [vmem:[%s1 + $0x28] sm:$0xff]
  %v60 = vld [vmem:[%s1 + $0x30] sm:$0xff]
  %v61 = vld [vmem:[%s1 + $0x38] sm:$0xff]
  %v62 = vld [vmem:[%s1 + $0x40] sm:$0xff]
  %v63 = vld [vmem:[%s1 + $0x48] sm:$0xff]
  %v64 = vld [vmem:[%s1 + $0x50] sm:$0xff]
  %v65 = vld [vmem:[%s1 + $0x58] sm:$0xff]
  %v66 = vld [vmem:[%s1 + $0x60] sm:$0xff]
  %v67 = vld [vmem:[%s1 + $0x68] sm:$0xff]
  %v68 = vld [vmem:[%s1 + $0x70] sm:$0xff]
  %v69 = vld [vmem:[%s1 + $0x78] sm:$0xff]
  %v70 = vld [vmem:[%s1 + $0x80] sm:$0xff]
  %v71 = vld [vmem:[%s1 + $0x88] sm:$0xff]
  %v72 = vld [vmem:[%s1 + $0x90] sm:$0xff]
  %v73 = vld [vmem:[%s1 + $0x98] sm:$0xff]
  %v74 = vld [vmem:[%s1 + $0xa0] sm:$0xff]
  %v75 = vld [vmem:[%s1 + $0xa8] sm:$0xff]
  %v76 = vld [vmem:[%s1 + $0xb0] sm:$0xff]
  %v77 = vld [vmem:[%s1 + $0xb8] sm:$0xff]
  %v78 = vld [vmem:[%s1 + $0xc0] sm:$0xff]
  %v79 = vld [vmem:[%s1 + $0xc8] sm:$0xff]
  %v80 = vld [vmem:[%s1 + $0xd0] sm:$0xff]
  %v81 = vld [vmem:[%s1 + $0xd8] sm:$0xff]
  %v82 = vld [vmem:[%s1 + $0xe0] sm:$0xff]
  %v83 = vld [vmem:[%s1 + $0xe8] sm:$0xff]
  %v84 = vld [vmem:[%s1 + $0xf0] sm:$0xff]
  %v85 = vld [vmem:[%s1 + $0xf8] sm:$0xff]
  %v86 = vld [vmem:[%s1 + $0x100] sm:$0xff]
  %v87 = vld [vmem:[%s1 + $0x108] sm:$0xff]
  %v88 = vld [vmem:[%s1 + $0x110] sm:$0xff]
  %v89 = vld [vmem:[%s1 + $0x118] sm:$0xff]
  %v90 = vld [vmem:[%s1 + $0x120] sm:$0xff]
  %v91 = vld [vmem:[%s1 + $0x128] sm:$0xff]
  %v92 = vld [vmem:[%s1 + $0x130] sm:$0xff]
  %v93 = vld [vmem:[%s1 + $0x138] sm:$0xff]
  %v94 = vld [vmem:[%s1 + $0x140] sm:$0xff]
  %v95 = vld [vmem:[%s1 + $0x148] sm:$0xff]
  %v96 = vld [vmem:[%s1 + $0x150] sm:$0xff]
  %v97 = vld [vmem:[%s1 + $0x158] sm:$0xff]
  %v98 = vld [vmem:[%s1 + $0x160] sm:$0xff]
  %v99 = vld [vmem:[%s1 + $0x168] sm:$0xff]
  %v100 = vld [vmem:[%s1 + $0x170] sm:$0xff]
  %v101 = vld [vmem:[%s1 + $0x178] sm:$0xff]
  %v102 = vld [vmem:[%s1 + $0x180] sm:$0xff]
  %v103 = vld [vmem:[%s1 + $0x188] sm:$0xff]
  %v104 = vld [vmem:[%s1 + $0x190] sm:$0xff]
  %v105 = vld [vmem:[%s1 + $0x198] sm:$0xff]
  %v106 = vld [vmem:[%s1 + $0x1a0] sm:$0xff]
  %v107 = vld [vmem:[%s1 + $0x1a8] sm:$0xff]
  %v108 = vld [vmem:[%s1 + $0x1b0] sm:$0xff]
  %v109 = vld [vmem:[%s1 + $0x1b8] sm:$0xff]
  %v110 = vld [vmem:[%s1 + $0x1c0] sm:$0xff]
  %v111 = vld [vmem:[%s1 + $0x1c8] sm:$0xff]
  %v112 = vld [vmem:[%s1 + $0x1d0] sm:$0xff]
  %v113 = vld [vmem:[%s1 + $0x1d8] sm:$0xff]
  %v114 = vld [vmem:[%s1 + $0x1e0] sm:$0xff]
  %v115 = vld [vmem:[%s1 + $0x1e8] sm:$0xff]
  %v116 = vld [vmem:[%s1 + $0x1f0] sm:$0xff]
  %v117 = vld [vmem:[%s1 + $0x1f8] sm:$0xff]
  %118 = vmatprep.subr.mxu0 %v55
  %119 = vmatpush1.msra.mxu0 %v54
  %120 = vmatprep.subr.mxu0 %v59
  %121 = vmatpush1.msra.mxu0 %v58
  %122 = vmatprep.subr.mxu0 %v63
  %123 = vmatpush1.msra.mxu0 %v62
  %124 = vmatprep.subr.mxu0 %v67
  %125 = vmatpush1.msra.mxu0 %v66
  %126 = vmatprep.subr.mxu0 %v71
  %127 = vmatpush1.msra.mxu0 %v70
  %128 = vmatprep.subr.mxu0 %v75
  %129 = vmatpush1.msra.mxu0 %v74
  %130 = vmatprep.subr.mxu0 %v79
  %131 = vmatpush1.msra.mxu0 %v78
  %132 = vmatprep.subr.mxu0 %v83
  %133 = vmatpush1.msra.mxu0 %v82
  %134 = vmatprep.subr.mxu0 %v87
  %135 = vmatpush1.msra.mxu0 %v86
  %136 = vmatprep.subr.mxu0 %v91
  %137 = vmatpush1.msra.mxu0 %v90
  %138 = vmatprep.subr.mxu0 %v95
  %139 = vmatpush1.msra.mxu0 %v94
  %140 = vmatprep.subr.mxu0 %v99
  %141 = vmatpush1.msra.mxu0 %v98
  %142 = vmatprep.subr.mxu0 %v103
  %143 = vmatpush1.msra.mxu0 %v102
  %144 = vmatprep.subr.mxu0 %v107
  %145 = vmatpush1.msra.mxu0 %v106
  %146 = vmatprep.subr.mxu0 %v111
  %147 = vmatpush1.msra.mxu0 %v110
  %148 = vmatprep.subr.mxu0 %v115
  %149 = vmatpush1.msra.mxu0 %v114
  %150 = vmatprep.subr.mxu0 0.0
  %151 = vmatpush1.msra.mxu0 0.0
  %152 = vmatprep.subr.mxu0 0.0
  %153 = vmatpush1.msra.mxu0 0.0
  %154 = vmatprep.subr.mxu0 0.0
  %155 = vmatpush1.msra.mxu0 0.0
  %156 = vmatprep.subr.mxu0 0.0
  %157 = vmatpush1.msra.mxu0 0.0
  %158 = vmatprep.subr.mxu0 0.0
  %159 = vmatpush1.msra.mxu0 0.0
  %160 = vmatprep.subr.mxu0 0.0
  %161 = vmatpush1.msra.mxu0 0.0
  %162 = vmatprep.subr.mxu0 0.0
  %163 = vmatpush1.msra.mxu0 0.0
  %164 = vmatprep.subr.mxu0 0.0
  %165 = vmatpush1.msra.mxu0 0.0
  %166 = vmatprep.subr.mxu0 0.0
  %167 = vmatpush1.msra.mxu0 0.0
  %168 = vmatprep.subr.mxu0 0.0
  %169 = vmatpush1.msra.mxu0 0.0
  %170 = vmatprep.subr.mxu0 0.0
  %171 = vmatpush1.msra.mxu0 0.0
  %172 = vmatprep.subr.mxu0 0.0
  %173 = vmatpush1.msra.mxu0 0.0
  %174 = vmatprep.subr.mxu0 0.0
  %175 = vmatpush1.msra.mxu0 0.0
  %176 = vmatprep.subr.mxu0 0.0
  %177 = vmatpush1.msra.mxu0 0.0
  %178 = vmatprep.subr.mxu0 0.0
  %179 = vmatpush1.msra.mxu0 0.0
  %180 = vmatprep.subr.mxu0 0.0
  %181 = vmatpush1.msra.mxu0 0.0
  %182 = vmatprep.mubr.f32.mxu0 0.0
  %183 = vmatmul.mubr.f32.gmra.mrb[0].mxu0 %v50
  %v184 = vpop.f32.mrb[0].mxu0
  %v185 = vadd.f32 0.0, %v184
  %v186 = vpop.f32.mrb[0].mxu0
  %v187 = vadd.f32 0.0, %v186
  %188 = vmatprep.mubr.f32.mxu0 0.0
  %189 = vmatmul.mubr.f32.gmra.mrb[0].mxu0 %v51
  %v190 = vpop.f32.mrb[0].mxu0
  %v191 = vadd.f32 0.0, %v190
  %v192 = vpop.f32.mrb[0].mxu0
  %v193 = vadd.f32 0.0, %v192
  %194 = vmatprep.mubr.f32.mxu0 0.0
  %195 = vmatmul.mubr.f32.gmra.mrb[0].mxu0 %v52
  %v196 = vpop.f32.mrb[0].mxu0
  %v197 = vadd.f32 0.0, %v196
  %v198 = vpop.f32.mrb[0].mxu0
  %v199 = vadd.f32 0.0, %v198
  %200 = vmatprep.mubr.f32.mxu0 0.0
  %201 = vmatmul.mubr.f32.gmra.mrb[0].mxu0 %v53
  %v202 = vpop.f32.mrb[0].mxu0
  %v203 = vadd.f32 0.0, %v202
  %v204 = vpop.f32.mrb[0].mxu0
  %v205 = vadd.f32 0.0, %v204
  %206 = vdwg.mxu0
  %207 = vmatprep.subr.mxu0 %v57
  %208 = vmatpush1.msra.mxu0 %v56
  %209 = vmatprep.subr.mxu0 %v61
  %210 = vmatpush1.msra.mxu0 %v60
  %211 = vmatprep.subr.mxu0 %v65
  %212 = vmatpush1.msra.mxu0 %v64
  %213 = vmatprep.subr.mxu0 %v69
  %214 = vmatpush1.msra.mxu0 %v68
  %215 = vmatprep.subr.mxu0 %v73
  %216 = vmatpush1.msra.mxu0 %v72
  %217 = vmatprep.subr.mxu0 %v77
  %218 = vmatpush1.msra.mxu0 %v76
  %219 = vmatprep.subr.mxu0 %v81
  %220 = vmatpush1.msra.mxu0 %v80
  %221 = vmatprep.subr.mxu0 %v85
  %222 = vmatpush1.msra.mxu0 %v84
  %223 = vmatprep.subr.mxu0 %v89
  %224 = vmatpush1.msra.mxu0 %v88
  %225 = vmatprep.subr.mxu0 %v93
  %226 = vmatpush1.msra.mxu0 %v92
  %227 = vmatprep.subr.mxu0 %v97
  %228 = vmatpush1.msra.mxu0 %v96
  %229 = vmatprep.subr.mxu0 %v101
  %230 = vmatpush1.msra.mxu0 %v100
  %231 = vmatprep.subr.mxu0 %v105
  %232 = vmatpush1.msra.mxu0 %v104
  %233 = vmatprep.subr.mxu0 %v109
  %234 = vmatpush1.msra.mxu0 %v108
  %235 = vmatprep.subr.mxu0 %v113
  %236 = vmatpush1.msra.mxu0 %v112
  %237 = vmatprep.subr.mxu0 %v117
  %238 = vmatpush1.msra.mxu0 %v116
  %239 = vmatprep.subr.mxu0 0.0
  %240 = vmatpush1.msra.mxu0 0.0
  %241 = vmatprep.subr.mxu0 0.0
  %242 = vmatpush1.msra.mxu0 0.0
  %243 = vmatprep.subr.mxu0 0.0
  %244 = vmatpush1.msra.mxu0 0.0
  %245 = vmatprep.subr.mxu0 0.0
  %246 = vmatpush1.msra.mxu0 0.0
  %247 = vmatprep.subr.mxu0 0.0
  %248 = vmatpush1.msra.mxu0 0.0
  %249 = vmatprep.subr.mxu0 0.0
  %250 = vmatpush1.msra.mxu0 0.0
  %251 = vmatprep.subr.mxu0 0.0
  %252 = vmatpush1.msra.mxu0 0.0
  %253 = vmatprep.subr.mxu0 0.0
  %254 = vmatpush1.msra.mxu0 0.0
  %255 = vmatprep.subr.mxu0 0.0
  %256 = vmatpush1.msra.mxu0 0.0
  %257 = vmatprep.subr.mxu0 0.0
  %258 = vmatpush1.msra.mxu0 0.0
  %259 = vmatprep.subr.mxu0 0.0
  %260 = vmatpush1.msra.mxu0 0.0
  %261 = vmatprep.subr.mxu0 0.0
  %262 = vmatpush1.msra.mxu0 0.0
  %263 = vmatprep.subr.mxu0 0.0
  %264 = vmatpush1.msra.mxu0 0.0
  %265 = vmatprep.subr.mxu0 0.0
  %266 = vmatpush1.msra.mxu0 0.0
  %267 = vmatprep.subr.mxu0 0.0
  %268 = vmatpush1.msra.mxu0 0.0
  %269 = vmatprep.subr.mxu0 0.0
  %270 = vmatpush1.msra.mxu0 0.0
  %271 = vmatprep.mubr.f32.mxu0 0.0
  %272 = vmatmul.mubr.f32.gmra.mrb[0].mxu0 %v50
  %v273 = vpop.f32.mrb[0].mxu0
  %v274 = vadd.f32 0.0, %v273
  %v275 = vpop.f32.mrb[0].mxu0
  %v276 = vadd.f32 0.0, %v275
  %277 = vmatprep.mubr.f32.mxu0 0.0
  %278 = vmatmul.mubr.f32.gmra.mrb[0].mxu0 %v51
  %v279 = vpop.f32.mrb[0].mxu0
  %v280 = vadd.f32 0.0, %v279
  %v281 = vpop.f32.mrb[0].mxu0
  %v282 = vadd.f32 0.0, %v281
  %283 = vmatprep.mubr.f32.mxu0 0.0
  %284 = vmatmul.mubr.f32.gmra.mrb[0].mxu0 %v52
  %v285 = vpop.f32.mrb[0].mxu0
  %v286 = vadd.f32 0.0, %v285
  %v287 = vpop.f32.mrb[0].mxu0
  %v288 = vadd.f32 0.0, %v287
  %289 = vmatprep.mubr.f32.mxu0 0.0
  %290 = vmatmul.mubr.f32.gmra.mrb[0].mxu0 %v53
  %v291 = vpop.f32.mrb[0].mxu0
  %v292 = vadd.f32 0.0, %v291
  %v293 = vpop.f32.mrb[0].mxu0
  %v294 = vadd.f32 0.0, %v293
  %295 = vdwg.mxu0
  %v296 = vadd.f32 %v34, %v185
  %v297 = vadd.f32 %v35, %v187
  %v298 = vadd.f32 %v36, %v274
  %v299 = vadd.f32 %v37, %v276
  %v300 = vadd.f32 %v38, %v191
  %v301 = vadd.f32 %v39, %v193
  %v302 = vadd.f32 %v40, %v280
  %v303 = vadd.f32 %v41, %v282
  %v304 = vadd.f32 %v42, %v197
  %v305 = vadd.f32 %v43, %v199
  %v306 = vadd.f32 %v44, %v286
  %v307 = vadd.f32 %v45, %v288
  %v308 = vadd.f32 %v46, %v203
  %v309 = vadd.f32 %v47, %v205
  %v310 = vadd.f32 %v48, %v292
  %v311 = vadd.f32 %v49, %v294
  %312 = vst [vmem:[#allocation2] sm:$0xff] %v296
  %313 = vst [vmem:[#allocation2 + $0x8] sm:$0xff] %v297
  %314 = vst [vmem:[#allocation2 + $0x10] sm:$0xff] %v298
  %315 = vst [vmem:[#allocation2 + $0x18] sm:$0xff] %v299
  %316 = vst [vmem:[#allocation2 + $0x20] sm:$0xff] %v300
  %317 = vst [vmem:[#allocation2 + $0x28] sm:$0xff] %v301
  %318 = vst [vmem:[#allocation2 + $0x30] sm:$0xff] %v302
  %319 = vst [vmem:[#allocation2 + $0x38] sm:$0xff] %v303
  %320 = vst [vmem:[#allocation2 + $0x40] sm:$0xff] %v304
  %321 = vst [vmem:[#allocation2 + $0x48] sm:$0xff] %v305
  %322 = vst [vmem:[#allocation2 + $0x50] sm:$0xff] %v306
  %323 = vst [vmem:[#allocation2 + $0x58] sm:$0xff] %v307
  %324 = vst [vmem:[#allocation2 + $0x60] sm:$0xff] %v308
  %325 = vst [vmem:[#allocation2 + $0x68] sm:$0xff] %v309
  %326 = vst [vmem:[#allocation2 + $0x70] sm:$0xff] %v310
  %327 = vst [vmem:[#allocation2 + $0x78] sm:$0xff] %v311
  // Predicated region
  $region18: #{encoder_layer_forward.8} parent=0 // pred_check
    %p328 = pneg %p14
  $region19: #{encoder_layer_forward.8} parent=0 // pred_check_branch
    %330 = sbr.rel (%p328) target = $region21
  $region20: #{encoder_layer_forward.8} parent=0 // pred_region
    %v331 = vld [vmem:[#allocation2] sm:$0xff]
    %v332 = vld [vmem:[#allocation2 + $0x8] sm:$0xff]
    %v333 = vld [vmem:[#allocation2 + $0x10] sm:$0xff]
    %v334 = vld [vmem:[#allocation2 + $0x18] sm:$0xff]
    %v335 = vld [vmem:[#allocation2 + $0x20] sm:$0xff]
    %v336 = vld [vmem:[#allocation2 + $0x28] sm:$0xff]
    %v337 = vld [vmem:[#allocation2 + $0x30] sm:$0xff]
    %v338 = vld [vmem:[#allocation2 + $0x38] sm:$0xff]
    %v339 = vld [vmem:[#allocation2 + $0x40] sm:$0xff]
    %v340 = vld [vmem:[#allocation2 + $0x48] sm:$0xff]
    %v341 = vld [vmem:[#allocation2 + $0x50] sm:$0xff]
    %v342 = vld [vmem:[#allocation2 + $0x58] sm:$0xff]
    %v343 = vld [vmem:[#allocation2 + $0x60] sm:$0xff]
    %v344 = vld [vmem:[#allocation2 + $0x68] sm:$0xff]
    %v345 = vld [vmem:[#allocation2 + $0x70] sm:$0xff]
    %v346 = vld [vmem:[#allocation2 + $0x78] sm:$0xff]
    %v347 = vld [vmem:[%s2] sm:$0xf]
    %v349 = vlaneseq
    %v350 = vshrl.u32 %v349, 7
    %v351 = vsub.s32 0, %v350
    %v352 = vrot.slane %v347, %v351
    %v353 = vlaneseq
    %v354 = vshrl.u32 %v353, 7
    %v355 = vsub.s32 1, %v354
    %v356 = vrot.slane %v347, %v355
    %v357 = vlaneseq
    %v358 = vshrl.u32 %v357, 7
    %v359 = vsub.s32 2, %v358
    %v360 = vrot.slane %v347, %v359
    %v361 = vlaneseq
    %v362 = vshrl.u32 %v361, 7
    %v363 = vsub.s32 3, %v362
    %v364 = vrot.slane %v347, %v363
    %v369 = vadd.f32 %v331, %v352
    %v370 = vadd.f32 %v332, %v356
    %v371 = vadd.f32 %v333, %v360
    %v372 = vadd.f32 %v334, %v364
    %v373 = vadd.f32 %v335, %v352
    %v374 = vadd.f32 %v336, %v356
    %v375 = vadd.f32 %v337, %v360
    %v376 = vadd.f32 %v338, %v364
    %v377 = vadd.f32 %v339, %v352
    %v378 = vadd.f32 %v340, %v356
    %v379 = vadd.f32 %v341, %v360
    %v380 = vadd.f32 %v342, %v364
    %v381 = vadd.f32 %v343, %v352
    %v382 = vadd.f32 %v344, %v356
    %v383 = vadd.f32 %v345, %v360
    %v384 = vadd.f32 %v346, %v364
    %v385 = vmax.f32 %v369, 0.0
    %v386 = vmax.f32 %v370, 0.0
    %v387 = vmax.f32 %v371, 0.0
    %v388 = vmax.f32 %v372, 0.0
    %v389 = vmax.f32 %v373, 0.0
    %v390 = vmax.f32 %v374, 0.0
    %v391 = vmax.f32 %v375, 0.0
    %v392 = vmax.f32 %v376, 0.0
    %v393 = vmax.f32 %v377, 0.0
    %v394 = vmax.f32 %v378, 0.0
    %v395 = vmax.f32 %v379, 0.0
    %v396 = vmax.f32 %v380, 0.0
    %v397 = vmax.f32 %v381, 0.0
    %v398 = vmax.f32 %v382, 0.0
    %v399 = vmax.f32 %v383, 0.0
    %v400 = vmax.f32 %v384, 0.0
    %401 = vst [vmem:[%s3] sm:$0xff] %v385
    %402 = vst [vmem:[%s3 + $0x8] sm:$0xff] %v386
    %403 = vst [vmem:[%s3 + $0x10] sm:$0xff] %v387
    %404 = vst [vmem:[%s3 + $0x18] sm:$0xff] %v388
    %405 = vst [vmem:[%s3 + $0x20] sm:$0xff] %v389
    %406 = vst [vmem:[%s3 + $0x28] sm:$0xff] %v390
    %407 = vst [vmem:[%s3 + $0x30] sm:$0xff] %v391
    %408 = vst [vmem:[%s3 + $0x38] sm:$0xff] %v392
    %409 = vst [vmem:[%s3 + $0x40] sm:$0xff] %v393
    %410 = vst [vmem:[%s3 + $0x48] sm:$0xff] %v394
    %411 = vst [vmem:[%s3 + $0x50] sm:$0xff] %v395
    %412 = vst [vmem:[%s3 + $0x58] sm:$0xff] %v396
    %413 = vst [vmem:[%s3 + $0x60] sm:$0xff] %v397
    %414 = vst [vmem:[%s3 + $0x68] sm:$0xff] %v398
    %415 = vst [vmem:[%s3 + $0x70] sm:$0xff] %v399
    %416 = vst [vmem:[%s3 + $0x78] sm:$0xff] %v400
  $region21: #{encoder_layer_forward.8} parent=0 // pred_fallthru
    _
  // Predicated region
  $region22: #{encoder_layer_forward.8} parent=0 // pred_check
    _
  $region23: #{encoder_layer_forward.8} parent=0 // pred_check_branch
    %418 = sbr.rel (0) target = $region25
  $region24: #{encoder_layer_forward.8} parent=0 // pred_region
    _
  $region25: #{encoder_layer_forward.8} parent=0 // pred_fallthru
    _
  // Predicated region
  $region26: #{encoder_layer_forward.8} parent=0 // pred_check
    _
  $region27: #{encoder_layer_forward.8} parent=0 // pred_check_branch
    %420 = sbr.rel (0) target = $region29
  $region28: #{encoder_layer_forward.8} parent=0 // pred_region
    _
  $region29: #{encoder_layer_forward.8} parent=0 // pred_fallthru
    _

// kernel: encoder_layer_forward.9
$region0: #{encoder_layer_forward.9}
  #allocation0 [shape = 'u32[]', space=smem, size = 0x4, offset = 0x4, fixed_abs, tag = 'smem constant byte address 0x4 - core index']
  #allocation1 [shape = 'u32[144,128]{1,0:T(1,128)}', space=vmem, size = 0x12000, scoped, tag = 'internal scratch']
  #allocation2 [shape = 'f32[32,128]{1,0:T(8,128)}', space=vmem, size = 0x4000, scoped, tag = 'scratch operand']
  %s0 = inlined_call_operand.vmem [shape: f32[32,512], index: 0, kind: input, shape index: {}]
  %s1 = inlined_call_operand.vmem [shape: f32[512,128], index: 1, kind: input, shape index: {}]
  %s2 = inlined_call_operand.vmem [shape: f32[1,128], index: 2, kind: input, shape index: {}]
  %s3 = inlined_call_operand.vmem [shape: f32[32,128], index: 3, kind: input, shape index: {}]
  %s4 = inlined_call_operand.vmem [shape: f32[32,1], index: 4, kind: input, shape index: {}]
  %s5 = inlined_call_operand.vmem [shape: f32[2], index: 5, kind: input, shape index: {}]
  %s6 = inlined_call_operand.hbm [shape: f32[32,128], index: 6, kind: output, shape index: {}]
  %s7 = sld [smem:[#allocation0]]
  $region46: #{encoder_layer_forward.9} parent=0
    _
  %s9 = ssub.s32 1, %s7
  %s10 = scalar_select 0, %s9, %s7
  $region1: #{encoder_layer_forward.9} parent=0
    #allocation3 [shape = 'u8[512]{0}', space=smem, size = 0x200, scoped, tag = 'input window, operand 5, single buffered']
    #allocation4 [shape = 's32[1]{0}', space=sflag, size = 0x4, scoped, tag = 'scoped memory for encoder_layer_forward.9']
    #allocation5 [shape = 's32[1]{0}', space=sflag, size = 0x4, scoped, tag = 'scoped memory for encoder_layer_forward.9']
    #allocation6 [shape = 'u8[16384]{0}', space=vmem, size = 0x4000, scoped, tag = 'output window, operand 0, single buffered']
    %11 = vsyncpa [#allocation5], 0
    %12 = vsyncpa [#allocation4], 0
    // Predicated region
    $region2: #{encoder_layer_forward.9} parent=1 // pred_check
      _
    $region3: #{encoder_layer_forward.9} parent=1 // pred_check_branch
      %14 = sbr.rel (0) target = $region5
    $region4: #{encoder_layer_forward.9} parent=1 // pred_region
      _
    $region5: #{encoder_layer_forward.9} parent=1 // pred_fallthru
      _
    // Predicated region
    $region6: #{encoder_layer_forward.9} parent=1 // pred_check
      _
    $region7: #{encoder_layer_forward.9} parent=1 // pred_check_branch
      %16 = sbr.rel (0) target = $region9
    $region8: #{encoder_layer_forward.9} parent=1 // pred_region
      _
    $region9: #{encoder_layer_forward.9} parent=1 // pred_fallthru
      _
    // Predicated region
    $region10: #{encoder_layer_forward.9} parent=1 // pred_check
      _
    $region11: #{encoder_layer_forward.9} parent=1 // pred_check_branch
      %18 = sbr.rel (0) target = $region13
    $region12: #{encoder_layer_forward.9} parent=1 // pred_region
      _
    $region13: #{encoder_layer_forward.9} parent=1 // pred_fallthru
      _
    // Predicated region
    $region14: #{encoder_layer_forward.9} parent=1 // pred_check
      _
    $region15: #{encoder_layer_forward.9} parent=1 // pred_check_branch
      %20 = sbr.rel (0) target = $region17
    $region16: #{encoder_layer_forward.9} parent=1 // pred_region
      _
    $region17: #{encoder_layer_forward.9} parent=1 // pred_fallthru
      _
    // Predicated region
    $region18: #{encoder_layer_forward.9} parent=1 // pred_check
      _
    $region19: #{encoder_layer_forward.9} parent=1 // pred_check_branch
      %22 = sbr.rel (0) target = $region21
    $region20: #{encoder_layer_forward.9} parent=1 // pred_region
      _
    $region21: #{encoder_layer_forward.9} parent=1 // pred_fallthru
      _
    // Predicated region
    $region22: #{encoder_layer_forward.9} parent=1 // pred_check
      _
    $region23: #{encoder_layer_forward.9} parent=1 // pred_check_branch
      %24 = sbr.rel (0) target = $region25
    $region24: #{encoder_layer_forward.9} parent=1 // pred_region
      %s26 = ssub.s32 16, 16
      %27 = vsyncadd [#allocation5], %s26
      %s29 = sshll.u32 %s5, 4
      %s30 = int_to_ptr.vmem [resolvable:$true] %s29
      %32 = dma.vmem_to_smem %s30, 16, [#allocation3], [#allocation5]
    $region25: #{encoder_layer_forward.9} parent=1 // pred_fallthru
      _
    // Predicated region
    $region26: #{encoder_layer_forward.9} parent=1 // pred_check
      _
    $region27: #{encoder_layer_forward.9} parent=1 // pred_check_branch
      %34 = sbr.rel (0) target = $region29
    $region28: #{encoder_layer_forward.9} parent=1 // pred_region
      %35 = dma.done [#allocation5], 16
    $region29: #{encoder_layer_forward.9} parent=1 // pred_fallthru
      _
    %36 = sfence
    %p37 = scmp.eq.s32.totalorder 0, 0
    // Predicated region
    $region30: #{encoder_layer_forward.9} parent=1 // pred_check
      %p38 = pneg %p37
    $region31: #{encoder_layer_forward.9} parent=1 // pred_check_branch
      %40 = sbr.rel (%p38) target = $region33
    $region32: #{encoder_layer_forward.9} parent=1 // pred_region
      %41 = vst [vmem:[#allocation2] sm:$0xff] 0.0
      %42 = vst [vmem:[#allocation2 + $0x8] sm:$0xff] 0.0
      %43 = vst [vmem:[#allocation2 + $0x10] sm:$0xff] 0.0
      %44 = vst [vmem:[#allocation2 + $0x18] sm:$0xff] 0.0
    $region33: #{encoder_layer_forward.9} parent=1 // pred_fallthru
      _
    %v45 = vld [vmem:[#allocation2] sm:$0xff]
    %v46 = vld [vmem:[#allocation2 + $0x8] sm:$0xff]
    %v47 = vld [vmem:[#allocation2 + $0x10] sm:$0xff]
    %v48 = vld [vmem:[#allocation2 + $0x18] sm:$0xff]
    %v49 = vld [vmem:[%s0] sm:$0xff]
    %v50 = vld [vmem:[%s0 + $0x8] sm:$0xff]
    %v51 = vld [vmem:[%s0 + $0x10] sm:$0xff]
    %v52 = vld [vmem:[%s0 + $0x18] sm:$0xff]
    %v53 = vld [vmem:[%s0 + $0x20] sm:$0xff]
    %v54 = vld [vmem:[%s0 + $0x28] sm:$0xff]
    %v55 = vld [vmem:[%s0 + $0x30] sm:$0xff]
    %v56 = vld [vmem:[%s0 + $0x38] sm:$0xff]
    %v57 = vld [vmem:[%s0 + $0x40] sm:$0xff]
    %v58 = vld [vmem:[%s0 + $0x48] sm:$0xff]
    %v59 = vld [vmem:[%s0 + $0x50] sm:$0xff]
    %v60 = vld [vmem:[%s0 + $0x58] sm:$0xff]
    %v61 = vld [vmem:[%s0 + $0x60] sm:$0xff]
    %v62 = vld [vmem:[%s0 + $0x68] sm:$0xff]
    %v63 = vld [vmem:[%s0 + $0x70] sm:$0xff]
    %v64 = vld [vmem:[%s0 + $0x78] sm:$0xff]
    %v65 = vld [vmem:[%s1] sm:$0xff]
    %v66 = vld [vmem:[%s1 + $0x8] sm:$0xff]
    %v67 = vld [vmem:[%s1 + $0x10] sm:$0xff]
    %v68 = vld [vmem:[%s1 + $0x18] sm:$0xff]
    %v69 = vld [vmem:[%s1 + $0x20] sm:$0xff]
    %v70 = vld [vmem:[%s1 + $0x28] sm:$0xff]
    %v71 = vld [vmem:[%s1 + $0x30] sm:$0xff]
    %v72 = vld [vmem:[%s1 + $0x38] sm:$0xff]
    %v73 = vld [vmem:[%s1 + $0x40] sm:$0xff]
    %v74 = vld [vmem:[%s1 + $0x48] sm:$0xff]
    %v75 = vld [vmem:[%s1 + $0x50] sm:$0xff]
    %v76 = vld [vmem:[%s1 + $0x58] sm:$0xff]
    %v77 = vld [vmem:[%s1 + $0x60] sm:$0xff]
    %v78 = vld [vmem:[%s1 + $0x68] sm:$0xff]
    %v79 = vld [vmem:[%s1 + $0x70] sm:$0xff]
    %v80 = vld [vmem:[%s1 + $0x78] sm:$0xff]
    %v81 = vld [vmem:[%s1 + $0x80] sm:$0xff]
    %v82 = vld [vmem:[%s1 + $0x88] sm:$0xff]
    %v83 = vld [vmem:[%s1 + $0x90] sm:$0xff]
    %v84 = vld [vmem:[%s1 + $0x98] sm:$0xff]
    %v85 = vld [vmem:[%s1 + $0xa0] sm:$0xff]
    %v86 = vld [vmem:[%s1 + $0xa8] sm:$0xff]
    %v87 = vld [vmem:[%s1 + $0xb0] sm:$0xff]
    %v88 = vld [vmem:[%s1 + $0xb8] sm:$0xff]
    %v89 = vld [vmem:[%s1 + $0xc0] sm:$0xff]
    %v90 = vld [vmem:[%s1 + $0xc8] sm:$0xff]
    %v91 = vld [vmem:[%s1 + $0xd0] sm:$0xff]
    %v92 = vld [vmem:[%s1 + $0xd8] sm:$0xff]
    %v93 = vld [vmem:[%s1 + $0xe0] sm:$0xff]
    %v94 = vld [vmem:[%s1 + $0xe8] sm:$0xff]
    %v95 = vld [vmem:[%s1 + $0xf0] sm:$0xff]
    %v96 = vld [vmem:[%s1 + $0xf8] sm:$0xff]
    %v97 = vld [vmem:[%s1 + $0x100] sm:$0xff]
    %v98 = vld [vmem:[%s1 + $0x108] sm:$0xff]
    %v99 = vld [vmem:[%s1 + $0x110] sm:$0xff]
    %v100 = vld [vmem:[%s1 + $0x118] sm:$0xff]
    %v101 = vld [vmem:[%s1 + $0x120] sm:$0xff]
    %v102 = vld [vmem:[%s1 + $0x128] sm:$0xff]
    %v103 = vld [vmem:[%s1 + $0x130] sm:$0xff]
    %v104 = vld [vmem:[%s1 + $0x138] sm:$0xff]
    %v105 = vld [vmem:[%s1 + $0x140] sm:$0xff]
    %v106 = vld [vmem:[%s1 + $0x148] sm:$0xff]
    %v107 = vld [vmem:[%s1 + $0x150] sm:$0xff]
    %v108 = vld [vmem:[%s1 + $0x158] sm:$0xff]
    %v109 = vld [vmem:[%s1 + $0x160] sm:$0xff]
    %v110 = vld [vmem:[%s1 + $0x168] sm:$0xff]
    %v111 = vld [vmem:[%s1 + $0x170] sm:$0xff]
    %v112 = vld [vmem:[%s1 + $0x178] sm:$0xff]
    %v113 = vld [vmem:[%s1 + $0x180] sm:$0xff]
    %v114 = vld [vmem:[%s1 + $0x188] sm:$0xff]
    %v115 = vld [vmem:[%s1 + $0x190] sm:$0xff]
    %v116 = vld [vmem:[%s1 + $0x198] sm:$0xff]
    %v117 = vld [vmem:[%s1 + $0x1a0] sm:$0xff]
    %v118 = vld [vmem:[%s1 + $0x1a8] sm:$0xff]
    %v119 = vld [vmem:[%s1 + $0x1b0] sm:$0xff]
    %v120 = vld [vmem:[%s1 + $0x1b8] sm:$0xff]
    %v121 = vld [vmem:[%s1 + $0x1c0] sm:$0xff]
    %v122 = vld [vmem:[%s1 + $0x1c8] sm:$0xff]
    %v123 = vld [vmem:[%s1 + $0x1d0] sm:$0xff]
    %v124 = vld [vmem:[%s1 + $0x1d8] sm:$0xff]
    %v125 = vld [vmem:[%s1 + $0x1e0] sm:$0xff]
    %v126 = vld [vmem:[%s1 + $0x1e8] sm:$0xff]
    %v127 = vld [vmem:[%s1 + $0x1f0] sm:$0xff]
    %v128 = vld [vmem:[%s1 + $0x1f8] sm:$0xff]
    %129 = vmatprep.subr.mxu0 0.0
    %130 = vmatpush1.msra.mxu0 %v65
    %131 = vmatprep.subr.mxu0 0.0
    %132 = vmatpush1.msra.mxu0 %v66
    %133 = vmatprep.subr.mxu0 0.0
    %134 = vmatpush1.msra.mxu0 %v67
    %135 = vmatprep.subr.mxu0 0.0
    %136 = vmatpush1.msra.mxu0 %v68
    %137 = vmatprep.subr.mxu0 0.0
    %138 = vmatpush1.msra.mxu0 %v69
    %139 = vmatprep.subr.mxu0 0.0
    %140 = vmatpush1.msra.mxu0 %v70
    %141 = vmatprep.subr.mxu0 0.0
    %142 = vmatpush1.msra.mxu0 %v71
    %143 = vmatprep.subr.mxu0 0.0
    %144 = vmatpush1.msra.mxu0 %v72
    %145 = vmatprep.subr.mxu0 0.0
    %146 = vmatpush1.msra.mxu0 %v73
    %147 = vmatprep.subr.mxu0 0.0
    %148 = vmatpush1.msra.mxu0 %v74
    %149 = vmatprep.subr.mxu0 0.0
    %150 = vmatpush1.msra.mxu0 %v75
    %151 = vmatprep.subr.mxu0 0.0
    %152 = vmatpush1.msra.mxu0 %v76
    %153 = vmatprep.subr.mxu0 0.0
    %154 = vmatpush1.msra.mxu0 %v77
    %155 = vmatprep.subr.mxu0 0.0
    %156 = vmatpush1.msra.mxu0 %v78
    %157 = vmatprep.subr.mxu0 0.0
    %158 = vmatpush1.msra.mxu0 %v79
    %159 = vmatprep.subr.mxu0 0.0
    %160 = vmatpush1.msra.mxu0 %v80
    %161 = vmatprep.subr.mxu0 0.0
    %162 = vmatpush1.msra.mxu0 %v81
    %163 = vmatprep.subr.mxu0 0.0
    %164 = vmatpush1.msra.mxu0 %v82
    %165 = vmatprep.subr.mxu0 0.0
    %166 = vmatpush1.msra.mxu0 %v83
    %167 = vmatprep.subr.mxu0 0.0
    %168 = vmatpush1.msra.mxu0 %v84
    %169 = vmatprep.subr.mxu0 0.0
    %170 = vmatpush1.msra.mxu0 %v85
    %171 = vmatprep.subr.mxu0 0.0
    %172 = vmatpush1.msra.mxu0 %v86
    %173 = vmatprep.subr.mxu0 0.0
    %174 = vmatpush1.msra.mxu0 %v87
    %175 = vmatprep.subr.mxu0 0.0
    %176 = vmatpush1.msra.mxu0 %v88
    %177 = vmatprep.subr.mxu0 0.0
    %178 = vmatpush1.msra.mxu0 %v89
    %179 = vmatprep.subr.mxu0 0.0
    %180 = vmatpush1.msra.mxu0 %v90
    %181 = vmatprep.subr.mxu0 0.0
    %182 = vmatpush1.msra.mxu0 %v91
    %183 = vmatprep.subr.mxu0 0.0
    %184 = vmatpush1.msra.mxu0 %v92
    %185 = vmatprep.subr.mxu0 0.0
    %186 = vmatpush1.msra.mxu0 %v93
    %187 = vmatprep.subr.mxu0 0.0
    %188 = vmatpush1.msra.mxu0 %v94
    %189 = vmatprep.subr.mxu0 0.0
    %190 = vmatpush1.msra.mxu0 %v95
    %191 = vmatprep.subr.mxu0 0.0
    %192 = vmatpush1.msra.mxu0 %v96
    %193 = vmatprep.mubr.f32.mxu0 %v50
    %194 = vmatmul.mubr.f32.gmra.mrb[0].mxu0 %v49
    %v195 = vpop.f32.mrb[0].mxu0
    %v196 = vadd.f32 0.0, %v195
    %v197 = vpop.f32.mrb[0].mxu0
    %198 = vmatprep.mubr.f32.mxu0 %v54
    %199 = vmatmul.mubr.f32.gmra.mrb[0].mxu0 %v53
    %v200 = vpop.f32.mrb[0].mxu0
    %v201 = vadd.f32 0.0, %v200
    %v202 = vpop.f32.mrb[0].mxu0
    %203 = vmatprep.mubr.f32.mxu0 %v58
    %204 = vmatmul.mubr.f32.gmra.mrb[0].mxu0 %v57
    %v205 = vpop.f32.mrb[0].mxu0
    %v206 = vadd.f32 0.0, %v205
    %v207 = vpop.f32.mrb[0].mxu0
    %208 = vmatprep.mubr.f32.mxu0 %v62
    %209 = vmatmul.mubr.f32.gmra.mrb[0].mxu0 %v61
    %v210 = vpop.f32.mrb[0].mxu0
    %v211 = vadd.f32 0.0, %v210
    %v212 = vpop.f32.mrb[0].mxu0
    %213 = vdwg.mxu0
    %214 = vmatprep.subr.mxu0 0.0
    %215 = vmatpush1.msra.mxu0 %v97
    %216 = vmatprep.subr.mxu0 0.0
    %217 = vmatpush1.msra.mxu0 %v98
    %218 = vmatprep.subr.mxu0 0.0
    %219 = vmatpush1.msra.mxu0 %v99
    %220 = vmatprep.subr.mxu0 0.0
    %221 = vmatpush1.msra.mxu0 %v100
    %222 = vmatprep.subr.mxu0 0.0
    %223 = vmatpush1.msra.mxu0 %v101
    %224 = vmatprep.subr.mxu0 0.0
    %225 = vmatpush1.msra.mxu0 %v102
    %226 = vmatprep.subr.mxu0 0.0
    %227 = vmatpush1.msra.mxu0 %v103
    %228 = vmatprep.subr.mxu0 0.0
    %229 = vmatpush1.msra.mxu0 %v104
    %230 = vmatprep.subr.mxu0 0.0
    %231 = vmatpush1.msra.mxu0 %v105
    %232 = vmatprep.subr.mxu0 0.0
    %233 = vmatpush1.msra.mxu0 %v106
    %234 = vmatprep.subr.mxu0 0.0
    %235 = vmatpush1.msra.mxu0 %v107
    %236 = vmatprep.subr.mxu0 0.0
    %237 = vmatpush1.msra.mxu0 %v108
    %238 = vmatprep.subr.mxu0 0.0
    %239 = vmatpush1.msra.mxu0 %v109
    %240 = vmatprep.subr.mxu0 0.0
    %241 = vmatpush1.msra.mxu0 %v110
    %242 = vmatprep.subr.mxu0 0.0
    %243 = vmatpush1.msra.mxu0 %v111
    %244 = vmatprep.subr.mxu0 0.0
    %245 = vmatpush1.msra.mxu0 %v112
    %246 = vmatprep.subr.mxu0 0.0
    %247 = vmatpush1.msra.mxu0 %v113
    %248 = vmatprep.subr.mxu0 0.0
    %249 = vmatpush1.msra.mxu0 %v114
    %250 = vmatprep.subr.mxu0 0.0
    %251 = vmatpush1.msra.mxu0 %v115
    %252 = vmatprep.subr.mxu0 0.0
    %253 = vmatpush1.msra.mxu0 %v116
    %254 = vmatprep.subr.mxu0 0.0
    %255 = vmatpush1.msra.mxu0 %v117
    %256 = vmatprep.subr.mxu0 0.0
    %257 = vmatpush1.msra.mxu0 %v118
    %258 = vmatprep.subr.mxu0 0.0
    %259 = vmatpush1.msra.mxu0 %v119
    %260 = vmatprep.subr.mxu0 0.0
    %261 = vmatpush1.msra.mxu0 %v120
    %262 = vmatprep.subr.mxu0 0.0
    %263 = vmatpush1.msra.mxu0 %v121
    %264 = vmatprep.subr.mxu0 0.0
    %265 = vmatpush1.msra.mxu0 %v122
    %266 = vmatprep.subr.mxu0 0.0
    %267 = vmatpush1.msra.mxu0 %v123
    %268 = vmatprep.subr.mxu0 0.0
    %269 = vmatpush1.msra.mxu0 %v124
    %270 = vmatprep.subr.mxu0 0.0
    %271 = vmatpush1.msra.mxu0 %v125
    %272 = vmatprep.subr.mxu0 0.0
    %273 = vmatpush1.msra.mxu0 %v126
    %274 = vmatprep.subr.mxu0 0.0
    %275 = vmatpush1.msra.mxu0 %v127
    %276 = vmatprep.subr.mxu0 0.0
    %277 = vmatpush1.msra.mxu0 %v128
    %278 = vmatprep.mubr.f32.mxu0 %v52
    %279 = vmatmul.mubr.f32.gmra.mrb[0].mxu0 %v51
    %v280 = vpop.f32.mrb[0].mxu0
    %v281 = vadd.f32 %v196, %v280
    %v282 = vpop.f32.mrb[0].mxu0
    %283 = vmatprep.mubr.f32.mxu0 %v56
    %284 = vmatmul.mubr.f32.gmra.mrb[0].mxu0 %v55
    %v285 = vpop.f32.mrb[0].mxu0
    %v286 = vadd.f32 %v201, %v285
    %v287 = vpop.f32.mrb[0].mxu0
    %288 = vmatprep.mubr.f32.mxu0 %v60
    %289 = vmatmul.mubr.f32.gmra.mrb[0].mxu0 %v59
    %v290 = vpop.f32.mrb[0].mxu0
    %v291 = vadd.f32 %v206, %v290
    %v292 = vpop.f32.mrb[0].mxu0
    %293 = vmatprep.mubr.f32.mxu0 %v64
    %294 = vmatmul.mubr.f32.gmra.mrb[0].mxu0 %v63
    %v295 = vpop.f32.mrb[0].mxu0
    %v296 = vadd.f32 %v211, %v295
    %v297 = vpop.f32.mrb[0].mxu0
    %298 = vdwg.mxu0
    %v299 = vadd.f32 %v45, %v281
    %v300 = vadd.f32 %v46, %v286
    %v301 = vadd.f32 %v47, %v291
    %v302 = vadd.f32 %v48, %v296
    %303 = vst [vmem:[#allocation2] sm:$0xff] %v299
    %304 = vst [vmem:[#allocation2 + $0x8] sm:$0xff] %v300
    %305 = vst [vmem:[#allocation2 + $0x10] sm:$0xff] %v301
    %306 = vst [vmem:[#allocation2 + $0x18] sm:$0xff] %v302
    // Predicated region
    $region34: #{encoder_layer_forward.9} parent=1 // pred_check
      %p307 = pneg %p37
    $region35: #{encoder_layer_forward.9} parent=1 // pred_check_branch
      %309 = sbr.rel (%p307) target = $region37
    $region36: #{encoder_layer_forward.9} parent=1 // pred_region
      %v310 = vld [vmem:[#allocation2] sm:$0xff]
      %v311 = vld [vmem:[#allocation2 + $0x8] sm:$0xff]
      %v312 = vld [vmem:[#allocation2 + $0x10] sm:$0xff]
      %v313 = vld [vmem:[#allocation2 + $0x18] sm:$0xff]
      %v314 = vld [vmem:[%s2] sm:$0x1]
      %v316 = vlaneseq
      %v317 = vshrl.u32 %v316, 7
      %v318 = vsub.s32 0, %v317
      %v319 = vrot.slane %v314, %v318
      %v321 = vadd.f32 %v310, %v319
      %v322 = vadd.f32 %v311, %v319
      %v323 = vadd.f32 %v312, %v319
      %v324 = vadd.f32 %v313, %v319
      %v325 = vld [vmem:[%s3] sm:$0xff]
      %v326 = vld [vmem:[%s3 + $0x8] sm:$0xff]
      %v327 = vld [vmem:[%s3 + $0x10] sm:$0xff]
      %v328 = vld [vmem:[%s3 + $0x18] sm:$0xff]
      %v329 = vadd.f32 %v321, %v325
      %v330 = vadd.f32 %v322, %v326
      %v331 = vadd.f32 %v323, %v327
      %v332 = vadd.f32 %v324, %v328
      %333 = vadd.xlane.f32.xlu0 %v329
      %v334 = vpop.xlane.xlu0 %333
      %335 = vadd.xlane.f32.xlu0 %v330
      %v336 = vpop.xlane.xlu0 %335
      %337 = vadd.xlane.f32.xlu0 %v331
      %v338 = vpop.xlane.xlu0 %337
      %339 = vadd.xlane.f32.xlu0 %v332
      %v340 = vpop.xlane.xlu0 %339
      %v341 = vrcp.pop 128.0
      %v342 = vmul.f32 %v334, %v341
      %v343 = vmul.f32 %v336, %v341
      %v344 = vmul.f32 %v338, %v341
      %v345 = vmul.f32 %v340, %v341
      %v346 = vsub.f32 %v329, %v342
      %v347 = vsub.f32 %v330, %v343
      %v348 = vsub.f32 %v331, %v344
      %v349 = vsub.f32 %v332, %v345
      %v350 = vmul.f32 %v346, %v346
      %v351 = vmul.f32 %v347, %v347
      %v352 = vmul.f32 %v348, %v348
      %v353 = vmul.f32 %v349, %v349
      %354 = vadd.xlane.f32.xlu0 %v350
      %v355 = vpop.xlane.xlu0 %354
      %356 = vadd.xlane.f32.xlu0 %v351
      %v357 = vpop.xlane.xlu0 %356
      %358 = vadd.xlane.f32.xlu0 %v352
      %v359 = vpop.xlane.xlu0 %358
      %360 = vadd.xlane.f32.xlu0 %v353
      %v361 = vpop.xlane.xlu0 %360
      %v362 = vmul.f32 %v355, 0.007874016
      %v363 = vmul.f32 %v357, 0.007874016
      %v364 = vmul.f32 %v359, 0.007874016
      %v365 = vmul.f32 %v361, 0.007874016
      %v366 = vadd.f32 %v362, 1e-08
      %v367 = vadd.f32 %v363, 1e-08
      %v368 = vadd.f32 %v364, 1e-08
      %v369 = vadd.f32 %v365, 1e-08
      %v370 = vrsqrt.pop %v366
      %v371 = vrsqrt.pop %v367
      %v372 = vrsqrt.pop %v368
      %v373 = vrsqrt.pop %v369
      %v374 = vmul.f32 %v346, %v370
      %v375 = vmul.f32 %v347, %v371
      %v376 = vmul.f32 %v348, %v372
      %v377 = vmul.f32 %v349, %v373
      %s378 = sld [smem:[#allocation3]]
      %v379 = vstv %s378
      %v380 = vmul.f32 %v379, %v374
      %v381 = vmul.f32 %v379, %v375
      %v382 = vmul.f32 %v379, %v376
      %v383 = vmul.f32 %v379, %v377
      %s384 = sld [smem:[#allocation3 + $0x1]]
      %v385 = vstv %s384
      %v386 = vadd.f32 %v380, %v385
      %v387 = vadd.f32 %v381, %v385
      %v388 = vadd.f32 %v382, %v385
      %v389 = vadd.f32 %v383, %v385
      %v390 = vld [vmem:[%s4] sm:$0xff]
      %v391 = vld [vmem:[%s4 + $0x8] sm:$0xff]
      %v392 = vld [vmem:[%s4 + $0x10] sm:$0xff]
      %v393 = vld [vmem:[%s4 + $0x18] sm:$0xff]
      %vm394 = vcmp.ne.f32.partialorder %v390, 0.0
      %vm395 = vcmp.ne.f32.partialorder %v391, 0.0
      %vm396 = vcmp.ne.f32.partialorder %v392, 0.0
      %vm397 = vcmp.ne.f32.partialorder %v393, 0.0
      %v398 = vsel %vm394, 1, 0
      %v399 = vsel %vm395, 1, 0
      %v400 = vsel %vm396, 1, 0
      %v401 = vsel %vm397, 1, 0
      %402 = vset.pattern.permute.xlu0 0
      %403 = vperm.xlu0 %402, %v398
      %v404 = vpop.permute.xlu0 %403
      %405 = vset.pattern.permute.xlu0 0
      %406 = vperm.xlu0 %405, %v399
      %v407 = vpop.permute.xlu0 %406
      %408 = vset.pattern.permute.xlu0 0
      %409 = vperm.xlu0 %408, %v400
      %v410 = vpop.permute.xlu0 %409
      %411 = vset.pattern.permute.xlu0 0
      %412 = vperm.xlu0 %411, %v401
      %v413 = vpop.permute.xlu0 %412
      %vm414 = vcmp.eq.s32.totalorder %v404, 1
      %vm415 = vcmp.eq.s32.totalorder %v407, 1
      %vm416 = vcmp.eq.s32.totalorder %v410, 1
      %vm417 = vcmp.eq.s32.totalorder %v413, 1
      %v418 = vsel %vm414, %v386, 0.0
      %v419 = vsel %vm415, %v387, 0.0
      %v420 = vsel %vm416, %v388, 0.0
      %v421 = vsel %vm417, %v389, 0.0
      %422 = vst [vmem:[#allocation6] sm:$0xff] %v418
      %423 = vst [vmem:[#allocation6 + $0x8] sm:$0xff] %v419
      %424 = vst [vmem:[#allocation6 + $0x10] sm:$0xff] %v420
      %425 = vst [vmem:[#allocation6 + $0x18] sm:$0xff] %v421
    $region37: #{encoder_layer_forward.9} parent=1 // pred_fallthru
      _
    // Predicated region
    $region38: #{encoder_layer_forward.9} parent=1 // pred_check
      _
    $region39: #{encoder_layer_forward.9} parent=1 // pred_check_branch
      %427 = sbr.rel (0) target = $region41
    $region40: #{encoder_layer_forward.9} parent=1 // pred_region
      %s429 = ssub.s32 512, 512
      %430 = vsyncadd [#allocation4], %s429
      %s431 = sshll.u32 [#allocation6], 4
      %s432 = int_to_ptr.vmem [resolvable:$true] %s431
      %437 = dma.vmem_to_hbm [thread:$0]  %s432, 512, %s6, [#allocation4], 128, 128, 8
    $region41: #{encoder_layer_forward.9} parent=1 // pred_fallthru
      _
    // Predicated region
    $region42: #{encoder_layer_forward.9} parent=1 // pred_check
      _
    $region43: #{encoder_layer_forward.9} parent=1 // pred_check_branch
      %439 = sbr.rel (0) target = $region45
    $region44: #{encoder_layer_forward.9} parent=1 // pred_region
      %440 = dma.done [#allocation4], 512
    $region45: #{encoder_layer_forward.9} parent=1 // pred_fallthru
      _
    %441 = vsyncpa [#allocation4], 1
    %442 = vsyncpa [#allocation5], 1

</llo_original>
